<compile_context>
chip_gen: v7x
topology: tpu7x:2x2x1
jax: 0.10.0
libtpu: 0.0.40
codegen_flags: <defaults>
</compile_context>

<pallas_src>
import numpy as np
import jax
import jax.numpy as jnp
from jax.experimental import pallas as pl
from jax.experimental.pallas import tpu as pltpu

# Small synthetic hyper-parameters consistent with the module's __init__.
B, T, E, H, V, NUM_LAYERS = 4, 8, 32, 32, 64, 2
D_IN0 = 2 * E                       # LSTM layer-0 input size = 2 * embed_size

# Padded shapes: batch -> 8 sublanes, vocab -> 128 lanes.  4*H == 128 already.
BP, VP = 8, 128
G = 4 * H                           # gate width (one lane tile)

# The fused kernel unrolls the layer stack explicitly.
assert NUM_LAYERS == 2
assert G == 128                     # gate block is exactly one lane tile


def _pick_mxu_dtype():
    """bf16 weights/operands on v6e/v7x (native MXU), f32 elsewhere."""
    try:
        dev = jax.devices()[0]
        if dev.platform != "tpu":
            return jnp.float32
        kind = dev.device_kind.lower()
    except Exception:
        return jnp.float32
    if any(tag in kind for tag in ("v6", "v7", "7x")):
        return jnp.bfloat16
    return jnp.float32


MXU_DTYPE = _pick_mxu_dtype()


# --------------------- single fused decoder kernel ---------------------------
def _decoder_kernel(emb_ref, feat_ref, lens_ref, h0_ref, c0_ref,
                    lng_ref, lnb_ref, wem_ref, wfe_ref, b0_ref,
                    whh0_ref, w1_ref, b1_ref, linw_ref, linb_ref,
                    logits_ref, hfin_ref, cfin_ref,
                    gx_ref, h1buf_ref):
    steps = emb_ref.shape[0] // BP          # static (== T)

    # ---- prologue (runs once): LayerNorm + hoisted layer-0 input projection -
    e = emb_ref[...]                                        # (T*BP, E) f32
    mu = jnp.mean(e, axis=-1, keepdims=True)
    xc = e - mu
    var = jnp.mean(xc * xc, axis=-1, keepdims=True)
    xn = xc * jax.lax.rsqrt(var + 1e-6) * lng_ref[...] + lnb_ref[...]
    gx_ref[...] = jnp.dot(xn.astype(MXU_DTYPE), wem_ref[...],
                          preferred_element_type=jnp.float32)
    # time-invariant feature-half projection + (b_ih + b_hh), computed ONCE
    fb = (jnp.dot(feat_ref[...].astype(MXU_DTYPE), wfe_ref[...],
                  preferred_element_type=jnp.float32)
          + b0_ref[...])                                    # (BP, 4H)

    lens = lens_ref[...]                                    # (BP, 1) int32

    def cell(gates, h_prev, c_prev, m):
        # PyTorch gate order i, f, g, o: width-H lane slices of one 128 tile.
        i_g = jax.nn.sigmoid(gates[:, 0 * H:1 * H])
        f_g = jax.nn.sigmoid(gates[:, 1 * H:2 * H])
        g_g = jnp.tanh(gates[:, 2 * H:3 * H])
        o_g = jax.nn.sigmoid(gates[:, 3 * H:4 * H])
        c_new = f_g * c_prev + i_g * g_g
        h_new = o_g * jnp.tanh(c_new)
        # pack_padded_sequence semantics: freeze state once t >= length[b].
        return jnp.where(m, h_new, h_prev), jnp.where(m, c_new, c_prev)

    def step(t, carry):
        h0, c0, h1, c1 = carry
        m = lens > t                                        # (BP, 1) bool
        off = pl.multiple_of(t * BP, BP)
        gx_t = gx_ref[pl.ds(off, BP), :]                    # (BP, 4H)

        # ---- layer 0: only the recurrent matmul remains on the serial path --
        gates0 = gx_t + fb + jnp.dot(h0.astype(MXU_DTYPE), whh0_ref[...],
                                     preferred_element_type=jnp.float32)
        h0n, c0n = cell(gates0, h0, c0, m)

        # ---- layer 1: fused [input ; recurrent] matmul (one MXU issue) ------
        x1 = jnp.concatenate([h0n, h1], axis=-1)            # (BP, 2H)
        gates1 = (jnp.dot(x1.astype(MXU_DTYPE), w1_ref[...],
                          preferred_element_type=jnp.float32)
                  + b1_ref[...])
        h1n, c1n = cell(gates1, h1, c1, m)

        # stash layer-1 hidden; vocab head runs batched after the loop
        h1buf_ref[pl.ds(off, BP), :] = h1n
        return h0n, c0n, h1n, c1n

    h0f, c0f, h1f, c1f = jax.lax.fori_loop(
        0, steps, step,
        (h0_ref[0], c0_ref[0], h0_ref[1], c0_ref[1]),
        unroll=True)

    hfin_ref[0] = h0f
    hfin_ref[1] = h1f
    cfin_ref[0] = c0f
    cfin_ref[1] = c1f

    # ---- epilogue: batched vocab head, one (T*BP, H) @ (H, VP) matmul -------
    logits_ref[...] = (
        jnp.dot(h1buf_ref[...].astype(MXU_DTYPE), linw_ref[...],
                preferred_element_type=jnp.float32)
        + linb_ref[...])


# ------------------------------ Forward (glue) -------------------------------
def decoder_forward(params, features, captions, lengths, prev_state):
    """features: (B, E) f32; captions: (B, T) i32; lengths: (B,) i32;
    prev_state: (h0, c0) each (NUM_LAYERS, B, H) f32."""
    bn, tn = captions.shape

    # --- repack parameters (gate width 4H == 128 needs no padding) -----------
    w_ih0 = params["w_ih"][0]                               # (2E, 4H)
    wfe = w_ih0[:E].astype(MXU_DTYPE)                       # feature half
    wem = w_ih0[E:].astype(MXU_DTYPE)                       # embedding half
    b0 = params["b"][0]                                     # (1, 4H)
    whh0 = params["w_hh"][0].astype(MXU_DTYPE)              # (H, 4H)
    w1 = jnp.concatenate([params["w_ih"][1], params["w_hh"][1]],
                         axis=0).astype(MXU_DTYPE)          # (2H, 4H) stacked
    b1 = params["b"][1]                                     # (1, 4H)
    linw = jnp.pad(params["lin_w"], ((0, 0), (0, VP - V))).astype(MXU_DTYPE)
    linb = jnp.pad(params["lin_b"], ((0, 0), (0, VP - V)))

    # --- pad batch dim to 8 sublanes (padded rows have length 0 => frozen) ---
    captions_p = jnp.pad(captions, ((0, BP - bn), (0, 0)))
    features_p = jnp.pad(features, ((0, BP - bn), (0, 0)))
    lens_p = jnp.pad(lengths.astype(jnp.int32), (0, BP - bn))[:, None]  # (BP,1)
    h0s, c0s = prev_state
    h0p = jnp.pad(h0s, ((0, 0), (0, BP - bn), (0, 0)))      # (L, BP, H)
    c0p = jnp.pad(c0s, ((0, 0), (0, BP - bn), (0, 0)))

    # --- embedding gather (glue), time-major flattened layout ----------------
    emb = jnp.take(params["embedding"], captions_p, axis=0)            # (BP,T,E)
    emb_flat = jnp.transpose(emb, (1, 0, 2)).reshape(tn * BP, E)       # (T*BP,E)
    # self.dropout(p=0.1): identity in eval mode.

    logits_flat, h_fin, c_fin = pl.pallas_call(
        _decoder_kernel,
        out_shape=(
            jax.ShapeDtypeStruct((tn * BP, VP), jnp.float32),           # logits
            jax.ShapeDtypeStruct((NUM_LAYERS, BP, H), jnp.float32),     # final h
            jax.ShapeDtypeStruct((NUM_LAYERS, BP, H), jnp.float32),     # final c
        ),
        scratch_shapes=[
            pltpu.VMEM((tn * BP, G), jnp.float32),   # hoisted layer-0 gates_x
            pltpu.VMEM((tn * BP, H), jnp.float32),   # per-step layer-1 hidden
        ],
    )(emb_flat, features_p, lens_p, h0p, c0p,
      params["ln_g"], params["ln_b"], wem, wfe, b0,
      whh0, w1, b1, linw, linb)

    logits = logits_flat.reshape(tn, BP, VP).transpose(1, 0, 2)[:bn, :, :V]
    state = (h_fin[:, :bn, :], c_fin[:, :bn, :])            # (L, B, H) each
    return logits, state


def packed_order(lengths_np):
    """Row order of PyTorch's PackedSequence.data (enforce_sorted=False)."""
    order = np.argsort(-lengths_np, kind="stable")
    b_idx, t_idx = [], []
    for t in range(int(lengths_np.max())):
        for b in order:
            if lengths_np[b] > t:
                b_idx.append(int(b))
                t_idx.append(t)
    return np.asarray(b_idx), np.asarray(t_idx)


# ------------------------- pure-JAX reference (check) ------------------------
def reference_forward(params, features, captions, lengths, prev_state):
    hp = jax.lax.Precision.HIGHEST
    bn, tn = captions.shape
    emb = jnp.take(params["embedding"], captions, axis=0)               # (B,T,E)
    mu = jnp.mean(emb, axis=-1, keepdims=True)
    var = jnp.mean((emb - mu) ** 2, axis=-1, keepdims=True)
    emb = (emb - mu) * jax.lax.rsqrt(var + 1e-6) * params["ln_g"][0] + params["ln_b"][0]
    feat = jnp.broadcast_to(features[:, None, :], (bn, tn, E))
    x = jnp.concatenate([feat, emb], axis=-1)                           # (B,T,2E)
    mask = (jnp.arange(tn)[None, :] < lengths[:, None]).astype(jnp.float32)
    layer_in = jnp.transpose(x, (1, 0, 2))                              # (T,B,2E)
    mask_tm = jnp.transpose(mask)[:, :, None]                           # (T,B,1)
    h0s, c0s = prev_state
    h_fin, c_fin = [], []
    for l in range(NUM_LAYERS):
        w_ih, w_hh, b = params["w_ih"][l], params["w_hh"][l], params["b"][l]

        def step(carry, inp):
            h, c = carry
            x_t, m_t = inp
            gates = (jnp.dot(x_t, w_ih, precision=hp)
                     + jnp.dot(h, w_hh, precision=hp) + b)
            i = jax.nn.sigmoid(gates[:, 0 * H:1 * H])
            f = jax.nn.sigmoid(gates[:, 1 * H:2 * H])
            g = jnp.tanh(gates[:, 2 * H:3 * H])
            o = jax.nn.sigmoid(gates[:, 3 * H:4 * H])
            c_new = f * c + i * g
            h_new = o * jnp.tanh(c_new)
            return (m_t * h_new + (1. - m_t) * h,
                    m_t * c_new + (1. - m_t) * c), m_t * h_new + (1. - m_t) * h

        (h_f, c_f), ys = jax.lax.scan(step, (h0s[l], c0s[l]), (layer_in, mask_tm))
        layer_in = ys
        h_fin.append(h_f)
        c_fin.append(c_f)
    hiddens = jnp.transpose(layer_in, (1, 0, 2))                        # (B,T,H)
    logits = (jnp.dot(hiddens.reshape(bn * tn, H), params["lin_w"], precision=hp)
              + params["lin_b"]).reshape(bn, tn, V)
    return logits, (jnp.stack(h_fin), jnp.stack(c_fin))


# ---------------------------------- main -------------------------------------
if __name__ == "__main__":
    key = jax.random.PRNGKey(0)
    ks = jax.random.split(key, 12)

    params = {
        "embedding": jax.random.normal(ks[0], (V, E), jnp.float32),
        "ln_g": jnp.ones((1, E), jnp.float32),
        "ln_b": jnp.zeros((1, E), jnp.float32),
        "lin_w": 0.1 * jax.random.normal(ks[1], (H, V), jnp.float32),
        "lin_b": 0.1 * jax.random.normal(ks[2], (1, V), jnp.float32),
        "w_ih": [], "w_hh": [], "b": [],
    }
    for layer in range(NUM_LAYERS):
        din = D_IN0 if layer == 0 else H
        params["w_ih"].append(
            0.1 * jax.random.normal(ks[3 + 3 * layer], (din, 4 * H), jnp.float32))
        params["w_hh"].append(
            0.1 * jax.random.normal(ks[4 + 3 * layer], (H, 4 * H), jnp.float32))
        params["b"].append(
            0.05 * jax.random.normal(ks[5 + 3 * layer], (1, 4 * H), jnp.float32))

    features = jax.random.normal(ks[9], (B, E), jnp.float32)
    captions = jax.random.randint(ks[10], (B, T), 0, V, dtype=jnp.int32)
    lengths_np = np.array([8, 5, 3, 6], dtype=np.int32)
    lengths = jnp.asarray(lengths_np)
    prev_state = (jnp.zeros((NUM_LAYERS, B, H), jnp.float32),
                  jnp.zeros((NUM_LAYERS, B, H), jnp.float32))

    logits_padded, state = decoder_forward(
        params, features, captions, lengths, prev_state)

    # Reproduce PyTorch's packed output shape: (sum(lengths), vocab)
    b_idx, t_idx = packed_order(lengths_np)
    outputs = logits_padded[b_idx, t_idx]
    jax.block_until_ready((outputs, state))

    # Correctness vs. pure-JAX reference.  Tolerance depends on MXU dtype
    # (bf16 on v6e/v7x, f32 elsewhere); accumulation is f32 in both cases.
    atol = 2e-2 if MXU_DTYPE is jnp.float32 else 1.5e-1
    ref_logits, ref_state = reference_forward(
        params, features, captions, lengths, prev_state)
    ref_outputs = ref_logits[b_idx, t_idx]
    np.testing.assert_allclose(np.asarray(outputs), np.asarray(ref_outputs),
                               rtol=0, atol=atol)
    np.testing.assert_allclose(np.asarray(state[0]), np.asarray(ref_state[0]),
                               rtol=0, atol=atol)
    np.testing.assert_allclose(np.asarray(state[1]), np.asarray(ref_state[1]),
                               rtol=0, atol=atol)

    assert outputs.shape == (int(lengths_np.sum()), V)
    assert state[0].shape == (NUM_LAYERS, B, H)
    print("KERNEL_OK")
</pallas_src>

<mosaic_0001>
module attributes {stable_mosaic.version = 11 : i64} {
  func.func @_decoder_kernel(%arg0: memref<64x32xf32, #tpu.memory_space<vmem>>, %arg1: memref<8x32xf32, #tpu.memory_space<vmem>>, %arg2: memref<8x1xi32, #tpu.memory_space<vmem>>, %arg3: memref<2x8x32xf32, #tpu.memory_space<vmem>>, %arg4: memref<2x8x32xf32, #tpu.memory_space<vmem>>, %arg5: memref<1x32xf32, #tpu.memory_space<vmem>>, %arg6: memref<1x32xf32, #tpu.memory_space<vmem>>, %arg7: memref<32x128xf32, #tpu.memory_space<vmem>>, %arg8: memref<32x128xf32, #tpu.memory_space<vmem>>, %arg9: memref<1x128xf32, #tpu.memory_space<vmem>>, %arg10: memref<32x128xf32, #tpu.memory_space<vmem>>, %arg11: memref<64x128xf32, #tpu.memory_space<vmem>>, %arg12: memref<1x128xf32, #tpu.memory_space<vmem>>, %arg13: memref<32x128xf32, #tpu.memory_space<vmem>>, %arg14: memref<1x128xf32, #tpu.memory_space<vmem>>, %arg15: memref<64x128xf32, #tpu.memory_space<vmem>>, %arg16: memref<2x8x32xf32, #tpu.memory_space<vmem>>, %arg17: memref<2x8x32xf32, #tpu.memory_space<vmem>>, %arg18: memref<64x128xf32, #tpu.memory_space<vmem>>, %arg19: memref<64x32xf32, #tpu.memory_space<vmem>>) attributes {dimension_semantics = [], scalar_prefetch = 0 : i64, scratch_operands = 2 : i64, tpu.core_type = #tpu.core_type<tc>} {
    %c0 = arith.constant 0 : index
    %c0_0 = arith.constant 0 : index
    %0 = vector.load %arg0[%c0, %c0_0] : memref<64x32xf32, #tpu.memory_space<vmem>>, vector<64x32xf32>
    %cst = arith.constant dense<0.000000e+00> : vector<64xf32>
    %1 = vector.multi_reduction <add>, %0, %cst [1] : vector<64x32xf32> to vector<64xf32>
    %2 = vector.shape_cast %1 : vector<64xf32> to vector<64x1xf32>
    %cst_1 = arith.constant 3.200000e+01 : f32
    %3 = vector.broadcast %cst_1 : f32 to vector<64x1xf32>
    %4 = arith.divf %2, %3 : vector<64x1xf32>
    %5 = vector.broadcast %4 : vector<64x1xf32> to vector<64x32xf32>
    %6 = arith.subf %0, %5 : vector<64x32xf32>
    %7 = arith.mulf %6, %6 : vector<64x32xf32>
    %cst_2 = arith.constant dense<0.000000e+00> : vector<64xf32>
    %8 = vector.multi_reduction <add>, %7, %cst_2 [1] : vector<64x32xf32> to vector<64xf32>
    %9 = vector.shape_cast %8 : vector<64xf32> to vector<64x1xf32>
    %cst_3 = arith.constant 3.200000e+01 : f32
    %10 = vector.broadcast %cst_3 : f32 to vector<64x1xf32>
    %11 = arith.divf %9, %10 : vector<64x1xf32>
    %cst_4 = arith.constant 9.99999997E-7 : f32
    %12 = vector.broadcast %cst_4 : f32 to vector<64x1xf32>
    %13 = arith.addf %11, %12 : vector<64x1xf32>
    %14 = math.rsqrt %13 : vector<64x1xf32>
    %15 = vector.broadcast %14 : vector<64x1xf32> to vector<64x32xf32>
    %16 = arith.mulf %6, %15 : vector<64x32xf32>
    %c0_5 = arith.constant 0 : index
    %c0_6 = arith.constant 0 : index
    %17 = vector.load %arg5[%c0_5, %c0_6] : memref<1x32xf32, #tpu.memory_space<vmem>>, vector<1x32xf32>
    %18 = vector.broadcast %17 : vector<1x32xf32> to vector<64x32xf32>
    %19 = arith.mulf %16, %18 : vector<64x32xf32>
    %c0_7 = arith.constant 0 : index
    %c0_8 = arith.constant 0 : index
    %20 = vector.load %arg6[%c0_7, %c0_8] : memref<1x32xf32, #tpu.memory_space<vmem>>, vector<1x32xf32>
    %21 = vector.broadcast %20 : vector<1x32xf32> to vector<64x32xf32>
    %22 = arith.addf %19, %21 : vector<64x32xf32>
    %c0_9 = arith.constant 0 : index
    %c0_10 = arith.constant 0 : index
    %23 = vector.load %arg7[%c0_9, %c0_10] : memref<32x128xf32, #tpu.memory_space<vmem>>, vector<32x128xf32>
    %cst_11 = arith.constant dense<0.000000e+00> : vector<64x128xf32>
    %24 = tpu.matmul %22, %23, %cst_11 {dimension_numbers = #tpu.dot_dimension_numbers<[1], [0], [0], [1], [0, 0, 1, 1], [], []>} : vector<64x32xf32>, vector<32x128xf32>, vector<64x128xf32> -> vector<64x128xf32>
    %c0_12 = arith.constant 0 : index
    %c0_13 = arith.constant 0 : index
    %25 = vector.load %arg18[%c0_12, %c0_13] : memref<64x128xf32, #tpu.memory_space<vmem>>, vector<64x128xf32>
    tpu.vector_store %arg18[%c0_12, %c0_13], %24 {strides = array<i32>} : memref<64x128xf32, #tpu.memory_space<vmem>>, vector<64x128xf32>,
    %c0_14 = arith.constant 0 : index
    %c0_15 = arith.constant 0 : index
    %26 = vector.load %arg1[%c0_14, %c0_15] : memref<8x32xf32, #tpu.memory_space<vmem>>, vector<8x32xf32>
    %c0_16 = arith.constant 0 : index
    %c0_17 = arith.constant 0 : index
    %27 = vector.load %arg8[%c0_16, %c0_17] : memref<32x128xf32, #tpu.memory_space<vmem>>, vector<32x128xf32>
    %cst_18 = arith.constant dense<0.000000e+00> : vector<8x128xf32>
    %28 = tpu.matmul %26, %27, %cst_18 {dimension_numbers = #tpu.dot_dimension_numbers<[1], [0], [0], [1], [0, 0, 1, 1], [], []>} : vector<8x32xf32>, vector<32x128xf32>, vector<8x128xf32> -> vector<8x128xf32>
    %c0_19 = arith.constant 0 : index
    %c0_20 = arith.constant 0 : index
    %29 = vector.load %arg9[%c0_19, %c0_20] : memref<1x128xf32, #tpu.memory_space<vmem>>, vector<1x128xf32>
    %30 = vector.broadcast %29 : vector<1x128xf32> to vector<8x128xf32>
    %31 = arith.addf %28, %30 : vector<8x128xf32>
    %c0_21 = arith.constant 0 : index
    %c0_22 = arith.constant 0 : index
    %32 = vector.load %arg2[%c0_21, %c0_22] : memref<8x1xi32, #tpu.memory_space<vmem>>, vector<8x1xi32>
    %c0_23 = arith.constant 0 : index
    %c0_24 = arith.constant 0 : index
    %c0_25 = arith.constant 0 : index
    %33 = vector.load %arg3[%c0_23, %c0_24, %c0_25] : memref<2x8x32xf32, #tpu.memory_space<vmem>>, vector<1x8x32xf32>
    %34 = vector.shape_cast %33 : vector<1x8x32xf32> to vector<8x32xf32>
    %c0_26 = arith.constant 0 : index
    %c0_27 = arith.constant 0 : index
    %c0_28 = arith.constant 0 : index
    %35 = vector.load %arg4[%c0_26, %c0_27, %c0_28] : memref<2x8x32xf32, #tpu.memory_space<vmem>>, vector<1x8x32xf32>
    %36 = vector.shape_cast %35 : vector<1x8x32xf32> to vector<8x32xf32>
    %c1 = arith.constant 1 : index
    %c0_29 = arith.constant 0 : index
    %c0_30 = arith.constant 0 : index
    %37 = vector.load %arg3[%c1, %c0_29, %c0_30] : memref<2x8x32xf32, #tpu.memory_space<vmem>>, vector<1x8x32xf32>
    %38 = vector.shape_cast %37 : vector<1x8x32xf32> to vector<8x32xf32>
    %c1_31 = arith.constant 1 : index
    %c0_32 = arith.constant 0 : index
    %c0_33 = arith.constant 0 : index
    %39 = vector.load %arg4[%c1_31, %c0_32, %c0_33] : memref<2x8x32xf32, #tpu.memory_space<vmem>>, vector<1x8x32xf32>
    %40 = vector.shape_cast %39 : vector<1x8x32xf32> to vector<8x32xf32>
    %c0_i32 = arith.constant 0 : i32
    %41 = vector.broadcast %c0_i32 : i32 to vector<8x1xi32>
    %42 = arith.cmpi sgt, %32, %41 : vector<8x1xi32>
    %c8_i32 = arith.constant 8 : i32
    %43 = arith.muli %c0_i32, %c8_i32 : i32
    %44 = tpu.assume_multiple %43, 8 : i32
    %45 = arith.index_cast %44 : i32 to index
    %c0_34 = arith.constant 0 : index
    %46 = vector.load %arg18[%45, %c0_34] : memref<64x128xf32, #tpu.memory_space<vmem>>, vector<8x128xf32>
    %47 = arith.addf %46, %31 : vector<8x128xf32>
    %c0_35 = arith.constant 0 : index
    %c0_36 = arith.constant 0 : index
    %48 = vector.load %arg10[%c0_35, %c0_36] : memref<32x128xf32, #tpu.memory_space<vmem>>, vector<32x128xf32>
    %cst_37 = arith.constant dense<0.000000e+00> : vector<8x128xf32>
    %49 = tpu.matmul %34, %48, %cst_37 {dimension_numbers = #tpu.dot_dimension_numbers<[1], [0], [0], [1], [0, 0, 1, 1], [], []>} : vector<8x32xf32>, vector<32x128xf32>, vector<8x128xf32> -> vector<8x128xf32>
    %50 = arith.addf %47, %49 : vector<8x128xf32>
    %51 = vector.extract_strided_slice %50 {offsets = [0, 0], sizes = [8, 32], strides = [1, 1]} : vector<8x128xf32> to vector<8x32xf32>
    %52 = arith.negf %51 : vector<8x32xf32>
    %53 = math.exp %52 : vector<8x32xf32>
    %cst_38 = arith.constant 1.000000e+00 : f32
    %54 = vector.broadcast %cst_38 : f32 to vector<8x32xf32>
    %55 = arith.addf %54, %53 : vector<8x32xf32>
    %56 = arith.divf %54, %55 : vector<8x32xf32>
    %57 = vector.extract_strided_slice %50 {offsets = [0, 32], sizes = [8, 32], strides = [1, 1]} : vector<8x128xf32> to vector<8x32xf32>
    %58 = arith.negf %57 : vector<8x32xf32>
    %59 = math.exp %58 : vector<8x32xf32>
    %cst_39 = arith.constant 1.000000e+00 : f32
    %60 = vector.broadcast %cst_39 : f32 to vector<8x32xf32>
    %61 = arith.addf %60, %59 : vector<8x32xf32>
    %62 = arith.divf %60, %61 : vector<8x32xf32>
    %63 = vector.extract_strided_slice %50 {offsets = [0, 64], sizes = [8, 32], strides = [1, 1]} : vector<8x128xf32> to vector<8x32xf32>
    %64 = math.tanh %63 : vector<8x32xf32>
    %65 = vector.extract_strided_slice %50 {offsets = [0, 96], sizes = [8, 32], strides = [1, 1]} : vector<8x128xf32> to vector<8x32xf32>
    %66 = arith.negf %65 : vector<8x32xf32>
    %67 = math.exp %66 : vector<8x32xf32>
    %cst_40 = arith.constant 1.000000e+00 : f32
    %68 = vector.broadcast %cst_40 : f32 to vector<8x32xf32>
    %69 = arith.addf %68, %67 : vector<8x32xf32>
    %70 = arith.divf %68, %69 : vector<8x32xf32>
    %71 = arith.mulf %62, %36 : vector<8x32xf32>
    %72 = arith.mulf %56, %64 : vector<8x32xf32>
    %73 = arith.addf %71, %72 : vector<8x32xf32>
    %74 = math.tanh %73 : vector<8x32xf32>
    %75 = arith.mulf %70, %74 : vector<8x32xf32>
    %76 = vector.shape_cast %42 : vector<8x1xi1> to vector<8x1xi1>
    %77 = vector.broadcast %76 : vector<8x1xi1> to vector<8x32xi1>
    %78 = arith.select %77, %75, %34 : vector<8x32xi1>, vector<8x32xf32>
    %79 = vector.shape_cast %42 : vector<8x1xi1> to vector<8x1xi1>
    %80 = vector.broadcast %79 : vector<8x1xi1> to vector<8x32xi1>
    %81 = arith.select %80, %73, %36 : vector<8x32xi1>, vector<8x32xf32>
    %82 = tpu.concatenate %78, %38 in 1 : vector<8x32xf32>, vector<8x32xf32> -> vector<8x64xf32>
    %c0_41 = arith.constant 0 : index
    %c0_42 = arith.constant 0 : index
    %83 = vector.load %arg11[%c0_41, %c0_42] : memref<64x128xf32, #tpu.memory_space<vmem>>, vector<64x128xf32>
    %cst_43 = arith.constant dense<0.000000e+00> : vector<8x128xf32>
    %84 = tpu.matmul %82, %83, %cst_43 {dimension_numbers = #tpu.dot_dimension_numbers<[1], [0], [0], [1], [0, 0, 1, 1], [], []>} : vector<8x64xf32>, vector<64x128xf32>, vector<8x128xf32> -> vector<8x128xf32>
    %c0_44 = arith.constant 0 : index
    %c0_45 = arith.constant 0 : index
    %85 = vector.load %arg12[%c0_44, %c0_45] : memref<1x128xf32, #tpu.memory_space<vmem>>, vector<1x128xf32>
    %86 = vector.broadcast %85 : vector<1x128xf32> to vector<8x128xf32>
    %87 = arith.addf %84, %86 : vector<8x128xf32>
    %88 = vector.extract_strided_slice %87 {offsets = [0, 0], sizes = [8, 32], strides = [1, 1]} : vector<8x128xf32> to vector<8x32xf32>
    %89 = arith.negf %88 : vector<8x32xf32>
    %90 = math.exp %89 : vector<8x32xf32>
    %cst_46 = arith.constant 1.000000e+00 : f32
    %91 = vector.broadcast %cst_46 : f32 to vector<8x32xf32>
    %92 = arith.addf %91, %90 : vector<8x32xf32>
    %93 = arith.divf %91, %92 : vector<8x32xf32>
    %94 = vector.extract_strided_slice %87 {offsets = [0, 32], sizes = [8, 32], strides = [1, 1]} : vector<8x128xf32> to vector<8x32xf32>
    %95 = arith.negf %94 : vector<8x32xf32>
    %96 = math.exp %95 : vector<8x32xf32>
    %cst_47 = arith.constant 1.000000e+00 : f32
    %97 = vector.broadcast %cst_47 : f32 to vector<8x32xf32>
    %98 = arith.addf %97, %96 : vector<8x32xf32>
    %99 = arith.divf %97, %98 : vector<8x32xf32>
    %100 = vector.extract_strided_slice %87 {offsets = [0, 64], sizes = [8, 32], strides = [1, 1]} : vector<8x128xf32> to vector<8x32xf32>
    %101 = math.tanh %100 : vector<8x32xf32>
    %102 = vector.extract_strided_slice %87 {offsets = [0, 96], sizes = [8, 32], strides = [1, 1]} : vector<8x128xf32> to vector<8x32xf32>
    %103 = arith.negf %102 : vector<8x32xf32>
    %104 = math.exp %103 : vector<8x32xf32>
    %cst_48 = arith.constant 1.000000e+00 : f32
    %105 = vector.broadcast %cst_48 : f32 to vector<8x32xf32>
    %106 = arith.addf %105, %104 : vector<8x32xf32>
    %107 = arith.divf %105, %106 : vector<8x32xf32>
    %108 = arith.mulf %99, %40 : vector<8x32xf32>
    %109 = arith.mulf %93, %101 : vector<8x32xf32>
    %110 = arith.addf %108, %109 : vector<8x32xf32>
    %111 = math.tanh %110 : vector<8x32xf32>
    %112 = arith.mulf %107, %111 : vector<8x32xf32>
    %113 = vector.shape_cast %42 : vector<8x1xi1> to vector<8x1xi1>
    %114 = vector.broadcast %113 : vector<8x1xi1> to vector<8x32xi1>
    %115 = arith.select %114, %112, %38 : vector<8x32xi1>, vector<8x32xf32>
    %116 = vector.shape_cast %42 : vector<8x1xi1> to vector<8x1xi1>
    %117 = vector.broadcast %116 : vector<8x1xi1> to vector<8x32xi1>
    %118 = arith.select %117, %110, %40 : vector<8x32xi1>, vector<8x32xf32>
    %119 = arith.index_cast %44 : i32 to index
    %c0_49 = arith.constant 0 : index
    %120 = vector.load %arg19[%119, %c0_49] : memref<64x32xf32, #tpu.memory_space<vmem>>, vector<8x32xf32>
    tpu.vector_store %arg19[%119, %c0_49], %115 {strides = array<i32>} : memref<64x32xf32, #tpu.memory_space<vmem>>, vector<8x32xf32>,
    %c1_i32 = arith.constant 1 : i32
    %121 = vector.broadcast %c1_i32 : i32 to vector<8x1xi32>
    %122 = arith.cmpi sgt, %32, %121 : vector<8x1xi32>
    %c8_i32_50 = arith.constant 8 : i32
    %123 = arith.muli %c1_i32, %c8_i32_50 : i32
    %124 = tpu.assume_multiple %123, 8 : i32
    %125 = arith.index_cast %124 : i32 to index
    %c0_51 = arith.constant 0 : index
    %126 = vector.load %arg18[%125, %c0_51] : memref<64x128xf32, #tpu.memory_space<vmem>>, vector<8x128xf32>
    %127 = arith.addf %126, %31 : vector<8x128xf32>
    %c0_52 = arith.constant 0 : index
    %c0_53 = arith.constant 0 : index
    %128 = vector.load %arg10[%c0_52, %c0_53] : memref<32x128xf32, #tpu.memory_space<vmem>>, vector<32x128xf32>
    %cst_54 = arith.constant dense<0.000000e+00> : vector<8x128xf32>
    %129 = tpu.matmul %78, %128, %cst_54 {dimension_numbers = #tpu.dot_dimension_numbers<[1], [0], [0], [1], [0, 0, 1, 1], [], []>} : vector<8x32xf32>, vector<32x128xf32>, vector<8x128xf32> -> vector<8x128xf32>
    %130 = arith.addf %127, %129 : vector<8x128xf32>
    %131 = vector.extract_strided_slice %130 {offsets = [0, 0], sizes = [8, 32], strides = [1, 1]} : vector<8x128xf32> to vector<8x32xf32>
    %132 = arith.negf %131 : vector<8x32xf32>
    %133 = math.exp %132 : vector<8x32xf32>
    %cst_55 = arith.constant 1.000000e+00 : f32
    %134 = vector.broadcast %cst_55 : f32 to vector<8x32xf32>
    %135 = arith.addf %134, %133 : vector<8x32xf32>
    %136 = arith.divf %134, %135 : vector<8x32xf32>
    %137 = vector.extract_strided_slice %130 {offsets = [0, 32], sizes = [8, 32], strides = [1, 1]} : vector<8x128xf32> to vector<8x32xf32>
    %138 = arith.negf %137 : vector<8x32xf32>
    %139 = math.exp %138 : vector<8x32xf32>
    %cst_56 = arith.constant 1.000000e+00 : f32
    %140 = vector.broadcast %cst_56 : f32 to vector<8x32xf32>
    %141 = arith.addf %140, %139 : vector<8x32xf32>
    %142 = arith.divf %140, %141 : vector<8x32xf32>
    %143 = vector.extract_strided_slice %130 {offsets = [0, 64], sizes = [8, 32], strides = [1, 1]} : vector<8x128xf32> to vector<8x32xf32>
    %144 = math.tanh %143 : vector<8x32xf32>
    %145 = vector.extract_strided_slice %130 {offsets = [0, 96], sizes = [8, 32], strides = [1, 1]} : vector<8x128xf32> to vector<8x32xf32>
    %146 = arith.negf %145 : vector<8x32xf32>
    %147 = math.exp %146 : vector<8x32xf32>
    %cst_57 = arith.constant 1.000000e+00 : f32
    %148 = vector.broadcast %cst_57 : f32 to vector<8x32xf32>
    %149 = arith.addf %148, %147 : vector<8x32xf32>
    %150 = arith.divf %148, %149 : vector<8x32xf32>
    %151 = arith.mulf %142, %81 : vector<8x32xf32>
    %152 = arith.mulf %136, %144 : vector<8x32xf32>
    %153 = arith.addf %151, %152 : vector<8x32xf32>
    %154 = math.tanh %153 : vector<8x32xf32>
    %155 = arith.mulf %150, %154 : vector<8x32xf32>
    %156 = vector.shape_cast %122 : vector<8x1xi1> to vector<8x1xi1>
    %157 = vector.broadcast %156 : vector<8x1xi1> to vector<8x32xi1>
    %158 = arith.select %157, %155, %78 : vector<8x32xi1>, vector<8x32xf32>
    %159 = vector.shape_cast %122 : vector<8x1xi1> to vector<8x1xi1>
    %160 = vector.broadcast %159 : vector<8x1xi1> to vector<8x32xi1>
    %161 = arith.select %160, %153, %81 : vector<8x32xi1>, vector<8x32xf32>
    %162 = tpu.concatenate %158, %115 in 1 : vector<8x32xf32>, vector<8x32xf32> -> vector<8x64xf32>
    %c0_58 = arith.constant 0 : index
    %c0_59 = arith.constant 0 : index
    %163 = vector.load %arg11[%c0_58, %c0_59] : memref<64x128xf32, #tpu.memory_space<vmem>>, vector<64x128xf32>
    %cst_60 = arith.constant dense<0.000000e+00> : vector<8x128xf32>
    %164 = tpu.matmul %162, %163, %cst_60 {dimension_numbers = #tpu.dot_dimension_numbers<[1], [0], [0], [1], [0, 0, 1, 1], [], []>} : vector<8x64xf32>, vector<64x128xf32>, vector<8x128xf32> -> vector<8x128xf32>
    %c0_61 = arith.constant 0 : index
    %c0_62 = arith.constant 0 : index
    %165 = vector.load %arg12[%c0_61, %c0_62] : memref<1x128xf32, #tpu.memory_space<vmem>>, vector<1x128xf32>
    %166 = vector.broadcast %165 : vector<1x128xf32> to vector<8x128xf32>
    %167 = arith.addf %164, %166 : vector<8x128xf32>
    %168 = vector.extract_strided_slice %167 {offsets = [0, 0], sizes = [8, 32], strides = [1, 1]} : vector<8x128xf32> to vector<8x32xf32>
    %169 = arith.negf %168 : vector<8x32xf32>
    %170 = math.exp %169 : vector<8x32xf32>
    %cst_63 = arith.constant 1.000000e+00 : f32
    %171 = vector.broadcast %cst_63 : f32 to vector<8x32xf32>
    %172 = arith.addf %171, %170 : vector<8x32xf32>
    %173 = arith.divf %171, %172 : vector<8x32xf32>
    %174 = vector.extract_strided_slice %167 {offsets = [0, 32], sizes = [8, 32], strides = [1, 1]} : vector<8x128xf32> to vector<8x32xf32>
    %175 = arith.negf %174 : vector<8x32xf32>
    %176 = math.exp %175 : vector<8x32xf32>
    %cst_64 = arith.constant 1.000000e+00 : f32
    %177 = vector.broadcast %cst_64 : f32 to vector<8x32xf32>
    %178 = arith.addf %177, %176 : vector<8x32xf32>
    %179 = arith.divf %177, %178 : vector<8x32xf32>
    %180 = vector.extract_strided_slice %167 {offsets = [0, 64], sizes = [8, 32], strides = [1, 1]} : vector<8x128xf32> to vector<8x32xf32>
    %181 = math.tanh %180 : vector<8x32xf32>
    %182 = vector.extract_strided_slice %167 {offsets = [0, 96], sizes = [8, 32], strides = [1, 1]} : vector<8x128xf32> to vector<8x32xf32>
    %183 = arith.negf %182 : vector<8x32xf32>
    %184 = math.exp %183 : vector<8x32xf32>
    %cst_65 = arith.constant 1.000000e+00 : f32
    %185 = vector.broadcast %cst_65 : f32 to vector<8x32xf32>
    %186 = arith.addf %185, %184 : vector<8x32xf32>
    %187 = arith.divf %185, %186 : vector<8x32xf32>
    %188 = arith.mulf %179, %118 : vector<8x32xf32>
    %189 = arith.mulf %173, %181 : vector<8x32xf32>
    %190 = arith.addf %188, %189 : vector<8x32xf32>
    %191 = math.tanh %190 : vector<8x32xf32>
    %192 = arith.mulf %187, %191 : vector<8x32xf32>
    %193 = vector.shape_cast %122 : vector<8x1xi1> to vector<8x1xi1>
    %194 = vector.broadcast %193 : vector<8x1xi1> to vector<8x32xi1>
    %195 = arith.select %194, %192, %115 : vector<8x32xi1>, vector<8x32xf32>
    %196 = vector.shape_cast %122 : vector<8x1xi1> to vector<8x1xi1>
    %197 = vector.broadcast %196 : vector<8x1xi1> to vector<8x32xi1>
    %198 = arith.select %197, %190, %118 : vector<8x32xi1>, vector<8x32xf32>
    %199 = arith.index_cast %124 : i32 to index
    %c0_66 = arith.constant 0 : index
    %200 = vector.load %arg19[%199, %c0_66] : memref<64x32xf32, #tpu.memory_space<vmem>>, vector<8x32xf32>
    tpu.vector_store %arg19[%199, %c0_66], %195 {strides = array<i32>} : memref<64x32xf32, #tpu.memory_space<vmem>>, vector<8x32xf32>,
    %c2_i32 = arith.constant 2 : i32
    %201 = vector.broadcast %c2_i32 : i32 to vector<8x1xi32>
    %202 = arith.cmpi sgt, %32, %201 : vector<8x1xi32>
    %c8_i32_67 = arith.constant 8 : i32
    %203 = arith.muli %c2_i32, %c8_i32_67 : i32
    %204 = tpu.assume_multiple %203, 8 : i32
    %205 = arith.index_cast %204 : i32 to index
    %c0_68 = arith.constant 0 : index
    %206 = vector.load %arg18[%205, %c0_68] : memref<64x128xf32, #tpu.memory_space<vmem>>, vector<8x128xf32>
    %207 = arith.addf %206, %31 : vector<8x128xf32>
    %c0_69 = arith.constant 0 : index
    %c0_70 = arith.constant 0 : index
    %208 = vector.load %arg10[%c0_69, %c0_70] : memref<32x128xf32, #tpu.memory_space<vmem>>, vector<32x128xf32>
    %cst_71 = arith.constant dense<0.000000e+00> : vector<8x128xf32>
    %209 = tpu.matmul %158, %208, %cst_71 {dimension_numbers = #tpu.dot_dimension_numbers<[1], [0], [0], [1], [0, 0, 1, 1], [], []>} : vector<8x32xf32>, vector<32x128xf32>, vector<8x128xf32> -> vector<8x128xf32>
    %210 = arith.addf %207, %209 : vector<8x128xf32>
    %211 = vector.extract_strided_slice %210 {offsets = [0, 0], sizes = [8, 32], strides = [1, 1]} : vector<8x128xf32> to vector<8x32xf32>
    %212 = arith.negf %211 : vector<8x32xf32>
    %213 = math.exp %212 : vector<8x32xf32>
    %cst_72 = arith.constant 1.000000e+00 : f32
    %214 = vector.broadcast %cst_72 : f32 to vector<8x32xf32>
    %215 = arith.addf %214, %213 : vector<8x32xf32>
    %216 = arith.divf %214, %215 : vector<8x32xf32>
    %217 = vector.extract_strided_slice %210 {offsets = [0, 32], sizes = [8, 32], strides = [1, 1]} : vector<8x128xf32> to vector<8x32xf32>
    %218 = arith.negf %217 : vector<8x32xf32>
    %219 = math.exp %218 : vector<8x32xf32>
    %cst_73 = arith.constant 1.000000e+00 : f32
    %220 = vector.broadcast %cst_73 : f32 to vector<8x32xf32>
    %221 = arith.addf %220, %219 : vector<8x32xf32>
    %222 = arith.divf %220, %221 : vector<8x32xf32>
    %223 = vector.extract_strided_slice %210 {offsets = [0, 64], sizes = [8, 32], strides = [1, 1]} : vector<8x128xf32> to vector<8x32xf32>
    %224 = math.tanh %223 : vector<8x32xf32>
    %225 = vector.extract_strided_slice %210 {offsets = [0, 96], sizes = [8, 32], strides = [1, 1]} : vector<8x128xf32> to vector<8x32xf32>
    %226 = arith.negf %225 : vector<8x32xf32>
    %227 = math.exp %226 : vector<8x32xf32>
    %cst_74 = arith.constant 1.000000e+00 : f32
    %228 = vector.broadcast %cst_74 : f32 to vector<8x32xf32>
    %229 = arith.addf %228, %227 : vector<8x32xf32>
    %230 = arith.divf %228, %229 : vector<8x32xf32>
    %231 = arith.mulf %222, %161 : vector<8x32xf32>
    %232 = arith.mulf %216, %224 : vector<8x32xf32>
    %233 = arith.addf %231, %232 : vector<8x32xf32>
    %234 = math.tanh %233 : vector<8x32xf32>
    %235 = arith.mulf %230, %234 : vector<8x32xf32>
    %236 = vector.shape_cast %202 : vector<8x1xi1> to vector<8x1xi1>
    %237 = vector.broadcast %236 : vector<8x1xi1> to vector<8x32xi1>
    %238 = arith.select %237, %235, %158 : vector<8x32xi1>, vector<8x32xf32>
    %239 = vector.shape_cast %202 : vector<8x1xi1> to vector<8x1xi1>
    %240 = vector.broadcast %239 : vector<8x1xi1> to vector<8x32xi1>
    %241 = arith.select %240, %233, %161 : vector<8x32xi1>, vector<8x32xf32>
    %242 = tpu.concatenate %238, %195 in 1 : vector<8x32xf32>, vector<8x32xf32> -> vector<8x64xf32>
    %c0_75 = arith.constant 0 : index
    %c0_76 = arith.constant 0 : index
    %243 = vector.load %arg11[%c0_75, %c0_76] : memref<64x128xf32, #tpu.memory_space<vmem>>, vector<64x128xf32>
    %cst_77 = arith.constant dense<0.000000e+00> : vector<8x128xf32>
    %244 = tpu.matmul %242, %243, %cst_77 {dimension_numbers = #tpu.dot_dimension_numbers<[1], [0], [0], [1], [0, 0, 1, 1], [], []>} : vector<8x64xf32>, vector<64x128xf32>, vector<8x128xf32> -> vector<8x128xf32>
    %c0_78 = arith.constant 0 : index
    %c0_79 = arith.constant 0 : index
    %245 = vector.load %arg12[%c0_78, %c0_79] : memref<1x128xf32, #tpu.memory_space<vmem>>, vector<1x128xf32>
    %246 = vector.broadcast %245 : vector<1x128xf32> to vector<8x128xf32>
    %247 = arith.addf %244, %246 : vector<8x128xf32>
    %248 = vector.extract_strided_slice %247 {offsets = [0, 0], sizes = [8, 32], strides = [1, 1]} : vector<8x128xf32> to vector<8x32xf32>
    %249 = arith.negf %248 : vector<8x32xf32>
    %250 = math.exp %249 : vector<8x32xf32>
    %cst_80 = arith.constant 1.000000e+00 : f32
    %251 = vector.broadcast %cst_80 : f32 to vector<8x32xf32>
    %252 = arith.addf %251, %250 : vector<8x32xf32>
    %253 = arith.divf %251, %252 : vector<8x32xf32>
    %254 = vector.extract_strided_slice %247 {offsets = [0, 32], sizes = [8, 32], strides = [1, 1]} : vector<8x128xf32> to vector<8x32xf32>
    %255 = arith.negf %254 : vector<8x32xf32>
    %256 = math.exp %255 : vector<8x32xf32>
    %cst_81 = arith.constant 1.000000e+00 : f32
    %257 = vector.broadcast %cst_81 : f32 to vector<8x32xf32>
    %258 = arith.addf %257, %256 : vector<8x32xf32>
    %259 = arith.divf %257, %258 : vector<8x32xf32>
    %260 = vector.extract_strided_slice %247 {offsets = [0, 64], sizes = [8, 32], strides = [1, 1]} : vector<8x128xf32> to vector<8x32xf32>
    %261 = math.tanh %260 : vector<8x32xf32>
    %262 = vector.extract_strided_slice %247 {offsets = [0, 96], sizes = [8, 32], strides = [1, 1]} : vector<8x128xf32> to vector<8x32xf32>
    %263 = arith.negf %262 : vector<8x32xf32>
    %264 = math.exp %263 : vector<8x32xf32>
    %cst_82 = arith.constant 1.000000e+00 : f32
    %265 = vector.broadcast %cst_82 : f32 to vector<8x32xf32>
    %266 = arith.addf %265, %264 : vector<8x32xf32>
    %267 = arith.divf %265, %266 : vector<8x32xf32>
    %268 = arith.mulf %259, %198 : vector<8x32xf32>
    %269 = arith.mulf %253, %261 : vector<8x32xf32>
    %270 = arith.addf %268, %269 : vector<8x32xf32>
    %271 = math.tanh %270 : vector<8x32xf32>
    %272 = arith.mulf %267, %271 : vector<8x32xf32>
    %273 = vector.shape_cast %202 : vector<8x1xi1> to vector<8x1xi1>
    %274 = vector.broadcast %273 : vector<8x1xi1> to vector<8x32xi1>
    %275 = arith.select %274, %272, %195 : vector<8x32xi1>, vector<8x32xf32>
    %276 = vector.shape_cast %202 : vector<8x1xi1> to vector<8x1xi1>
    %277 = vector.broadcast %276 : vector<8x1xi1> to vector<8x32xi1>
    %278 = arith.select %277, %270, %198 : vector<8x32xi1>, vector<8x32xf32>
    %279 = arith.index_cast %204 : i32 to index
    %c0_83 = arith.constant 0 : index
    %280 = vector.load %arg19[%279, %c0_83] : memref<64x32xf32, #tpu.memory_space<vmem>>, vector<8x32xf32>
    tpu.vector_store %arg19[%279, %c0_83], %275 {strides = array<i32>} : memref<64x32xf32, #tpu.memory_space<vmem>>, vector<8x32xf32>,
    %c3_i32 = arith.constant 3 : i32
    %281 = vector.broadcast %c3_i32 : i32 to vector<8x1xi32>
    %282 = arith.cmpi sgt, %32, %281 : vector<8x1xi32>
    %c8_i32_84 = arith.constant 8 : i32
    %283 = arith.muli %c3_i32, %c8_i32_84 : i32
    %284 = tpu.assume_multiple %283, 8 : i32
    %285 = arith.index_cast %284 : i32 to index
    %c0_85 = arith.constant 0 : index
    %286 = vector.load %arg18[%285, %c0_85] : memref<64x128xf32, #tpu.memory_space<vmem>>, vector<8x128xf32>
    %287 = arith.addf %286, %31 : vector<8x128xf32>
    %c0_86 = arith.constant 0 : index
    %c0_87 = arith.constant 0 : index
    %288 = vector.load %arg10[%c0_86, %c0_87] : memref<32x128xf32, #tpu.memory_space<vmem>>, vector<32x128xf32>
    %cst_88 = arith.constant dense<0.000000e+00> : vector<8x128xf32>
    %289 = tpu.matmul %238, %288, %cst_88 {dimension_numbers = #tpu.dot_dimension_numbers<[1], [0], [0], [1], [0, 0, 1, 1], [], []>} : vector<8x32xf32>, vector<32x128xf32>, vector<8x128xf32> -> vector<8x128xf32>
    %290 = arith.addf %287, %289 : vector<8x128xf32>
    %291 = vector.extract_strided_slice %290 {offsets = [0, 0], sizes = [8, 32], strides = [1, 1]} : vector<8x128xf32> to vector<8x32xf32>
    %292 = arith.negf %291 : vector<8x32xf32>
    %293 = math.exp %292 : vector<8x32xf32>
    %cst_89 = arith.constant 1.000000e+00 : f32
    %294 = vector.broadcast %cst_89 : f32 to vector<8x32xf32>
    %295 = arith.addf %294, %293 : vector<8x32xf32>
    %296 = arith.divf %294, %295 : vector<8x32xf32>
    %297 = vector.extract_strided_slice %290 {offsets = [0, 32], sizes = [8, 32], strides = [1, 1]} : vector<8x128xf32> to vector<8x32xf32>
    %298 = arith.negf %297 : vector<8x32xf32>
    %299 = math.exp %298 : vector<8x32xf32>
    %cst_90 = arith.constant 1.000000e+00 : f32
    %300 = vector.broadcast %cst_90 : f32 to vector<8x32xf32>
    %301 = arith.addf %300, %299 : vector<8x32xf32>
    %302 = arith.divf %300, %301 : vector<8x32xf32>
    %303 = vector.extract_strided_slice %290 {offsets = [0, 64], sizes = [8, 32], strides = [1, 1]} : vector<8x128xf32> to vector<8x32xf32>
    %304 = math.tanh %303 : vector<8x32xf32>
    %305 = vector.extract_strided_slice %290 {offsets = [0, 96], sizes = [8, 32], strides = [1, 1]} : vector<8x128xf32> to vector<8x32xf32>
    %306 = arith.negf %305 : vector<8x32xf32>
    %307 = math.exp %306 : vector<8x32xf32>
    %cst_91 = arith.constant 1.000000e+00 : f32
    %308 = vector.broadcast %cst_91 : f32 to vector<8x32xf32>
    %309 = arith.addf %308, %307 : vector<8x32xf32>
    %310 = arith.divf %308, %309 : vector<8x32xf32>
    %311 = arith.mulf %302, %241 : vector<8x32xf32>
    %312 = arith.mulf %296, %304 : vector<8x32xf32>
    %313 = arith.addf %311, %312 : vector<8x32xf32>
    %314 = math.tanh %313 : vector<8x32xf32>
    %315 = arith.mulf %310, %314 : vector<8x32xf32>
    %316 = vector.shape_cast %282 : vector<8x1xi1> to vector<8x1xi1>
    %317 = vector.broadcast %316 : vector<8x1xi1> to vector<8x32xi1>
    %318 = arith.select %317, %315, %238 : vector<8x32xi1>, vector<8x32xf32>
    %319 = vector.shape_cast %282 : vector<8x1xi1> to vector<8x1xi1>
    %320 = vector.broadcast %319 : vector<8x1xi1> to vector<8x32xi1>
    %321 = arith.select %320, %313, %241 : vector<8x32xi1>, vector<8x32xf32>
    %322 = tpu.concatenate %318, %275 in 1 : vector<8x32xf32>, vector<8x32xf32> -> vector<8x64xf32>
    %c0_92 = arith.constant 0 : index
    %c0_93 = arith.constant 0 : index
    %323 = vector.load %arg11[%c0_92, %c0_93] : memref<64x128xf32, #tpu.memory_space<vmem>>, vector<64x128xf32>
    %cst_94 = arith.constant dense<0.000000e+00> : vector<8x128xf32>
    %324 = tpu.matmul %322, %323, %cst_94 {dimension_numbers = #tpu.dot_dimension_numbers<[1], [0], [0], [1], [0, 0, 1, 1], [], []>} : vector<8x64xf32>, vector<64x128xf32>, vector<8x128xf32> -> vector<8x128xf32>
    %c0_95 = arith.constant 0 : index
    %c0_96 = arith.constant 0 : index
    %325 = vector.load %arg12[%c0_95, %c0_96] : memref<1x128xf32, #tpu.memory_space<vmem>>, vector<1x128xf32>
    %326 = vector.broadcast %325 : vector<1x128xf32> to vector<8x128xf32>
    %327 = arith.addf %324, %326 : vector<8x128xf32>
    %328 = vector.extract_strided_slice %327 {offsets = [0, 0], sizes = [8, 32], strides = [1, 1]} : vector<8x128xf32> to vector<8x32xf32>
    %329 = arith.negf %328 : vector<8x32xf32>
    %330 = math.exp %329 : vector<8x32xf32>
    %cst_97 = arith.constant 1.000000e+00 : f32
    %331 = vector.broadcast %cst_97 : f32 to vector<8x32xf32>
    %332 = arith.addf %331, %330 : vector<8x32xf32>
    %333 = arith.divf %331, %332 : vector<8x32xf32>
    %334 = vector.extract_strided_slice %327 {offsets = [0, 32], sizes = [8, 32], strides = [1, 1]} : vector<8x128xf32> to vector<8x32xf32>
    %335 = arith.negf %334 : vector<8x32xf32>
    %336 = math.exp %335 : vector<8x32xf32>
    %cst_98 = arith.constant 1.000000e+00 : f32
    %337 = vector.broadcast %cst_98 : f32 to vector<8x32xf32>
    %338 = arith.addf %337, %336 : vector<8x32xf32>
    %339 = arith.divf %337, %338 : vector<8x32xf32>
    %340 = vector.extract_strided_slice %327 {offsets = [0, 64], sizes = [8, 32], strides = [1, 1]} : vector<8x128xf32> to vector<8x32xf32>
    %341 = math.tanh %340 : vector<8x32xf32>
    %342 = vector.extract_strided_slice %327 {offsets = [0, 96], sizes = [8, 32], strides = [1, 1]} : vector<8x128xf32> to vector<8x32xf32>
    %343 = arith.negf %342 : vector<8x32xf32>
    %344 = math.exp %343 : vector<8x32xf32>
    %cst_99 = arith.constant 1.000000e+00 : f32
    %345 = vector.broadcast %cst_99 : f32 to vector<8x32xf32>
    %346 = arith.addf %345, %344 : vector<8x32xf32>
    %347 = arith.divf %345, %346 : vector<8x32xf32>
    %348 = arith.mulf %339, %278 : vector<8x32xf32>
    %349 = arith.mulf %333, %341 : vector<8x32xf32>
    %350 = arith.addf %348, %349 : vector<8x32xf32>
    %351 = math.tanh %350 : vector<8x32xf32>
    %352 = arith.mulf %347, %351 : vector<8x32xf32>
    %353 = vector.shape_cast %282 : vector<8x1xi1> to vector<8x1xi1>
    %354 = vector.broadcast %353 : vector<8x1xi1> to vector<8x32xi1>
    %355 = arith.select %354, %352, %275 : vector<8x32xi1>, vector<8x32xf32>
    %356 = vector.shape_cast %282 : vector<8x1xi1> to vector<8x1xi1>
    %357 = vector.broadcast %356 : vector<8x1xi1> to vector<8x32xi1>
    %358 = arith.select %357, %350, %278 : vector<8x32xi1>, vector<8x32xf32>
    %359 = arith.index_cast %284 : i32 to index
    %c0_100 = arith.constant 0 : index
    %360 = vector.load %arg19[%359, %c0_100] : memref<64x32xf32, #tpu.memory_space<vmem>>, vector<8x32xf32>
    tpu.vector_store %arg19[%359, %c0_100], %355 {strides = array<i32>} : memref<64x32xf32, #tpu.memory_space<vmem>>, vector<8x32xf32>,
    %c4_i32 = arith.constant 4 : i32
    %361 = vector.broadcast %c4_i32 : i32 to vector<8x1xi32>
    %362 = arith.cmpi sgt, %32, %361 : vector<8x1xi32>
    %c8_i32_101 = arith.constant 8 : i32
    %363 = arith.muli %c4_i32, %c8_i32_101 : i32
    %364 = tpu.assume_multiple %363, 8 : i32
    %365 = arith.index_cast %364 : i32 to index
    %c0_102 = arith.constant 0 : index
    %366 = vector.load %arg18[%365, %c0_102] : memref<64x128xf32, #tpu.memory_space<vmem>>, vector<8x128xf32>
    %367 = arith.addf %366, %31 : vector<8x128xf32>
    %c0_103 = arith.constant 0 : index
    %c0_104 = arith.constant 0 : index
    %368 = vector.load %arg10[%c0_103, %c0_104] : memref<32x128xf32, #tpu.memory_space<vmem>>, vector<32x128xf32>
    %cst_105 = arith.constant dense<0.000000e+00> : vector<8x128xf32>
    %369 = tpu.matmul %318, %368, %cst_105 {dimension_numbers = #tpu.dot_dimension_numbers<[1], [0], [0], [1], [0, 0, 1, 1], [], []>} : vector<8x32xf32>, vector<32x128xf32>, vector<8x128xf32> -> vector<8x128xf32>
    %370 = arith.addf %367, %369 : vector<8x128xf32>
    %371 = vector.extract_strided_slice %370 {offsets = [0, 0], sizes = [8, 32], strides = [1, 1]} : vector<8x128xf32> to vector<8x32xf32>
    %372 = arith.negf %371 : vector<8x32xf32>
    %373 = math.exp %372 : vector<8x32xf32>
    %cst_106 = arith.constant 1.000000e+00 : f32
    %374 = vector.broadcast %cst_106 : f32 to vector<8x32xf32>
    %375 = arith.addf %374, %373 : vector<8x32xf32>
    %376 = arith.divf %374, %375 : vector<8x32xf32>
    %377 = vector.extract_strided_slice %370 {offsets = [0, 32], sizes = [8, 32], strides = [1, 1]} : vector<8x128xf32> to vector<8x32xf32>
    %378 = arith.negf %377 : vector<8x32xf32>
    %379 = math.exp %378 : vector<8x32xf32>
    %cst_107 = arith.constant 1.000000e+00 : f32
    %380 = vector.broadcast %cst_107 : f32 to vector<8x32xf32>
    %381 = arith.addf %380, %379 : vector<8x32xf32>
    %382 = arith.divf %380, %381 : vector<8x32xf32>
    %383 = vector.extract_strided_slice %370 {offsets = [0, 64], sizes = [8, 32], strides = [1, 1]} : vector<8x128xf32> to vector<8x32xf32>
    %384 = math.tanh %383 : vector<8x32xf32>
    %385 = vector.extract_strided_slice %370 {offsets = [0, 96], sizes = [8, 32], strides = [1, 1]} : vector<8x128xf32> to vector<8x32xf32>
    %386 = arith.negf %385 : vector<8x32xf32>
    %387 = math.exp %386 : vector<8x32xf32>
    %cst_108 = arith.constant 1.000000e+00 : f32
    %388 = vector.broadcast %cst_108 : f32 to vector<8x32xf32>
    %389 = arith.addf %388, %387 : vector<8x32xf32>
    %390 = arith.divf %388, %389 : vector<8x32xf32>
    %391 = arith.mulf %382, %321 : vector<8x32xf32>
    %392 = arith.mulf %376, %384 : vector<8x32xf32>
    %393 = arith.addf %391, %392 : vector<8x32xf32>
    %394 = math.tanh %393 : vector<8x32xf32>
    %395 = arith.mulf %390, %394 : vector<8x32xf32>
    %396 = vector.shape_cast %362 : vector<8x1xi1> to vector<8x1xi1>
    %397 = vector.broadcast %396 : vector<8x1xi1> to vector<8x32xi1>
    %398 = arith.select %397, %395, %318 : vector<8x32xi1>, vector<8x32xf32>
    %399 = vector.shape_cast %362 : vector<8x1xi1> to vector<8x1xi1>
    %400 = vector.broadcast %399 : vector<8x1xi1> to vector<8x32xi1>
    %401 = arith.select %400, %393, %321 : vector<8x32xi1>, vector<8x32xf32>
    %402 = tpu.concatenate %398, %355 in 1 : vector<8x32xf32>, vector<8x32xf32> -> vector<8x64xf32>
    %c0_109 = arith.constant 0 : index
    %c0_110 = arith.constant 0 : index
    %403 = vector.load %arg11[%c0_109, %c0_110] : memref<64x128xf32, #tpu.memory_space<vmem>>, vector<64x128xf32>
    %cst_111 = arith.constant dense<0.000000e+00> : vector<8x128xf32>
    %404 = tpu.matmul %402, %403, %cst_111 {dimension_numbers = #tpu.dot_dimension_numbers<[1], [0], [0], [1], [0, 0, 1, 1], [], []>} : vector<8x64xf32>, vector<64x128xf32>, vector<8x128xf32> -> vector<8x128xf32>
    %c0_112 = arith.constant 0 : index
    %c0_113 = arith.constant 0 : index
    %405 = vector.load %arg12[%c0_112, %c0_113] : memref<1x128xf32, #tpu.memory_space<vmem>>, vector<1x128xf32>
    %406 = vector.broadcast %405 : vector<1x128xf32> to vector<8x128xf32>
    %407 = arith.addf %404, %406 : vector<8x128xf32>
    %408 = vector.extract_strided_slice %407 {offsets = [0, 0], sizes = [8, 32], strides = [1, 1]} : vector<8x128xf32> to vector<8x32xf32>
    %409 = arith.negf %408 : vector<8x32xf32>
    %410 = math.exp %409 : vector<8x32xf32>
    %cst_114 = arith.constant 1.000000e+00 : f32
    %411 = vector.broadcast %cst_114 : f32 to vector<8x32xf32>
    %412 = arith.addf %411, %410 : vector<8x32xf32>
    %413 = arith.divf %411, %412 : vector<8x32xf32>
    %414 = vector.extract_strided_slice %407 {offsets = [0, 32], sizes = [8, 32], strides = [1, 1]} : vector<8x128xf32> to vector<8x32xf32>
    %415 = arith.negf %414 : vector<8x32xf32>
    %416 = math.exp %415 : vector<8x32xf32>
    %cst_115 = arith.constant 1.000000e+00 : f32
    %417 = vector.broadcast %cst_115 : f32 to vector<8x32xf32>
    %418 = arith.addf %417, %416 : vector<8x32xf32>
    %419 = arith.divf %417, %418 : vector<8x32xf32>
    %420 = vector.extract_strided_slice %407 {offsets = [0, 64], sizes = [8, 32], strides = [1, 1]} : vector<8x128xf32> to vector<8x32xf32>
    %421 = math.tanh %420 : vector<8x32xf32>
    %422 = vector.extract_strided_slice %407 {offsets = [0, 96], sizes = [8, 32], strides = [1, 1]} : vector<8x128xf32> to vector<8x32xf32>
    %423 = arith.negf %422 : vector<8x32xf32>
    %424 = math.exp %423 : vector<8x32xf32>
    %cst_116 = arith.constant 1.000000e+00 : f32
    %425 = vector.broadcast %cst_116 : f32 to vector<8x32xf32>
    %426 = arith.addf %425, %424 : vector<8x32xf32>
    %427 = arith.divf %425, %426 : vector<8x32xf32>
    %428 = arith.mulf %419, %358 : vector<8x32xf32>
    %429 = arith.mulf %413, %421 : vector<8x32xf32>
    %430 = arith.addf %428, %429 : vector<8x32xf32>
    %431 = math.tanh %430 : vector<8x32xf32>
    %432 = arith.mulf %427, %431 : vector<8x32xf32>
    %433 = vector.shape_cast %362 : vector<8x1xi1> to vector<8x1xi1>
    %434 = vector.broadcast %433 : vector<8x1xi1> to vector<8x32xi1>
    %435 = arith.select %434, %432, %355 : vector<8x32xi1>, vector<8x32xf32>
    %436 = vector.shape_cast %362 : vector<8x1xi1> to vector<8x1xi1>
    %437 = vector.broadcast %436 : vector<8x1xi1> to vector<8x32xi1>
    %438 = arith.select %437, %430, %358 : vector<8x32xi1>, vector<8x32xf32>
    %439 = arith.index_cast %364 : i32 to index
    %c0_117 = arith.constant 0 : index
    %440 = vector.load %arg19[%439, %c0_117] : memref<64x32xf32, #tpu.memory_space<vmem>>, vector<8x32xf32>
    tpu.vector_store %arg19[%439, %c0_117], %435 {strides = array<i32>} : memref<64x32xf32, #tpu.memory_space<vmem>>, vector<8x32xf32>,
    %c5_i32 = arith.constant 5 : i32
    %441 = vector.broadcast %c5_i32 : i32 to vector<8x1xi32>
    %442 = arith.cmpi sgt, %32, %441 : vector<8x1xi32>
    %c8_i32_118 = arith.constant 8 : i32
    %443 = arith.muli %c5_i32, %c8_i32_118 : i32
    %444 = tpu.assume_multiple %443, 8 : i32
    %445 = arith.index_cast %444 : i32 to index
    %c0_119 = arith.constant 0 : index
    %446 = vector.load %arg18[%445, %c0_119] : memref<64x128xf32, #tpu.memory_space<vmem>>, vector<8x128xf32>
    %447 = arith.addf %446, %31 : vector<8x128xf32>
    %c0_120 = arith.constant 0 : index
    %c0_121 = arith.constant 0 : index
    %448 = vector.load %arg10[%c0_120, %c0_121] : memref<32x128xf32, #tpu.memory_space<vmem>>, vector<32x128xf32>
    %cst_122 = arith.constant dense<0.000000e+00> : vector<8x128xf32>
    %449 = tpu.matmul %398, %448, %cst_122 {dimension_numbers = #tpu.dot_dimension_numbers<[1], [0], [0], [1], [0, 0, 1, 1], [], []>} : vector<8x32xf32>, vector<32x128xf32>, vector<8x128xf32> -> vector<8x128xf32>
    %450 = arith.addf %447, %449 : vector<8x128xf32>
    %451 = vector.extract_strided_slice %450 {offsets = [0, 0], sizes = [8, 32], strides = [1, 1]} : vector<8x128xf32> to vector<8x32xf32>
    %452 = arith.negf %451 : vector<8x32xf32>
    %453 = math.exp %452 : vector<8x32xf32>
    %cst_123 = arith.constant 1.000000e+00 : f32
    %454 = vector.broadcast %cst_123 : f32 to vector<8x32xf32>
    %455 = arith.addf %454, %453 : vector<8x32xf32>
    %456 = arith.divf %454, %455 : vector<8x32xf32>
    %457 = vector.extract_strided_slice %450 {offsets = [0, 32], sizes = [8, 32], strides = [1, 1]} : vector<8x128xf32> to vector<8x32xf32>
    %458 = arith.negf %457 : vector<8x32xf32>
    %459 = math.exp %458 : vector<8x32xf32>
    %cst_124 = arith.constant 1.000000e+00 : f32
    %460 = vector.broadcast %cst_124 : f32 to vector<8x32xf32>
    %461 = arith.addf %460, %459 : vector<8x32xf32>
    %462 = arith.divf %460, %461 : vector<8x32xf32>
    %463 = vector.extract_strided_slice %450 {offsets = [0, 64], sizes = [8, 32], strides = [1, 1]} : vector<8x128xf32> to vector<8x32xf32>
    %464 = math.tanh %463 : vector<8x32xf32>
    %465 = vector.extract_strided_slice %450 {offsets = [0, 96], sizes = [8, 32], strides = [1, 1]} : vector<8x128xf32> to vector<8x32xf32>
    %466 = arith.negf %465 : vector<8x32xf32>
    %467 = math.exp %466 : vector<8x32xf32>
    %cst_125 = arith.constant 1.000000e+00 : f32
    %468 = vector.broadcast %cst_125 : f32 to vector<8x32xf32>
    %469 = arith.addf %468, %467 : vector<8x32xf32>
    %470 = arith.divf %468, %469 : vector<8x32xf32>
    %471 = arith.mulf %462, %401 : vector<8x32xf32>
    %472 = arith.mulf %456, %464 : vector<8x32xf32>
    %473 = arith.addf %471, %472 : vector<8x32xf32>
    %474 = math.tanh %473 : vector<8x32xf32>
    %475 = arith.mulf %470, %474 : vector<8x32xf32>
    %476 = vector.shape_cast %442 : vector<8x1xi1> to vector<8x1xi1>
    %477 = vector.broadcast %476 : vector<8x1xi1> to vector<8x32xi1>
    %478 = arith.select %477, %475, %398 : vector<8x32xi1>, vector<8x32xf32>
    %479 = vector.shape_cast %442 : vector<8x1xi1> to vector<8x1xi1>
    %480 = vector.broadcast %479 : vector<8x1xi1> to vector<8x32xi1>
    %481 = arith.select %480, %473, %401 : vector<8x32xi1>, vector<8x32xf32>
    %482 = tpu.concatenate %478, %435 in 1 : vector<8x32xf32>, vector<8x32xf32> -> vector<8x64xf32>
    %c0_126 = arith.constant 0 : index
    %c0_127 = arith.constant 0 : index
    %483 = vector.load %arg11[%c0_126, %c0_127] : memref<64x128xf32, #tpu.memory_space<vmem>>, vector<64x128xf32>
    %cst_128 = arith.constant dense<0.000000e+00> : vector<8x128xf32>
    %484 = tpu.matmul %482, %483, %cst_128 {dimension_numbers = #tpu.dot_dimension_numbers<[1], [0], [0], [1], [0, 0, 1, 1], [], []>} : vector<8x64xf32>, vector<64x128xf32>, vector<8x128xf32> -> vector<8x128xf32>
    %c0_129 = arith.constant 0 : index
    %c0_130 = arith.constant 0 : index
    %485 = vector.load %arg12[%c0_129, %c0_130] : memref<1x128xf32, #tpu.memory_space<vmem>>, vector<1x128xf32>
    %486 = vector.broadcast %485 : vector<1x128xf32> to vector<8x128xf32>
    %487 = arith.addf %484, %486 : vector<8x128xf32>
    %488 = vector.extract_strided_slice %487 {offsets = [0, 0], sizes = [8, 32], strides = [1, 1]} : vector<8x128xf32> to vector<8x32xf32>
    %489 = arith.negf %488 : vector<8x32xf32>
    %490 = math.exp %489 : vector<8x32xf32>
    %cst_131 = arith.constant 1.000000e+00 : f32
    %491 = vector.broadcast %cst_131 : f32 to vector<8x32xf32>
    %492 = arith.addf %491, %490 : vector<8x32xf32>
    %493 = arith.divf %491, %492 : vector<8x32xf32>
    %494 = vector.extract_strided_slice %487 {offsets = [0, 32], sizes = [8, 32], strides = [1, 1]} : vector<8x128xf32> to vector<8x32xf32>
    %495 = arith.negf %494 : vector<8x32xf32>
    %496 = math.exp %495 : vector<8x32xf32>
    %cst_132 = arith.constant 1.000000e+00 : f32
    %497 = vector.broadcast %cst_132 : f32 to vector<8x32xf32>
    %498 = arith.addf %497, %496 : vector<8x32xf32>
    %499 = arith.divf %497, %498 : vector<8x32xf32>
    %500 = vector.extract_strided_slice %487 {offsets = [0, 64], sizes = [8, 32], strides = [1, 1]} : vector<8x128xf32> to vector<8x32xf32>
    %501 = math.tanh %500 : vector<8x32xf32>
    %502 = vector.extract_strided_slice %487 {offsets = [0, 96], sizes = [8, 32], strides = [1, 1]} : vector<8x128xf32> to vector<8x32xf32>
    %503 = arith.negf %502 : vector<8x32xf32>
    %504 = math.exp %503 : vector<8x32xf32>
    %cst_133 = arith.constant 1.000000e+00 : f32
    %505 = vector.broadcast %cst_133 : f32 to vector<8x32xf32>
    %506 = arith.addf %505, %504 : vector<8x32xf32>
    %507 = arith.divf %505, %506 : vector<8x32xf32>
    %508 = arith.mulf %499, %438 : vector<8x32xf32>
    %509 = arith.mulf %493, %501 : vector<8x32xf32>
    %510 = arith.addf %508, %509 : vector<8x32xf32>
    %511 = math.tanh %510 : vector<8x32xf32>
    %512 = arith.mulf %507, %511 : vector<8x32xf32>
    %513 = vector.shape_cast %442 : vector<8x1xi1> to vector<8x1xi1>
    %514 = vector.broadcast %513 : vector<8x1xi1> to vector<8x32xi1>
    %515 = arith.select %514, %512, %435 : vector<8x32xi1>, vector<8x32xf32>
    %516 = vector.shape_cast %442 : vector<8x1xi1> to vector<8x1xi1>
    %517 = vector.broadcast %516 : vector<8x1xi1> to vector<8x32xi1>
    %518 = arith.select %517, %510, %438 : vector<8x32xi1>, vector<8x32xf32>
    %519 = arith.index_cast %444 : i32 to index
    %c0_134 = arith.constant 0 : index
    %520 = vector.load %arg19[%519, %c0_134] : memref<64x32xf32, #tpu.memory_space<vmem>>, vector<8x32xf32>
    tpu.vector_store %arg19[%519, %c0_134], %515 {strides = array<i32>} : memref<64x32xf32, #tpu.memory_space<vmem>>, vector<8x32xf32>,
    %c6_i32 = arith.constant 6 : i32
    %521 = vector.broadcast %c6_i32 : i32 to vector<8x1xi32>
    %522 = arith.cmpi sgt, %32, %521 : vector<8x1xi32>
    %c8_i32_135 = arith.constant 8 : i32
    %523 = arith.muli %c6_i32, %c8_i32_135 : i32
    %524 = tpu.assume_multiple %523, 8 : i32
    %525 = arith.index_cast %524 : i32 to index
    %c0_136 = arith.constant 0 : index
    %526 = vector.load %arg18[%525, %c0_136] : memref<64x128xf32, #tpu.memory_space<vmem>>, vector<8x128xf32>
    %527 = arith.addf %526, %31 : vector<8x128xf32>
    %c0_137 = arith.constant 0 : index
    %c0_138 = arith.constant 0 : index
    %528 = vector.load %arg10[%c0_137, %c0_138] : memref<32x128xf32, #tpu.memory_space<vmem>>, vector<32x128xf32>
    %cst_139 = arith.constant dense<0.000000e+00> : vector<8x128xf32>
    %529 = tpu.matmul %478, %528, %cst_139 {dimension_numbers = #tpu.dot_dimension_numbers<[1], [0], [0], [1], [0, 0, 1, 1], [], []>} : vector<8x32xf32>, vector<32x128xf32>, vector<8x128xf32> -> vector<8x128xf32>
    %530 = arith.addf %527, %529 : vector<8x128xf32>
    %531 = vector.extract_strided_slice %530 {offsets = [0, 0], sizes = [8, 32], strides = [1, 1]} : vector<8x128xf32> to vector<8x32xf32>
    %532 = arith.negf %531 : vector<8x32xf32>
    %533 = math.exp %532 : vector<8x32xf32>
    %cst_140 = arith.constant 1.000000e+00 : f32
    %534 = vector.broadcast %cst_140 : f32 to vector<8x32xf32>
    %535 = arith.addf %534, %533 : vector<8x32xf32>
    %536 = arith.divf %534, %535 : vector<8x32xf32>
    %537 = vector.extract_strided_slice %530 {offsets = [0, 32], sizes = [8, 32], strides = [1, 1]} : vector<8x128xf32> to vector<8x32xf32>
    %538 = arith.negf %537 : vector<8x32xf32>
    %539 = math.exp %538 : vector<8x32xf32>
    %cst_141 = arith.constant 1.000000e+00 : f32
    %540 = vector.broadcast %cst_141 : f32 to vector<8x32xf32>
    %541 = arith.addf %540, %539 : vector<8x32xf32>
    %542 = arith.divf %540, %541 : vector<8x32xf32>
    %543 = vector.extract_strided_slice %530 {offsets = [0, 64], sizes = [8, 32], strides = [1, 1]} : vector<8x128xf32> to vector<8x32xf32>
    %544 = math.tanh %543 : vector<8x32xf32>
    %545 = vector.extract_strided_slice %530 {offsets = [0, 96], sizes = [8, 32], strides = [1, 1]} : vector<8x128xf32> to vector<8x32xf32>
    %546 = arith.negf %545 : vector<8x32xf32>
    %547 = math.exp %546 : vector<8x32xf32>
    %cst_142 = arith.constant 1.000000e+00 : f32
    %548 = vector.broadcast %cst_142 : f32 to vector<8x32xf32>
    %549 = arith.addf %548, %547 : vector<8x32xf32>
    %550 = arith.divf %548, %549 : vector<8x32xf32>
    %551 = arith.mulf %542, %481 : vector<8x32xf32>
    %552 = arith.mulf %536, %544 : vector<8x32xf32>
    %553 = arith.addf %551, %552 : vector<8x32xf32>
    %554 = math.tanh %553 : vector<8x32xf32>
    %555 = arith.mulf %550, %554 : vector<8x32xf32>
    %556 = vector.shape_cast %522 : vector<8x1xi1> to vector<8x1xi1>
    %557 = vector.broadcast %556 : vector<8x1xi1> to vector<8x32xi1>
    %558 = arith.select %557, %555, %478 : vector<8x32xi1>, vector<8x32xf32>
    %559 = vector.shape_cast %522 : vector<8x1xi1> to vector<8x1xi1>
    %560 = vector.broadcast %559 : vector<8x1xi1> to vector<8x32xi1>
    %561 = arith.select %560, %553, %481 : vector<8x32xi1>, vector<8x32xf32>
    %562 = tpu.concatenate %558, %515 in 1 : vector<8x32xf32>, vector<8x32xf32> -> vector<8x64xf32>
    %c0_143 = arith.constant 0 : index
    %c0_144 = arith.constant 0 : index
    %563 = vector.load %arg11[%c0_143, %c0_144] : memref<64x128xf32, #tpu.memory_space<vmem>>, vector<64x128xf32>
    %cst_145 = arith.constant dense<0.000000e+00> : vector<8x128xf32>
    %564 = tpu.matmul %562, %563, %cst_145 {dimension_numbers = #tpu.dot_dimension_numbers<[1], [0], [0], [1], [0, 0, 1, 1], [], []>} : vector<8x64xf32>, vector<64x128xf32>, vector<8x128xf32> -> vector<8x128xf32>
    %c0_146 = arith.constant 0 : index
    %c0_147 = arith.constant 0 : index
    %565 = vector.load %arg12[%c0_146, %c0_147] : memref<1x128xf32, #tpu.memory_space<vmem>>, vector<1x128xf32>
    %566 = vector.broadcast %565 : vector<1x128xf32> to vector<8x128xf32>
    %567 = arith.addf %564, %566 : vector<8x128xf32>
    %568 = vector.extract_strided_slice %567 {offsets = [0, 0], sizes = [8, 32], strides = [1, 1]} : vector<8x128xf32> to vector<8x32xf32>
    %569 = arith.negf %568 : vector<8x32xf32>
    %570 = math.exp %569 : vector<8x32xf32>
    %cst_148 = arith.constant 1.000000e+00 : f32
    %571 = vector.broadcast %cst_148 : f32 to vector<8x32xf32>
    %572 = arith.addf %571, %570 : vector<8x32xf32>
    %573 = arith.divf %571, %572 : vector<8x32xf32>
    %574 = vector.extract_strided_slice %567 {offsets = [0, 32], sizes = [8, 32], strides = [1, 1]} : vector<8x128xf32> to vector<8x32xf32>
    %575 = arith.negf %574 : vector<8x32xf32>
    %576 = math.exp %575 : vector<8x32xf32>
    %cst_149 = arith.constant 1.000000e+00 : f32
    %577 = vector.broadcast %cst_149 : f32 to vector<8x32xf32>
    %578 = arith.addf %577, %576 : vector<8x32xf32>
    %579 = arith.divf %577, %578 : vector<8x32xf32>
    %580 = vector.extract_strided_slice %567 {offsets = [0, 64], sizes = [8, 32], strides = [1, 1]} : vector<8x128xf32> to vector<8x32xf32>
    %581 = math.tanh %580 : vector<8x32xf32>
    %582 = vector.extract_strided_slice %567 {offsets = [0, 96], sizes = [8, 32], strides = [1, 1]} : vector<8x128xf32> to vector<8x32xf32>
    %583 = arith.negf %582 : vector<8x32xf32>
    %584 = math.exp %583 : vector<8x32xf32>
    %cst_150 = arith.constant 1.000000e+00 : f32
    %585 = vector.broadcast %cst_150 : f32 to vector<8x32xf32>
    %586 = arith.addf %585, %584 : vector<8x32xf32>
    %587 = arith.divf %585, %586 : vector<8x32xf32>
    %588 = arith.mulf %579, %518 : vector<8x32xf32>
    %589 = arith.mulf %573, %581 : vector<8x32xf32>
    %590 = arith.addf %588, %589 : vector<8x32xf32>
    %591 = math.tanh %590 : vector<8x32xf32>
    %592 = arith.mulf %587, %591 : vector<8x32xf32>
    %593 = vector.shape_cast %522 : vector<8x1xi1> to vector<8x1xi1>
    %594 = vector.broadcast %593 : vector<8x1xi1> to vector<8x32xi1>
    %595 = arith.select %594, %592, %515 : vector<8x32xi1>, vector<8x32xf32>
    %596 = vector.shape_cast %522 : vector<8x1xi1> to vector<8x1xi1>
    %597 = vector.broadcast %596 : vector<8x1xi1> to vector<8x32xi1>
    %598 = arith.select %597, %590, %518 : vector<8x32xi1>, vector<8x32xf32>
    %599 = arith.index_cast %524 : i32 to index
    %c0_151 = arith.constant 0 : index
    %600 = vector.load %arg19[%599, %c0_151] : memref<64x32xf32, #tpu.memory_space<vmem>>, vector<8x32xf32>
    tpu.vector_store %arg19[%599, %c0_151], %595 {strides = array<i32>} : memref<64x32xf32, #tpu.memory_space<vmem>>, vector<8x32xf32>,
    %c7_i32 = arith.constant 7 : i32
    %601 = vector.broadcast %c7_i32 : i32 to vector<8x1xi32>
    %602 = arith.cmpi sgt, %32, %601 : vector<8x1xi32>
    %c8_i32_152 = arith.constant 8 : i32
    %603 = arith.muli %c7_i32, %c8_i32_152 : i32
    %604 = tpu.assume_multiple %603, 8 : i32
    %605 = arith.index_cast %604 : i32 to index
    %c0_153 = arith.constant 0 : index
    %606 = vector.load %arg18[%605, %c0_153] : memref<64x128xf32, #tpu.memory_space<vmem>>, vector<8x128xf32>
    %607 = arith.addf %606, %31 : vector<8x128xf32>
    %c0_154 = arith.constant 0 : index
    %c0_155 = arith.constant 0 : index
    %608 = vector.load %arg10[%c0_154, %c0_155] : memref<32x128xf32, #tpu.memory_space<vmem>>, vector<32x128xf32>
    %cst_156 = arith.constant dense<0.000000e+00> : vector<8x128xf32>
    %609 = tpu.matmul %558, %608, %cst_156 {dimension_numbers = #tpu.dot_dimension_numbers<[1], [0], [0], [1], [0, 0, 1, 1], [], []>} : vector<8x32xf32>, vector<32x128xf32>, vector<8x128xf32> -> vector<8x128xf32>
    %610 = arith.addf %607, %609 : vector<8x128xf32>
    %611 = vector.extract_strided_slice %610 {offsets = [0, 0], sizes = [8, 32], strides = [1, 1]} : vector<8x128xf32> to vector<8x32xf32>
    %612 = arith.negf %611 : vector<8x32xf32>
    %613 = math.exp %612 : vector<8x32xf32>
    %cst_157 = arith.constant 1.000000e+00 : f32
    %614 = vector.broadcast %cst_157 : f32 to vector<8x32xf32>
    %615 = arith.addf %614, %613 : vector<8x32xf32>
    %616 = arith.divf %614, %615 : vector<8x32xf32>
    %617 = vector.extract_strided_slice %610 {offsets = [0, 32], sizes = [8, 32], strides = [1, 1]} : vector<8x128xf32> to vector<8x32xf32>
    %618 = arith.negf %617 : vector<8x32xf32>
    %619 = math.exp %618 : vector<8x32xf32>
    %cst_158 = arith.constant 1.000000e+00 : f32
    %620 = vector.broadcast %cst_158 : f32 to vector<8x32xf32>
    %621 = arith.addf %620, %619 : vector<8x32xf32>
    %622 = arith.divf %620, %621 : vector<8x32xf32>
    %623 = vector.extract_strided_slice %610 {offsets = [0, 64], sizes = [8, 32], strides = [1, 1]} : vector<8x128xf32> to vector<8x32xf32>
    %624 = math.tanh %623 : vector<8x32xf32>
    %625 = vector.extract_strided_slice %610 {offsets = [0, 96], sizes = [8, 32], strides = [1, 1]} : vector<8x128xf32> to vector<8x32xf32>
    %626 = arith.negf %625 : vector<8x32xf32>
    %627 = math.exp %626 : vector<8x32xf32>
    %cst_159 = arith.constant 1.000000e+00 : f32
    %628 = vector.broadcast %cst_159 : f32 to vector<8x32xf32>
    %629 = arith.addf %628, %627 : vector<8x32xf32>
    %630 = arith.divf %628, %629 : vector<8x32xf32>
    %631 = arith.mulf %622, %561 : vector<8x32xf32>
    %632 = arith.mulf %616, %624 : vector<8x32xf32>
    %633 = arith.addf %631, %632 : vector<8x32xf32>
    %634 = math.tanh %633 : vector<8x32xf32>
    %635 = arith.mulf %630, %634 : vector<8x32xf32>
    %636 = vector.shape_cast %602 : vector<8x1xi1> to vector<8x1xi1>
    %637 = vector.broadcast %636 : vector<8x1xi1> to vector<8x32xi1>
    %638 = arith.select %637, %635, %558 : vector<8x32xi1>, vector<8x32xf32>
    %639 = vector.shape_cast %602 : vector<8x1xi1> to vector<8x1xi1>
    %640 = vector.broadcast %639 : vector<8x1xi1> to vector<8x32xi1>
    %641 = arith.select %640, %633, %561 : vector<8x32xi1>, vector<8x32xf32>
    %642 = tpu.concatenate %638, %595 in 1 : vector<8x32xf32>, vector<8x32xf32> -> vector<8x64xf32>
    %c0_160 = arith.constant 0 : index
    %c0_161 = arith.constant 0 : index
    %643 = vector.load %arg11[%c0_160, %c0_161] : memref<64x128xf32, #tpu.memory_space<vmem>>, vector<64x128xf32>
    %cst_162 = arith.constant dense<0.000000e+00> : vector<8x128xf32>
    %644 = tpu.matmul %642, %643, %cst_162 {dimension_numbers = #tpu.dot_dimension_numbers<[1], [0], [0], [1], [0, 0, 1, 1], [], []>} : vector<8x64xf32>, vector<64x128xf32>, vector<8x128xf32> -> vector<8x128xf32>
    %c0_163 = arith.constant 0 : index
    %c0_164 = arith.constant 0 : index
    %645 = vector.load %arg12[%c0_163, %c0_164] : memref<1x128xf32, #tpu.memory_space<vmem>>, vector<1x128xf32>
    %646 = vector.broadcast %645 : vector<1x128xf32> to vector<8x128xf32>
    %647 = arith.addf %644, %646 : vector<8x128xf32>
    %648 = vector.extract_strided_slice %647 {offsets = [0, 0], sizes = [8, 32], strides = [1, 1]} : vector<8x128xf32> to vector<8x32xf32>
    %649 = arith.negf %648 : vector<8x32xf32>
    %650 = math.exp %649 : vector<8x32xf32>
    %cst_165 = arith.constant 1.000000e+00 : f32
    %651 = vector.broadcast %cst_165 : f32 to vector<8x32xf32>
    %652 = arith.addf %651, %650 : vector<8x32xf32>
    %653 = arith.divf %651, %652 : vector<8x32xf32>
    %654 = vector.extract_strided_slice %647 {offsets = [0, 32], sizes = [8, 32], strides = [1, 1]} : vector<8x128xf32> to vector<8x32xf32>
    %655 = arith.negf %654 : vector<8x32xf32>
    %656 = math.exp %655 : vector<8x32xf32>
    %cst_166 = arith.constant 1.000000e+00 : f32
    %657 = vector.broadcast %cst_166 : f32 to vector<8x32xf32>
    %658 = arith.addf %657, %656 : vector<8x32xf32>
    %659 = arith.divf %657, %658 : vector<8x32xf32>
    %660 = vector.extract_strided_slice %647 {offsets = [0, 64], sizes = [8, 32], strides = [1, 1]} : vector<8x128xf32> to vector<8x32xf32>
    %661 = math.tanh %660 : vector<8x32xf32>
    %662 = vector.extract_strided_slice %647 {offsets = [0, 96], sizes = [8, 32], strides = [1, 1]} : vector<8x128xf32> to vector<8x32xf32>
    %663 = arith.negf %662 : vector<8x32xf32>
    %664 = math.exp %663 : vector<8x32xf32>
    %cst_167 = arith.constant 1.000000e+00 : f32
    %665 = vector.broadcast %cst_167 : f32 to vector<8x32xf32>
    %666 = arith.addf %665, %664 : vector<8x32xf32>
    %667 = arith.divf %665, %666 : vector<8x32xf32>
    %668 = arith.mulf %659, %598 : vector<8x32xf32>
    %669 = arith.mulf %653, %661 : vector<8x32xf32>
    %670 = arith.addf %668, %669 : vector<8x32xf32>
    %671 = math.tanh %670 : vector<8x32xf32>
    %672 = arith.mulf %667, %671 : vector<8x32xf32>
    %673 = vector.shape_cast %602 : vector<8x1xi1> to vector<8x1xi1>
    %674 = vector.broadcast %673 : vector<8x1xi1> to vector<8x32xi1>
    %675 = arith.select %674, %672, %595 : vector<8x32xi1>, vector<8x32xf32>
    %676 = vector.shape_cast %602 : vector<8x1xi1> to vector<8x1xi1>
    %677 = vector.broadcast %676 : vector<8x1xi1> to vector<8x32xi1>
    %678 = arith.select %677, %670, %598 : vector<8x32xi1>, vector<8x32xf32>
    %679 = arith.index_cast %604 : i32 to index
    %c0_168 = arith.constant 0 : index
    %680 = vector.load %arg19[%679, %c0_168] : memref<64x32xf32, #tpu.memory_space<vmem>>, vector<8x32xf32>
    tpu.vector_store %arg19[%679, %c0_168], %675 {strides = array<i32>} : memref<64x32xf32, #tpu.memory_space<vmem>>, vector<8x32xf32>,
    %c8_i32_169 = arith.constant 8 : i32
    %c0_170 = arith.constant 0 : index
    %c0_171 = arith.constant 0 : index
    %c0_172 = arith.constant 0 : index
    %681 = vector.load %arg16[%c0_170, %c0_171, %c0_172] : memref<2x8x32xf32, #tpu.memory_space<vmem>>, vector<1x8x32xf32>
    %682 = vector.shape_cast %681 : vector<1x8x32xf32> to vector<8x32xf32>
    %683 = vector.shape_cast %638 : vector<8x32xf32> to vector<1x8x32xf32>
    tpu.vector_store %arg16[%c0_170, %c0_171, %c0_172], %683 {strides = array<i32>} : memref<2x8x32xf32, #tpu.memory_space<vmem>>, vector<1x8x32xf32>,
    %c1_173 = arith.constant 1 : index
    %c0_174 = arith.constant 0 : index
    %c0_175 = arith.constant 0 : index
    %684 = vector.load %arg16[%c1_173, %c0_174, %c0_175] : memref<2x8x32xf32, #tpu.memory_space<vmem>>, vector<1x8x32xf32>
    %685 = vector.shape_cast %684 : vector<1x8x32xf32> to vector<8x32xf32>
    %686 = vector.shape_cast %675 : vector<8x32xf32> to vector<1x8x32xf32>
    tpu.vector_store %arg16[%c1_173, %c0_174, %c0_175], %686 {strides = array<i32>} : memref<2x8x32xf32, #tpu.memory_space<vmem>>, vector<1x8x32xf32>,
    %c0_176 = arith.constant 0 : index
    %c0_177 = arith.constant 0 : index
    %c0_178 = arith.constant 0 : index
    %687 = vector.load %arg17[%c0_176, %c0_177, %c0_178] : memref<2x8x32xf32, #tpu.memory_space<vmem>>, vector<1x8x32xf32>
    %688 = vector.shape_cast %687 : vector<1x8x32xf32> to vector<8x32xf32>
    %689 = vector.shape_cast %641 : vector<8x32xf32> to vector<1x8x32xf32>
    tpu.vector_store %arg17[%c0_176, %c0_177, %c0_178], %689 {strides = array<i32>} : memref<2x8x32xf32, #tpu.memory_space<vmem>>, vector<1x8x32xf32>,
    %c1_179 = arith.constant 1 : index
    %c0_180 = arith.constant 0 : index
    %c0_181 = arith.constant 0 : index
    %690 = vector.load %arg17[%c1_179, %c0_180, %c0_181] : memref<2x8x32xf32, #tpu.memory_space<vmem>>, vector<1x8x32xf32>
    %691 = vector.shape_cast %690 : vector<1x8x32xf32> to vector<8x32xf32>
    %692 = vector.shape_cast %678 : vector<8x32xf32> to vector<1x8x32xf32>
    tpu.vector_store %arg17[%c1_179, %c0_180, %c0_181], %692 {strides = array<i32>} : memref<2x8x32xf32, #tpu.memory_space<vmem>>, vector<1x8x32xf32>,
    %c0_182 = arith.constant 0 : index
    %c0_183 = arith.constant 0 : index
    %693 = vector.load %arg19[%c0_182, %c0_183] : memref<64x32xf32, #tpu.memory_space<vmem>>, vector<64x32xf32>
    %c0_184 = arith.constant 0 : index
    %c0_185 = arith.constant 0 : index
    %694 = vector.load %arg13[%c0_184, %c0_185] : memref<32x128xf32, #tpu.memory_space<vmem>>, vector<32x128xf32>
    %cst_186 = arith.constant dense<0.000000e+00> : vector<64x128xf32>
    %695 = tpu.matmul %693, %694, %cst_186 {dimension_numbers = #tpu.dot_dimension_numbers<[1], [0], [0], [1], [0, 0, 1, 1], [], []>} : vector<64x32xf32>, vector<32x128xf32>, vector<64x128xf32> -> vector<64x128xf32>
    %c0_187 = arith.constant 0 : index
    %c0_188 = arith.constant 0 : index
    %696 = vector.load %arg14[%c0_187, %c0_188] : memref<1x128xf32, #tpu.memory_space<vmem>>, vector<1x128xf32>
    %697 = vector.broadcast %696 : vector<1x128xf32> to vector<64x128xf32>
    %698 = arith.addf %695, %697 : vector<64x128xf32>
    %c0_189 = arith.constant 0 : index
    %c0_190 = arith.constant 0 : index
    %699 = vector.load %arg15[%c0_189, %c0_190] : memref<64x128xf32, #tpu.memory_space<vmem>>, vector<64x128xf32>
    tpu.vector_store %arg15[%c0_189, %c0_190], %698 {strides = array<i32>} : memref<64x128xf32, #tpu.memory_space<vmem>>, vector<64x128xf32>,
    return
  }
}

</mosaic_0001>

<llo_original>
// kernel: tpu_custom_call.1
$region0: #{tpu_custom_call.1}
  #allocation0 [shape = 'u32[]', space=smem, size = 0x4, offset = 0x4, fixed_abs, tag = 'smem constant byte address 0x4 - core index']
  #allocation1 [shape = 'u32[144,128]{1,0:T(1,128)}', space=vmem, size = 0x12000, scoped, tag = 'internal scratch']
  #allocation2 [shape = 'f32[64,128]{1,0:T(8,128)}', space=vmem, size = 0x8000, scoped, tag = 'scratch operand']
  #allocation3 [shape = 'f32[64,32]{1,0:T(8,128)}', space=vmem, size = 0x8000, scoped, tag = 'scratch operand']
  %s0 = inlined_call_operand.vmem [shape: f32[64,32], index: 0, kind: input, shape index: {}]
  %s1 = inlined_call_operand.hbm [shape: f32[8,32], index: 1, kind: input, shape index: {}]
  %s2 = inlined_call_operand.vmem [shape: s32[8,1], index: 2, kind: input, shape index: {}]
  %s3 = inlined_call_operand.hbm [shape: f32[2,8,32], index: 3, kind: input, shape index: {}]
  %s4 = inlined_call_operand.hbm [shape: f32[2,8,32], index: 4, kind: input, shape index: {}]
  %s5 = inlined_call_operand.vmem [shape: f32[1,32], index: 5, kind: input, shape index: {}]
  %s6 = inlined_call_operand.vmem [shape: f32[1,32], index: 6, kind: input, shape index: {}]
  %s7 = inlined_call_operand.vmem [shape: f32[32,128], index: 7, kind: input, shape index: {}]
  %s8 = inlined_call_operand.vmem [shape: f32[32,128], index: 8, kind: input, shape index: {}]
  %s9 = inlined_call_operand.vmem [shape: f32[1,128], index: 9, kind: input, shape index: {}]
  %s10 = inlined_call_operand.hbm [shape: f32[32,128], index: 10, kind: input, shape index: {}]
  %s11 = inlined_call_operand.vmem [shape: f32[64,128], index: 11, kind: input, shape index: {}]
  %s12 = inlined_call_operand.vmem [shape: f32[1,128], index: 12, kind: input, shape index: {}]
  %s13 = inlined_call_operand.hbm [shape: f32[32,128], index: 13, kind: input, shape index: {}]
  %s14 = inlined_call_operand.vmem [shape: f32[1,128], index: 14, kind: input, shape index: {}]
  %s15 = inlined_call_operand.hbm [shape: f32[64,128], index: 15, kind: output, shape index: {0}]
  %s16 = inlined_call_operand.hbm [shape: f32[2,8,32], index: 16, kind: output, shape index: {1}]
  %s17 = inlined_call_operand.hbm [shape: f32[2,8,32], index: 17, kind: output, shape index: {2}]
  %18 = xla_tuple %s15, %s16, %s17
  %s19 = sld [smem:[#allocation0]]
  $region106: #{tpu_custom_call.1} parent=0
    _
  %s21 = ssub.s32 1, %s19
  %s22 = scalar_select 0, %s21, %s19
  $region1: #{tpu_custom_call.1} parent=0
    #allocation4 [shape = 'u8[4096]{0}', space=vmem, size = 0x1000, scoped, tag = 'input window, operand 1, single buffered']
    #allocation5 [shape = 's32[1]{0}', space=sflag, size = 0x4, scoped, tag = 'scoped memory for tpu_custom_call.1']
    #allocation6 [shape = 's32[1]{0}', space=sflag, size = 0x4, scoped, tag = 'scoped memory for tpu_custom_call.1']
    #allocation7 [shape = 'u8[8192]{0}', space=vmem, size = 0x2000, scoped, tag = 'input window, operand 3, single buffered']
    #allocation8 [shape = 's32[1]{0}', space=sflag, size = 0x4, scoped, tag = 'scoped memory for tpu_custom_call.1']
    #allocation9 [shape = 'u8[8192]{0}', space=vmem, size = 0x2000, scoped, tag = 'input window, operand 4, single buffered']
    #allocation10 [shape = 'u8[16384]{0}', space=vmem, size = 0x4000, scoped, tag = 'input window, operand 10, single buffered']
    #allocation11 [shape = 's32[1]{0}', space=sflag, size = 0x4, scoped, tag = 'scoped memory for tpu_custom_call.1']
    #allocation12 [shape = 'u8[16384]{0}', space=vmem, size = 0x4000, scoped, tag = 'input window, operand 13, single buffered']
    #allocation13 [shape = 'u8[32768]{0}', space=vmem, size = 0x8000, scoped, tag = 'output window, operand 0, single buffered']
    #allocation14 [shape = 'u8[8192]{0}', space=vmem, size = 0x2000, scoped, tag = 'output window, operand 1, single buffered']
    #allocation15 [shape = 's32[1]{0}', space=sflag, size = 0x4, scoped, tag = 'scoped memory for tpu_custom_call.1']
    #allocation16 [shape = 'u8[8192]{0}', space=vmem, size = 0x2000, scoped, tag = 'output window, operand 2, single buffered']
    %23 = vsyncpa [#allocation5], 0
    %24 = vsyncpa [#allocation8], 0
    %25 = vsyncpa [#allocation11], 0
    %26 = vsyncpa [#allocation6], 0
    %27 = vsyncpa [#allocation15], 0
    // Predicated region
    $region2: #{tpu_custom_call.1} parent=1 // pred_check
      _
    $region3: #{tpu_custom_call.1} parent=1 // pred_check_branch
      %29 = sbr.rel (0) target = $region5
    $region4: #{tpu_custom_call.1} parent=1 // pred_region
      _
    $region5: #{tpu_custom_call.1} parent=1 // pred_fallthru
      _
    // Predicated region
    $region6: #{tpu_custom_call.1} parent=1 // pred_check
      _
    $region7: #{tpu_custom_call.1} parent=1 // pred_check_branch
      %31 = sbr.rel (0) target = $region9
    $region8: #{tpu_custom_call.1} parent=1 // pred_region
      %s33 = ssub.s32 128, 128
      %34 = vsyncadd [#allocation5], %s33
      %s36 = sshll.u32 [#allocation4], 4
      %s37 = int_to_ptr.vmem [resolvable:$true] %s36
      %39 = dma.hbm_to_vmem [thread:$0]  %s1, 128, %s37, [#allocation5]
    $region9: #{tpu_custom_call.1} parent=1 // pred_fallthru
      _
    // Predicated region
    $region10: #{tpu_custom_call.1} parent=1 // pred_check
      _
    $region11: #{tpu_custom_call.1} parent=1 // pred_check_branch
      %41 = sbr.rel (0) target = $region13
    $region12: #{tpu_custom_call.1} parent=1 // pred_region
      _
    $region13: #{tpu_custom_call.1} parent=1 // pred_fallthru
      _
    // Predicated region
    $region14: #{tpu_custom_call.1} parent=1 // pred_check
      _
    $region15: #{tpu_custom_call.1} parent=1 // pred_check_branch
      %43 = sbr.rel (0) target = $region17
    $region16: #{tpu_custom_call.1} parent=1 // pred_region
      %s45 = ssub.s32 256, 256
      %46 = vsyncadd [#allocation8], %s45
      %s47 = sshll.u32 [#allocation7], 4
      %s48 = int_to_ptr.vmem [resolvable:$true] %s47
      %53 = dma.hbm_to_vmem [thread:$0]  %s3, 256, %s48, [#allocation8], 128, 128, 8
    $region17: #{tpu_custom_call.1} parent=1 // pred_fallthru
      _
    // Predicated region
    $region18: #{tpu_custom_call.1} parent=1 // pred_check
      _
    $region19: #{tpu_custom_call.1} parent=1 // pred_check_branch
      %55 = sbr.rel (0) target = $region21
    $region20: #{tpu_custom_call.1} parent=1 // pred_region
      %s57 = ssub.s32 256, 256
      %58 = vsyncadd [#allocation8], %s57
      %s59 = sshll.u32 [#allocation9], 4
      %s60 = int_to_ptr.vmem [resolvable:$true] %s59
      %65 = dma.hbm_to_vmem [thread:$0]  %s4, 256, %s60, [#allocation8], 128, 128, 8
    $region21: #{tpu_custom_call.1} parent=1 // pred_fallthru
      _
    // Predicated region
    $region22: #{tpu_custom_call.1} parent=1 // pred_check
      _
    $region23: #{tpu_custom_call.1} parent=1 // pred_check_branch
      %67 = sbr.rel (0) target = $region25
    $region24: #{tpu_custom_call.1} parent=1 // pred_region
      _
    $region25: #{tpu_custom_call.1} parent=1 // pred_fallthru
      _
    // Predicated region
    $region26: #{tpu_custom_call.1} parent=1 // pred_check
      _
    $region27: #{tpu_custom_call.1} parent=1 // pred_check_branch
      %69 = sbr.rel (0) target = $region29
    $region28: #{tpu_custom_call.1} parent=1 // pred_region
      _
    $region29: #{tpu_custom_call.1} parent=1 // pred_fallthru
      _
    // Predicated region
    $region30: #{tpu_custom_call.1} parent=1 // pred_check
      _
    $region31: #{tpu_custom_call.1} parent=1 // pred_check_branch
      %71 = sbr.rel (0) target = $region33
    $region32: #{tpu_custom_call.1} parent=1 // pred_region
      _
    $region33: #{tpu_custom_call.1} parent=1 // pred_fallthru
      _
    // Predicated region
    $region34: #{tpu_custom_call.1} parent=1 // pred_check
      _
    $region35: #{tpu_custom_call.1} parent=1 // pred_check_branch
      %73 = sbr.rel (0) target = $region37
    $region36: #{tpu_custom_call.1} parent=1 // pred_region
      _
    $region37: #{tpu_custom_call.1} parent=1 // pred_fallthru
      _
    // Predicated region
    $region38: #{tpu_custom_call.1} parent=1 // pred_check
      _
    $region39: #{tpu_custom_call.1} parent=1 // pred_check_branch
      %75 = sbr.rel (0) target = $region41
    $region40: #{tpu_custom_call.1} parent=1 // pred_region
      _
    $region41: #{tpu_custom_call.1} parent=1 // pred_fallthru
      _
    // Predicated region
    $region42: #{tpu_custom_call.1} parent=1 // pred_check
      _
    $region43: #{tpu_custom_call.1} parent=1 // pred_check_branch
      %77 = sbr.rel (0) target = $region45
    $region44: #{tpu_custom_call.1} parent=1 // pred_region
      %s79 = ssub.s32 512, 512
      %80 = vsyncadd [#allocation11], %s79
      %s81 = sshll.u32 [#allocation10], 4
      %s82 = int_to_ptr.vmem [resolvable:$true] %s81
      %87 = dma.hbm_to_vmem [thread:$0]  %s10, 512, %s82, [#allocation11], 128, 128, 8
    $region45: #{tpu_custom_call.1} parent=1 // pred_fallthru
      _
    // Predicated region
    $region46: #{tpu_custom_call.1} parent=1 // pred_check
      _
    $region47: #{tpu_custom_call.1} parent=1 // pred_check_branch
      %89 = sbr.rel (0) target = $region49
    $region48: #{tpu_custom_call.1} parent=1 // pred_region
      _
    $region49: #{tpu_custom_call.1} parent=1 // pred_fallthru
      _
    // Predicated region
    $region50: #{tpu_custom_call.1} parent=1 // pred_check
      _
    $region51: #{tpu_custom_call.1} parent=1 // pred_check_branch
      %91 = sbr.rel (0) target = $region53
    $region52: #{tpu_custom_call.1} parent=1 // pred_region
      _
    $region53: #{tpu_custom_call.1} parent=1 // pred_fallthru
      _
    // Predicated region
    $region54: #{tpu_custom_call.1} parent=1 // pred_check
      _
    $region55: #{tpu_custom_call.1} parent=1 // pred_check_branch
      %93 = sbr.rel (0) target = $region57
    $region56: #{tpu_custom_call.1} parent=1 // pred_region
      %s95 = ssub.s32 512, 512
      %96 = vsyncadd [#allocation11], %s95
      %s97 = sshll.u32 [#allocation12], 4
      %s98 = int_to_ptr.vmem [resolvable:$true] %s97
      %103 = dma.hbm_to_vmem [thread:$0]  %s13, 512, %s98, [#allocation11], 128, 128, 8
    $region57: #{tpu_custom_call.1} parent=1 // pred_fallthru
      _
    // Predicated region
    $region58: #{tpu_custom_call.1} parent=1 // pred_check
      _
    $region59: #{tpu_custom_call.1} parent=1 // pred_check_branch
      %105 = sbr.rel (0) target = $region61
    $region60: #{tpu_custom_call.1} parent=1 // pred_region
      _
    $region61: #{tpu_custom_call.1} parent=1 // pred_fallthru
      _
    // Predicated region
    $region62: #{tpu_custom_call.1} parent=1 // pred_check
      _
    $region63: #{tpu_custom_call.1} parent=1 // pred_check_branch
      %107 = sbr.rel (0) target = $region65
    $region64: #{tpu_custom_call.1} parent=1 // pred_region
      %108 = dma.done [#allocation5], 128
    $region65: #{tpu_custom_call.1} parent=1 // pred_fallthru
      _
    // Predicated region
    $region66: #{tpu_custom_call.1} parent=1 // pred_check
      _
    $region67: #{tpu_custom_call.1} parent=1 // pred_check_branch
      %110 = sbr.rel (0) target = $region69
    $region68: #{tpu_custom_call.1} parent=1 // pred_region
      %111 = dma.done [#allocation8], 256
    $region69: #{tpu_custom_call.1} parent=1 // pred_fallthru
      _
    // Predicated region
    $region70: #{tpu_custom_call.1} parent=1 // pred_check
      _
    $region71: #{tpu_custom_call.1} parent=1 // pred_check_branch
      %113 = sbr.rel (0) target = $region73
    $region72: #{tpu_custom_call.1} parent=1 // pred_region
      %114 = dma.done [#allocation8], 256
    $region73: #{tpu_custom_call.1} parent=1 // pred_fallthru
      _
    // Predicated region
    $region74: #{tpu_custom_call.1} parent=1 // pred_check
      _
    $region75: #{tpu_custom_call.1} parent=1 // pred_check_branch
      %116 = sbr.rel (0) target = $region77
    $region76: #{tpu_custom_call.1} parent=1 // pred_region
      %117 = dma.done [#allocation11], 512
    $region77: #{tpu_custom_call.1} parent=1 // pred_fallthru
      _
    // Predicated region
    $region78: #{tpu_custom_call.1} parent=1 // pred_check
      _
    $region79: #{tpu_custom_call.1} parent=1 // pred_check_branch
      %119 = sbr.rel (0) target = $region81
    $region80: #{tpu_custom_call.1} parent=1 // pred_region
      %120 = dma.done [#allocation11], 512
    $region81: #{tpu_custom_call.1} parent=1 // pred_fallthru
      _
    %v121 = vld [vmem:[%s0] sm:$0xff]
    %v122 = vld [vmem:[%s0 + $0x8] sm:$0xff]
    %v123 = vld [vmem:[%s0 + $0x10] sm:$0xff]
    %v124 = vld [vmem:[%s0 + $0x18] sm:$0xff]
    %v125 = vld [vmem:[%s0 + $0x20] sm:$0xff]
    %v126 = vld [vmem:[%s0 + $0x28] sm:$0xff]
    %v127 = vld [vmem:[%s0 + $0x30] sm:$0xff]
    %v128 = vld [vmem:[%s0 + $0x38] sm:$0xff]
    %vm129 = vcmask 261120
    %v130 = vsel %vm129, %v121, 0.0
    %131 = vadd.xlane.f32.xlu0 %v130
    %v132 = vpop.xlane.xlu0 %131
    %v133 = vsel %vm129, %v122, 0.0
    %134 = vadd.xlane.f32.xlu0 %v133
    %v135 = vpop.xlane.xlu0 %134
    %v136 = vsel %vm129, %v123, 0.0
    %137 = vadd.xlane.f32.xlu0 %v136
    %v138 = vpop.xlane.xlu0 %137
    %v139 = vsel %vm129, %v124, 0.0
    %140 = vadd.xlane.f32.xlu0 %v139
    %v141 = vpop.xlane.xlu0 %140
    %v142 = vsel %vm129, %v125, 0.0
    %143 = vadd.xlane.f32.xlu0 %v142
    %v144 = vpop.xlane.xlu0 %143
    %v145 = vsel %vm129, %v126, 0.0
    %146 = vadd.xlane.f32.xlu0 %v145
    %v147 = vpop.xlane.xlu0 %146
    %v148 = vsel %vm129, %v127, 0.0
    %149 = vadd.xlane.f32.xlu0 %v148
    %v150 = vpop.xlane.xlu0 %149
    %v151 = vsel %vm129, %v128, 0.0
    %152 = vadd.xlane.f32.xlu0 %v151
    %v153 = vpop.xlane.xlu0 %152
    %v154 = vrcp.pop 32.0
    %v155 = vmul.f32 %v132, %v154
    %v156 = vmul.f32 %v135, %v154
    %v157 = vmul.f32 %v138, %v154
    %v158 = vmul.f32 %v141, %v154
    %v159 = vmul.f32 %v144, %v154
    %v160 = vmul.f32 %v147, %v154
    %v161 = vmul.f32 %v150, %v154
    %v162 = vmul.f32 %v153, %v154
    %v163 = vsub.f32 %v121, %v155
    %v164 = vsub.f32 %v122, %v156
    %v165 = vsub.f32 %v123, %v157
    %v166 = vsub.f32 %v124, %v158
    %v167 = vsub.f32 %v125, %v159
    %v168 = vsub.f32 %v126, %v160
    %v169 = vsub.f32 %v127, %v161
    %v170 = vsub.f32 %v128, %v162
    %v171 = vmul.f32 %v163, %v163
    %v172 = vmul.f32 %v164, %v164
    %v173 = vmul.f32 %v165, %v165
    %v174 = vmul.f32 %v166, %v166
    %v175 = vmul.f32 %v167, %v167
    %v176 = vmul.f32 %v168, %v168
    %v177 = vmul.f32 %v169, %v169
    %v178 = vmul.f32 %v170, %v170
    %v179 = vsel %vm129, %v171, 0.0
    %180 = vadd.xlane.f32.xlu0 %v179
    %v181 = vpop.xlane.xlu0 %180
    %v182 = vsel %vm129, %v172, 0.0
    %183 = vadd.xlane.f32.xlu0 %v182
    %v184 = vpop.xlane.xlu0 %183
    %v185 = vsel %vm129, %v173, 0.0
    %186 = vadd.xlane.f32.xlu0 %v185
    %v187 = vpop.xlane.xlu0 %186
    %v188 = vsel %vm129, %v174, 0.0
    %189 = vadd.xlane.f32.xlu0 %v188
    %v190 = vpop.xlane.xlu0 %189
    %v191 = vsel %vm129, %v175, 0.0
    %192 = vadd.xlane.f32.xlu0 %v191
    %v193 = vpop.xlane.xlu0 %192
    %v194 = vsel %vm129, %v176, 0.0
    %195 = vadd.xlane.f32.xlu0 %v194
    %v196 = vpop.xlane.xlu0 %195
    %v197 = vsel %vm129, %v177, 0.0
    %198 = vadd.xlane.f32.xlu0 %v197
    %v199 = vpop.xlane.xlu0 %198
    %v200 = vsel %vm129, %v178, 0.0
    %201 = vadd.xlane.f32.xlu0 %v200
    %v202 = vpop.xlane.xlu0 %201
    %v203 = vmul.f32 %v181, %v154
    %v204 = vmul.f32 %v184, %v154
    %v205 = vmul.f32 %v187, %v154
    %v206 = vmul.f32 %v190, %v154
    %v207 = vmul.f32 %v193, %v154
    %v208 = vmul.f32 %v196, %v154
    %v209 = vmul.f32 %v199, %v154
    %v210 = vmul.f32 %v202, %v154
    %v211 = vadd.f32 %v203, 1e-06
    %v212 = vadd.f32 %v204, 1e-06
    %v213 = vadd.f32 %v205, 1e-06
    %v214 = vadd.f32 %v206, 1e-06
    %v215 = vadd.f32 %v207, 1e-06
    %v216 = vadd.f32 %v208, 1e-06
    %v217 = vadd.f32 %v209, 1e-06
    %v218 = vadd.f32 %v210, 1e-06
    %v219 = vrsqrt.pop %v211
    %v220 = vrsqrt.pop %v212
    %v221 = vrsqrt.pop %v213
    %v222 = vrsqrt.pop %v214
    %v223 = vrsqrt.pop %v215
    %v224 = vrsqrt.pop %v216
    %v225 = vrsqrt.pop %v217
    %v226 = vrsqrt.pop %v218
    %v227 = vmul.f32 %v163, %v219
    %v228 = vmul.f32 %v164, %v220
    %v229 = vmul.f32 %v165, %v221
    %v230 = vmul.f32 %v166, %v222
    %v231 = vmul.f32 %v167, %v223
    %v232 = vmul.f32 %v168, %v224
    %v233 = vmul.f32 %v169, %v225
    %v234 = vmul.f32 %v170, %v226
    %v235 = vld [vmem:[%s5] sm:$0x1]
    %v237 = vlaneseq
    %v238 = vshrl.u32 %v237, 7
    %v239 = vsub.s32 0, %v238
    %v240 = vrot.slane %v235, %v239
    %v242 = vmul.f32 %v227, %v240
    %v243 = vmul.f32 %v228, %v240
    %v244 = vmul.f32 %v229, %v240
    %v245 = vmul.f32 %v230, %v240
    %v246 = vmul.f32 %v231, %v240
    %v247 = vmul.f32 %v232, %v240
    %v248 = vmul.f32 %v233, %v240
    %v249 = vmul.f32 %v234, %v240
    %v250 = vld [vmem:[%s6] sm:$0x1]
    %v252 = vlaneseq
    %v253 = vshrl.u32 %v252, 7
    %v254 = vsub.s32 0, %v253
    %v255 = vrot.slane %v250, %v254
    %v257 = vadd.f32 %v242, %v255
    %v258 = vadd.f32 %v243, %v255
    %v259 = vadd.f32 %v244, %v255
    %v260 = vadd.f32 %v245, %v255
    %v261 = vadd.f32 %v246, %v255
    %v262 = vadd.f32 %v247, %v255
    %v263 = vadd.f32 %v248, %v255
    %v264 = vadd.f32 %v249, %v255
    %v265 = vld [vmem:[%s7] sm:$0xff]
    %v266 = vld [vmem:[%s7 + $0x8] sm:$0xff]
    %v267 = vld [vmem:[%s7 + $0x10] sm:$0xff]
    %v268 = vld [vmem:[%s7 + $0x18] sm:$0xff]
    %v270 = vsel %vm129, %v257, 0
    %v273 = vsel %vm129, %v258, 0
    %v276 = vsel %vm129, %v259, 0
    %v279 = vsel %vm129, %v260, 0
    %v282 = vsel %vm129, %v261, 0
    %v285 = vsel %vm129, %v262, 0
    %v288 = vsel %vm129, %v263, 0
    %v291 = vsel %vm129, %v264, 0
    %293 = vmatprep.subr.mxu0 0.0
    %294 = vmatpush1.msra.mxu0 %v265
    %295 = vmatprep.subr.mxu0 0.0
    %296 = vmatpush1.msra.mxu0 %v266
    %297 = vmatprep.subr.mxu0 0.0
    %298 = vmatpush1.msra.mxu0 %v267
    %299 = vmatprep.subr.mxu0 0.0
    %300 = vmatpush1.msra.mxu0 %v268
    %301 = vmatprep.subr.mxu0 0.0
    %302 = vmatpush1.msra.mxu0 0.0
    %303 = vmatprep.subr.mxu0 0.0
    %304 = vmatpush1.msra.mxu0 0.0
    %305 = vmatprep.subr.mxu0 0.0
    %306 = vmatpush1.msra.mxu0 0.0
    %307 = vmatprep.subr.mxu0 0.0
    %308 = vmatpush1.msra.mxu0 0.0
    %309 = vmatprep.subr.mxu0 0.0
    %310 = vmatpush1.msra.mxu0 0.0
    %311 = vmatprep.subr.mxu0 0.0
    %312 = vmatpush1.msra.mxu0 0.0
    %313 = vmatprep.subr.mxu0 0.0
    %314 = vmatpush1.msra.mxu0 0.0
    %315 = vmatprep.subr.mxu0 0.0
    %316 = vmatpush1.msra.mxu0 0.0
    %317 = vmatprep.subr.mxu0 0.0
    %318 = vmatpush1.msra.mxu0 0.0
    %319 = vmatprep.subr.mxu0 0.0
    %320 = vmatpush1.msra.mxu0 0.0
    %321 = vmatprep.subr.mxu0 0.0
    %322 = vmatpush1.msra.mxu0 0.0
    %323 = vmatprep.subr.mxu0 0.0
    %324 = vmatpush1.msra.mxu0 0.0
    %325 = vmatprep.subr.mxu0 0.0
    %326 = vmatpush1.msra.mxu0 0.0
    %327 = vmatprep.subr.mxu0 0.0
    %328 = vmatpush1.msra.mxu0 0.0
    %329 = vmatprep.subr.mxu0 0.0
    %330 = vmatpush1.msra.mxu0 0.0
    %331 = vmatprep.subr.mxu0 0.0
    %332 = vmatpush1.msra.mxu0 0.0
    %333 = vmatprep.subr.mxu0 0.0
    %334 = vmatpush1.msra.mxu0 0.0
    %335 = vmatprep.subr.mxu0 0.0
    %336 = vmatpush1.msra.mxu0 0.0
    %337 = vmatprep.subr.mxu0 0.0
    %338 = vmatpush1.msra.mxu0 0.0
    %339 = vmatprep.subr.mxu0 0.0
    %340 = vmatpush1.msra.mxu0 0.0
    %341 = vmatprep.subr.mxu0 0.0
    %342 = vmatpush1.msra.mxu0 0.0
    %343 = vmatprep.subr.mxu0 0.0
    %344 = vmatpush1.msra.mxu0 0.0
    %345 = vmatprep.subr.mxu0 0.0
    %346 = vmatpush1.msra.mxu0 0.0
    %347 = vmatprep.subr.mxu0 0.0
    %348 = vmatpush1.msra.mxu0 0.0
    %349 = vmatprep.subr.mxu0 0.0
    %350 = vmatpush1.msra.mxu0 0.0
    %351 = vmatprep.subr.mxu0 0.0
    %352 = vmatpush1.msra.mxu0 0.0
    %353 = vmatprep.subr.mxu0 0.0
    %354 = vmatpush1.msra.mxu0 0.0
    %355 = vmatprep.subr.mxu0 0.0
    %356 = vmatpush1.msra.mxu0 0.0
    %357 = vmatprep.mubr.f32.mxu0 0.0
    %358 = vmatmul.mubr.f32.gmra.mrb[0].mxu0 %v270
    %v359 = vpop.f32.mrb[0].mxu0
    %v360 = vadd.f32 0.0, %v359
    %v361 = vpop.f32.mrb[0].mxu0
    %362 = vmatprep.mubr.f32.mxu0 0.0
    %363 = vmatmul.mubr.f32.gmra.mrb[0].mxu0 %v273
    %v364 = vpop.f32.mrb[0].mxu0
    %v365 = vadd.f32 0.0, %v364
    %v366 = vpop.f32.mrb[0].mxu0
    %367 = vmatprep.mubr.f32.mxu0 0.0
    %368 = vmatmul.mubr.f32.gmra.mrb[0].mxu0 %v276
    %v369 = vpop.f32.mrb[0].mxu0
    %v370 = vadd.f32 0.0, %v369
    %v371 = vpop.f32.mrb[0].mxu0
    %372 = vmatprep.mubr.f32.mxu0 0.0
    %373 = vmatmul.mubr.f32.gmra.mrb[0].mxu0 %v279
    %v374 = vpop.f32.mrb[0].mxu0
    %v375 = vadd.f32 0.0, %v374
    %v376 = vpop.f32.mrb[0].mxu0
    %377 = vmatprep.mubr.f32.mxu0 0.0
    %378 = vmatmul.mubr.f32.gmra.mrb[0].mxu0 %v282
    %v379 = vpop.f32.mrb[0].mxu0
    %v380 = vadd.f32 0.0, %v379
    %v381 = vpop.f32.mrb[0].mxu0
    %382 = vmatprep.mubr.f32.mxu0 0.0
    %383 = vmatmul.mubr.f32.gmra.mrb[0].mxu0 %v285
    %v384 = vpop.f32.mrb[0].mxu0
    %v385 = vadd.f32 0.0, %v384
    %v386 = vpop.f32.mrb[0].mxu0
    %387 = vmatprep.mubr.f32.mxu0 0.0
    %388 = vmatmul.mubr.f32.gmra.mrb[0].mxu0 %v288
    %v389 = vpop.f32.mrb[0].mxu0
    %v390 = vadd.f32 0.0, %v389
    %v391 = vpop.f32.mrb[0].mxu0
    %392 = vmatprep.mubr.f32.mxu0 0.0
    %393 = vmatmul.mubr.f32.gmra.mrb[0].mxu0 %v291
    %v394 = vpop.f32.mrb[0].mxu0
    %v395 = vadd.f32 0.0, %v394
    %v396 = vpop.f32.mrb[0].mxu0
    %397 = vdwg.mxu0
    %398 = vst [vmem:[#allocation2] sm:$0xff] %v360
    %399 = vst [vmem:[#allocation2 + $0x8] sm:$0xff] %v365
    %400 = vst [vmem:[#allocation2 + $0x10] sm:$0xff] %v370
    %401 = vst [vmem:[#allocation2 + $0x18] sm:$0xff] %v375
    %402 = vst [vmem:[#allocation2 + $0x20] sm:$0xff] %v380
    %403 = vst [vmem:[#allocation2 + $0x28] sm:$0xff] %v385
    %404 = vst [vmem:[#allocation2 + $0x30] sm:$0xff] %v390
    %405 = vst [vmem:[#allocation2 + $0x38] sm:$0xff] %v395
    %v406 = vld [vmem:[#allocation4] sm:$0xff]
    %v407 = vld [vmem:[%s8] sm:$0xff]
    %v408 = vld [vmem:[%s8 + $0x8] sm:$0xff]
    %v409 = vld [vmem:[%s8 + $0x10] sm:$0xff]
    %v410 = vld [vmem:[%s8 + $0x18] sm:$0xff]
    %v411 = vld [vmem:[%s9] sm:$0x1]
    %v413 = vlaneseq
    %v414 = vshrl.u32 %v413, 7
    %v415 = vsub.s32 0, %v414
    %v416 = vrot.slane %v411, %v415
    %v419 = vsel %vm129, %v406, 0
    %421 = vmatprep.subr.mxu0 0.0
    %422 = vmatpush1.msra.mxu0 %v407
    %423 = vmatprep.subr.mxu0 0.0
    %424 = vmatpush1.msra.mxu0 %v408
    %425 = vmatprep.subr.mxu0 0.0
    %426 = vmatpush1.msra.mxu0 %v409
    %427 = vmatprep.subr.mxu0 0.0
    %428 = vmatpush1.msra.mxu0 %v410
    %429 = vmatprep.subr.mxu0 0.0
    %430 = vmatpush1.msra.mxu0 0.0
    %431 = vmatprep.subr.mxu0 0.0
    %432 = vmatpush1.msra.mxu0 0.0
    %433 = vmatprep.subr.mxu0 0.0
    %434 = vmatpush1.msra.mxu0 0.0
    %435 = vmatprep.subr.mxu0 0.0
    %436 = vmatpush1.msra.mxu0 0.0
    %437 = vmatprep.subr.mxu0 0.0
    %438 = vmatpush1.msra.mxu0 0.0
    %439 = vmatprep.subr.mxu0 0.0
    %440 = vmatpush1.msra.mxu0 0.0
    %441 = vmatprep.subr.mxu0 0.0
    %442 = vmatpush1.msra.mxu0 0.0
    %443 = vmatprep.subr.mxu0 0.0
    %444 = vmatpush1.msra.mxu0 0.0
    %445 = vmatprep.subr.mxu0 0.0
    %446 = vmatpush1.msra.mxu0 0.0
    %447 = vmatprep.subr.mxu0 0.0
    %448 = vmatpush1.msra.mxu0 0.0
    %449 = vmatprep.subr.mxu0 0.0
    %450 = vmatpush1.msra.mxu0 0.0
    %451 = vmatprep.subr.mxu0 0.0
    %452 = vmatpush1.msra.mxu0 0.0
    %453 = vmatprep.subr.mxu0 0.0
    %454 = vmatpush1.msra.mxu0 0.0
    %455 = vmatprep.subr.mxu0 0.0
    %456 = vmatpush1.msra.mxu0 0.0
    %457 = vmatprep.subr.mxu0 0.0
    %458 = vmatpush1.msra.mxu0 0.0
    %459 = vmatprep.subr.mxu0 0.0
    %460 = vmatpush1.msra.mxu0 0.0
    %461 = vmatprep.subr.mxu0 0.0
    %462 = vmatpush1.msra.mxu0 0.0
    %463 = vmatprep.subr.mxu0 0.0
    %464 = vmatpush1.msra.mxu0 0.0
    %465 = vmatprep.subr.mxu0 0.0
    %466 = vmatpush1.msra.mxu0 0.0
    %467 = vmatprep.subr.mxu0 0.0
    %468 = vmatpush1.msra.mxu0 0.0
    %469 = vmatprep.subr.mxu0 0.0
    %470 = vmatpush1.msra.mxu0 0.0
    %471 = vmatprep.subr.mxu0 0.0
    %472 = vmatpush1.msra.mxu0 0.0
    %473 = vmatprep.subr.mxu0 0.0
    %474 = vmatpush1.msra.mxu0 0.0
    %475 = vmatprep.subr.mxu0 0.0
    %476 = vmatpush1.msra.mxu0 0.0
    %477 = vmatprep.subr.mxu0 0.0
    %478 = vmatpush1.msra.mxu0 0.0
    %479 = vmatprep.subr.mxu0 0.0
    %480 = vmatpush1.msra.mxu0 0.0
    %481 = vmatprep.subr.mxu0 0.0
    %482 = vmatpush1.msra.mxu0 0.0
    %483 = vmatprep.subr.mxu0 0.0
    %484 = vmatpush1.msra.mxu0 0.0
    %485 = vmatprep.mubr.f32.mxu0 0.0
    %486 = vmatmul.mubr.f32.gmra.mrb[0].mxu0 %v419
    %v487 = vpop.f32.mrb[0].mxu0
    %v488 = vadd.f32 %v416, %v487
    %v489 = vpop.f32.mrb[0].mxu0
    %490 = vdwg.mxu0
    %v491 = vld [vmem:[%s2] sm:$0xff]
    %v492 = vld [vmem:[#allocation7] sm:$0xff]
    %v493 = vld [vmem:[#allocation9] sm:$0xff]
    %s494 = scalar_lea.vmem [#allocation7], 8
    %v495 = vld [vmem:[%s494] sm:$0xff]
    %s496 = scalar_lea.vmem [#allocation9], 8
    %v497 = vld [vmem:[%s496] sm:$0xff]
    %vm498 = vcmp.gt.s32.totalorder %v491, 0
    %v499 = vld [vmem:[#allocation2] sm:$0xff]
    %v500 = vadd.f32 %v499, %v488
    %v501 = vld [vmem:[#allocation10] sm:$0xff]
    %v502 = vld [vmem:[#allocation10 + $0x8] sm:$0xff]
    %v503 = vld [vmem:[#allocation10 + $0x10] sm:$0xff]
    %v504 = vld [vmem:[#allocation10 + $0x18] sm:$0xff]
    %v506 = vsel %vm129, %v492, 0
    %508 = vmatprep.subr.mxu0 0.0
    %509 = vmatpush1.msra.mxu0 %v501
    %510 = vmatprep.subr.mxu0 0.0
    %511 = vmatpush1.msra.mxu0 %v502
    %512 = vmatprep.subr.mxu0 0.0
    %513 = vmatpush1.msra.mxu0 %v503
    %514 = vmatprep.subr.mxu0 0.0
    %515 = vmatpush1.msra.mxu0 %v504
    %516 = vmatprep.subr.mxu0 0.0
    %517 = vmatpush1.msra.mxu0 0.0
    %518 = vmatprep.subr.mxu0 0.0
    %519 = vmatpush1.msra.mxu0 0.0
    %520 = vmatprep.subr.mxu0 0.0
    %521 = vmatpush1.msra.mxu0 0.0
    %522 = vmatprep.subr.mxu0 0.0
    %523 = vmatpush1.msra.mxu0 0.0
    %524 = vmatprep.subr.mxu0 0.0
    %525 = vmatpush1.msra.mxu0 0.0
    %526 = vmatprep.subr.mxu0 0.0
    %527 = vmatpush1.msra.mxu0 0.0
    %528 = vmatprep.subr.mxu0 0.0
    %529 = vmatpush1.msra.mxu0 0.0
    %530 = vmatprep.subr.mxu0 0.0
    %531 = vmatpush1.msra.mxu0 0.0
    %532 = vmatprep.subr.mxu0 0.0
    %533 = vmatpush1.msra.mxu0 0.0
    %534 = vmatprep.subr.mxu0 0.0
    %535 = vmatpush1.msra.mxu0 0.0
    %536 = vmatprep.subr.mxu0 0.0
    %537 = vmatpush1.msra.mxu0 0.0
    %538 = vmatprep.subr.mxu0 0.0
    %539 = vmatpush1.msra.mxu0 0.0
    %540 = vmatprep.subr.mxu0 0.0
    %541 = vmatpush1.msra.mxu0 0.0
    %542 = vmatprep.subr.mxu0 0.0
    %543 = vmatpush1.msra.mxu0 0.0
    %544 = vmatprep.subr.mxu0 0.0
    %545 = vmatpush1.msra.mxu0 0.0
    %546 = vmatprep.subr.mxu0 0.0
    %547 = vmatpush1.msra.mxu0 0.0
    %548 = vmatprep.subr.mxu0 0.0
    %549 = vmatpush1.msra.mxu0 0.0
    %550 = vmatprep.subr.mxu0 0.0
    %551 = vmatpush1.msra.mxu0 0.0
    %552 = vmatprep.subr.mxu0 0.0
    %553 = vmatpush1.msra.mxu0 0.0
    %554 = vmatprep.subr.mxu0 0.0
    %555 = vmatpush1.msra.mxu0 0.0
    %556 = vmatprep.subr.mxu0 0.0
    %557 = vmatpush1.msra.mxu0 0.0
    %558 = vmatprep.subr.mxu0 0.0
    %559 = vmatpush1.msra.mxu0 0.0
    %560 = vmatprep.subr.mxu0 0.0
    %561 = vmatpush1.msra.mxu0 0.0
    %562 = vmatprep.subr.mxu0 0.0
    %563 = vmatpush1.msra.mxu0 0.0
    %564 = vmatprep.subr.mxu0 0.0
    %565 = vmatpush1.msra.mxu0 0.0
    %566 = vmatprep.subr.mxu0 0.0
    %567 = vmatpush1.msra.mxu0 0.0
    %568 = vmatprep.subr.mxu0 0.0
    %569 = vmatpush1.msra.mxu0 0.0
    %570 = vmatprep.subr.mxu0 0.0
    %571 = vmatpush1.msra.mxu0 0.0
    %572 = vmatprep.mubr.f32.mxu0 0.0
    %573 = vmatmul.mubr.f32.gmra.mrb[0].mxu0 %v506
    %v574 = vpop.f32.mrb[0].mxu0
    %v575 = vadd.f32 0.0, %v574
    %v576 = vpop.f32.mrb[0].mxu0
    %577 = vdwg.mxu0
    %v578 = vadd.f32 %v500, %v575
    %v579 = vxor.u32 %v578, 2147483648
    %v580 = vmul.f32 %v579, 1.442695
    %v581 = vpow.pop %v580
    %v582 = vadd.f32 %v581, 1.0
    %v583 = vrcp.pop %v582
    %v584 = vmul.f32 1.0, %v583
    %v585 = vtanh.pop %v578
    %587 = vrot.lane.b32.xlu0 %v493, 32
    %v588 = vpop.permute.xlu0 %587
    %v590 = vmul.f32 %v584, %v588
    %592 = vrot.lane.b32.xlu0 %v585, 64
    %v593 = vpop.permute.xlu0 %592
    %v595 = vmul.f32 %v584, %v593
    %597 = vrot.lane.b32.xlu0 %v595, 32
    %v598 = vpop.permute.xlu0 %597
    %v600 = vadd.f32 %v590, %v598
    %v601 = vtanh.pop %v600
    %603 = vrot.lane.b32.xlu0 %v601, 64
    %v604 = vpop.permute.xlu0 %603
    %v606 = vmul.f32 %v584, %v604
    %v607 = vsel %vm498, 1, 0
    %608 = vset.pattern.permute.xlu0 0
    %609 = vperm.xlu0 %608, %v607
    %v610 = vpop.permute.xlu0 %609
    %vm611 = vcmp.eq.s32.totalorder %v610, 1
    %612 = vrot.lane.b32.xlu0 %v492, 96
    %v613 = vpop.permute.xlu0 %612
    %v615 = vsel %vm611, %v606, %v613
    %v616 = vsel %vm611, %v600, %v588
    %618 = vrot.lane.b32.xlu0 %v615, 32
    %v619 = vpop.permute.xlu0 %618
    %622 = vrot.lane.b32.xlu0 %v495, 32
    %v623 = vpop.permute.xlu0 %622
    %v625 = vsel %vm129, %v619, %v623
    %v626 = vld [vmem:[%s11] sm:$0xff]
    %v627 = vld [vmem:[%s11 + $0x8] sm:$0xff]
    %v628 = vld [vmem:[%s11 + $0x10] sm:$0xff]
    %v629 = vld [vmem:[%s11 + $0x18] sm:$0xff]
    %v630 = vld [vmem:[%s11 + $0x20] sm:$0xff]
    %v631 = vld [vmem:[%s11 + $0x28] sm:$0xff]
    %v632 = vld [vmem:[%s11 + $0x30] sm:$0xff]
    %v633 = vld [vmem:[%s11 + $0x38] sm:$0xff]
    %v634 = vld [vmem:[%s12] sm:$0x1]
    %v636 = vlaneseq
    %v637 = vshrl.u32 %v636, 7
    %v638 = vsub.s32 0, %v637
    %v639 = vrot.slane %v634, %v638
    %vm641 = vcmask 523264
    %v643 = vsel %vm641, %v625, 0
    %645 = vmatprep.subr.mxu0 0.0
    %646 = vmatpush1.msra.mxu0 %v626
    %647 = vmatprep.subr.mxu0 0.0
    %648 = vmatpush1.msra.mxu0 %v627
    %649 = vmatprep.subr.mxu0 0.0
    %650 = vmatpush1.msra.mxu0 %v628
    %651 = vmatprep.subr.mxu0 0.0
    %652 = vmatpush1.msra.mxu0 %v629
    %653 = vmatprep.subr.mxu0 0.0
    %654 = vmatpush1.msra.mxu0 %v630
    %655 = vmatprep.subr.mxu0 0.0
    %656 = vmatpush1.msra.mxu0 %v631
    %657 = vmatprep.subr.mxu0 0.0
    %658 = vmatpush1.msra.mxu0 %v632
    %659 = vmatprep.subr.mxu0 0.0
    %660 = vmatpush1.msra.mxu0 %v633
    %661 = vmatprep.subr.mxu0 0.0
    %662 = vmatpush1.msra.mxu0 0.0
    %663 = vmatprep.subr.mxu0 0.0
    %664 = vmatpush1.msra.mxu0 0.0
    %665 = vmatprep.subr.mxu0 0.0
    %666 = vmatpush1.msra.mxu0 0.0
    %667 = vmatprep.subr.mxu0 0.0
    %668 = vmatpush1.msra.mxu0 0.0
    %669 = vmatprep.subr.mxu0 0.0
    %670 = vmatpush1.msra.mxu0 0.0
    %671 = vmatprep.subr.mxu0 0.0
    %672 = vmatpush1.msra.mxu0 0.0
    %673 = vmatprep.subr.mxu0 0.0
    %674 = vmatpush1.msra.mxu0 0.0
    %675 = vmatprep.subr.mxu0 0.0
    %676 = vmatpush1.msra.mxu0 0.0
    %677 = vmatprep.subr.mxu0 0.0
    %678 = vmatpush1.msra.mxu0 0.0
    %679 = vmatprep.subr.mxu0 0.0
    %680 = vmatpush1.msra.mxu0 0.0
    %681 = vmatprep.subr.mxu0 0.0
    %682 = vmatpush1.msra.mxu0 0.0
    %683 = vmatprep.subr.mxu0 0.0
    %684 = vmatpush1.msra.mxu0 0.0
    %685 = vmatprep.subr.mxu0 0.0
    %686 = vmatpush1.msra.mxu0 0.0
    %687 = vmatprep.subr.mxu0 0.0
    %688 = vmatpush1.msra.mxu0 0.0
    %689 = vmatprep.subr.mxu0 0.0
    %690 = vmatpush1.msra.mxu0 0.0
    %691 = vmatprep.subr.mxu0 0.0
    %692 = vmatpush1.msra.mxu0 0.0
    %693 = vmatprep.subr.mxu0 0.0
    %694 = vmatpush1.msra.mxu0 0.0
    %695 = vmatprep.subr.mxu0 0.0
    %696 = vmatpush1.msra.mxu0 0.0
    %697 = vmatprep.subr.mxu0 0.0
    %698 = vmatpush1.msra.mxu0 0.0
    %699 = vmatprep.subr.mxu0 0.0
    %700 = vmatpush1.msra.mxu0 0.0
    %701 = vmatprep.subr.mxu0 0.0
    %702 = vmatpush1.msra.mxu0 0.0
    %703 = vmatprep.subr.mxu0 0.0
    %704 = vmatpush1.msra.mxu0 0.0
    %705 = vmatprep.subr.mxu0 0.0
    %706 = vmatpush1.msra.mxu0 0.0
    %707 = vmatprep.subr.mxu0 0.0
    %708 = vmatpush1.msra.mxu0 0.0
    %709 = vmatprep.mubr.f32.mxu0 0.0
    %710 = vmatmul.mubr.f32.gmra.mrb[0].mxu0 %v643
    %v711 = vpop.f32.mrb[0].mxu0
    %v712 = vadd.f32 %v639, %v711
    %v713 = vpop.f32.mrb[0].mxu0
    %714 = vdwg.mxu0
    %v715 = vxor.u32 %v712, 2147483648
    %v716 = vmul.f32 %v715, 1.442695
    %v717 = vpow.pop %v716
    %v718 = vadd.f32 %v717, 1.0
    %v719 = vrcp.pop %v718
    %v720 = vmul.f32 1.0, %v719
    %v721 = vtanh.pop %v712
    %723 = vrot.lane.b32.xlu0 %v497, 32
    %v724 = vpop.permute.xlu0 %723
    %v726 = vmul.f32 %v720, %v724
    %728 = vrot.lane.b32.xlu0 %v721, 64
    %v729 = vpop.permute.xlu0 %728
    %v731 = vmul.f32 %v720, %v729
    %733 = vrot.lane.b32.xlu0 %v731, 32
    %v734 = vpop.permute.xlu0 %733
    %v736 = vadd.f32 %v726, %v734
    %v737 = vtanh.pop %v736
    %739 = vrot.lane.b32.xlu0 %v737, 64
    %v740 = vpop.permute.xlu0 %739
    %v742 = vmul.f32 %v720, %v740
    %743 = vrot.lane.b32.xlu0 %v495, 96
    %v744 = vpop.permute.xlu0 %743
    %v746 = vsel %vm611, %v742, %v744
    %v747 = vsel %vm611, %v736, %v724
    %749 = vrot.lane.b32.xlu0 %v746, 32
    %v750 = vpop.permute.xlu0 %749
    %752 = vst.msk [vmem:[#allocation3] sm:$0xff] %vm129, %v750
    %vm753 = vcmp.gt.s32.totalorder %v491, 1
    %s754 = scalar_lea.vmem [#allocation2], 8
    %v755 = vld [vmem:[%s754] sm:$0xff]
    %v756 = vadd.f32 %v755, %v488
    %v757 = vld [vmem:[#allocation10] sm:$0xff]
    %v758 = vld [vmem:[#allocation10 + $0x8] sm:$0xff]
    %v759 = vld [vmem:[#allocation10 + $0x10] sm:$0xff]
    %v760 = vld [vmem:[#allocation10 + $0x18] sm:$0xff]
    %v761 = vsel %vm129, %v619, 0
    %763 = vmatprep.subr.mxu0 0.0
    %764 = vmatpush1.msra.mxu0 %v757
    %765 = vmatprep.subr.mxu0 0.0
    %766 = vmatpush1.msra.mxu0 %v758
    %767 = vmatprep.subr.mxu0 0.0
    %768 = vmatpush1.msra.mxu0 %v759
    %769 = vmatprep.subr.mxu0 0.0
    %770 = vmatpush1.msra.mxu0 %v760
    %771 = vmatprep.subr.mxu0 0.0
    %772 = vmatpush1.msra.mxu0 0.0
    %773 = vmatprep.subr.mxu0 0.0
    %774 = vmatpush1.msra.mxu0 0.0
    %775 = vmatprep.subr.mxu0 0.0
    %776 = vmatpush1.msra.mxu0 0.0
    %777 = vmatprep.subr.mxu0 0.0
    %778 = vmatpush1.msra.mxu0 0.0
    %779 = vmatprep.subr.mxu0 0.0
    %780 = vmatpush1.msra.mxu0 0.0
    %781 = vmatprep.subr.mxu0 0.0
    %782 = vmatpush1.msra.mxu0 0.0
    %783 = vmatprep.subr.mxu0 0.0
    %784 = vmatpush1.msra.mxu0 0.0
    %785 = vmatprep.subr.mxu0 0.0
    %786 = vmatpush1.msra.mxu0 0.0
    %787 = vmatprep.subr.mxu0 0.0
    %788 = vmatpush1.msra.mxu0 0.0
    %789 = vmatprep.subr.mxu0 0.0
    %790 = vmatpush1.msra.mxu0 0.0
    %791 = vmatprep.subr.mxu0 0.0
    %792 = vmatpush1.msra.mxu0 0.0
    %793 = vmatprep.subr.mxu0 0.0
    %794 = vmatpush1.msra.mxu0 0.0
    %795 = vmatprep.subr.mxu0 0.0
    %796 = vmatpush1.msra.mxu0 0.0
    %797 = vmatprep.subr.mxu0 0.0
    %798 = vmatpush1.msra.mxu0 0.0
    %799 = vmatprep.subr.mxu0 0.0
    %800 = vmatpush1.msra.mxu0 0.0
    %801 = vmatprep.subr.mxu0 0.0
    %802 = vmatpush1.msra.mxu0 0.0
    %803 = vmatprep.subr.mxu0 0.0
    %804 = vmatpush1.msra.mxu0 0.0
    %805 = vmatprep.subr.mxu0 0.0
    %806 = vmatpush1.msra.mxu0 0.0
    %807 = vmatprep.subr.mxu0 0.0
    %808 = vmatpush1.msra.mxu0 0.0
    %809 = vmatprep.subr.mxu0 0.0
    %810 = vmatpush1.msra.mxu0 0.0
    %811 = vmatprep.subr.mxu0 0.0
    %812 = vmatpush1.msra.mxu0 0.0
    %813 = vmatprep.subr.mxu0 0.0
    %814 = vmatpush1.msra.mxu0 0.0
    %815 = vmatprep.subr.mxu0 0.0
    %816 = vmatpush1.msra.mxu0 0.0
    %817 = vmatprep.subr.mxu0 0.0
    %818 = vmatpush1.msra.mxu0 0.0
    %819 = vmatprep.subr.mxu0 0.0
    %820 = vmatpush1.msra.mxu0 0.0
    %821 = vmatprep.subr.mxu0 0.0
    %822 = vmatpush1.msra.mxu0 0.0
    %823 = vmatprep.subr.mxu0 0.0
    %824 = vmatpush1.msra.mxu0 0.0
    %825 = vmatprep.subr.mxu0 0.0
    %826 = vmatpush1.msra.mxu0 0.0
    %827 = vmatprep.mubr.f32.mxu0 0.0
    %828 = vmatmul.mubr.f32.gmra.mrb[0].mxu0 %v761
    %v829 = vpop.f32.mrb[0].mxu0
    %v830 = vadd.f32 0.0, %v829
    %v831 = vpop.f32.mrb[0].mxu0
    %832 = vdwg.mxu0
    %v833 = vadd.f32 %v756, %v830
    %v834 = vxor.u32 %v833, 2147483648
    %v835 = vmul.f32 %v834, 1.442695
    %v836 = vpow.pop %v835
    %v837 = vadd.f32 %v836, 1.0
    %v838 = vrcp.pop %v837
    %v839 = vmul.f32 1.0, %v838
    %v840 = vtanh.pop %v833
    %v841 = vmul.f32 %v839, %v616
    %843 = vrot.lane.b32.xlu0 %v840, 64
    %v844 = vpop.permute.xlu0 %843
    %v846 = vmul.f32 %v839, %v844
    %848 = vrot.lane.b32.xlu0 %v846, 32
    %v849 = vpop.permute.xlu0 %848
    %v851 = vadd.f32 %v841, %v849
    %v852 = vtanh.pop %v851
    %854 = vrot.lane.b32.xlu0 %v852, 64
    %v855 = vpop.permute.xlu0 %854
    %v857 = vmul.f32 %v839, %v855
    %v858 = vsel %vm753, 1, 0
    %859 = vset.pattern.permute.xlu0 0
    %860 = vperm.xlu0 %859, %v858
    %v861 = vpop.permute.xlu0 %860
    %vm862 = vcmp.eq.s32.totalorder %v861, 1
    %v863 = vsel %vm862, %v857, %v615
    %v864 = vsel %vm862, %v851, %v616
    %866 = vrot.lane.b32.xlu0 %v863, 32
    %v867 = vpop.permute.xlu0 %866
    %869 = vrot.lane.b32.xlu0 %v746, 64
    %v870 = vpop.permute.xlu0 %869
    %v872 = vsel %vm129, %v867, %v870
    %v873 = vld [vmem:[%s11] sm:$0xff]
    %v874 = vld [vmem:[%s11 + $0x8] sm:$0xff]
    %v875 = vld [vmem:[%s11 + $0x10] sm:$0xff]
    %v876 = vld [vmem:[%s11 + $0x18] sm:$0xff]
    %v877 = vld [vmem:[%s11 + $0x20] sm:$0xff]
    %v878 = vld [vmem:[%s11 + $0x28] sm:$0xff]
    %v879 = vld [vmem:[%s11 + $0x30] sm:$0xff]
    %v880 = vld [vmem:[%s11 + $0x38] sm:$0xff]
    %v881 = vld [vmem:[%s12] sm:$0x1]
    %v883 = vlaneseq
    %v884 = vshrl.u32 %v883, 7
    %v885 = vsub.s32 0, %v884
    %v886 = vrot.slane %v881, %v885
    %v889 = vsel %vm641, %v872, 0
    %891 = vmatprep.subr.mxu0 0.0
    %892 = vmatpush1.msra.mxu0 %v873
    %893 = vmatprep.subr.mxu0 0.0
    %894 = vmatpush1.msra.mxu0 %v874
    %895 = vmatprep.subr.mxu0 0.0
    %896 = vmatpush1.msra.mxu0 %v875
    %897 = vmatprep.subr.mxu0 0.0
    %898 = vmatpush1.msra.mxu0 %v876
    %899 = vmatprep.subr.mxu0 0.0
    %900 = vmatpush1.msra.mxu0 %v877
    %901 = vmatprep.subr.mxu0 0.0
    %902 = vmatpush1.msra.mxu0 %v878
    %903 = vmatprep.subr.mxu0 0.0
    %904 = vmatpush1.msra.mxu0 %v879
    %905 = vmatprep.subr.mxu0 0.0
    %906 = vmatpush1.msra.mxu0 %v880
    %907 = vmatprep.subr.mxu0 0.0
    %908 = vmatpush1.msra.mxu0 0.0
    %909 = vmatprep.subr.mxu0 0.0
    %910 = vmatpush1.msra.mxu0 0.0
    %911 = vmatprep.subr.mxu0 0.0
    %912 = vmatpush1.msra.mxu0 0.0
    %913 = vmatprep.subr.mxu0 0.0
    %914 = vmatpush1.msra.mxu0 0.0
    %915 = vmatprep.subr.mxu0 0.0
    %916 = vmatpush1.msra.mxu0 0.0
    %917 = vmatprep.subr.mxu0 0.0
    %918 = vmatpush1.msra.mxu0 0.0
    %919 = vmatprep.subr.mxu0 0.0
    %920 = vmatpush1.msra.mxu0 0.0
    %921 = vmatprep.subr.mxu0 0.0
    %922 = vmatpush1.msra.mxu0 0.0
    %923 = vmatprep.subr.mxu0 0.0
    %924 = vmatpush1.msra.mxu0 0.0
    %925 = vmatprep.subr.mxu0 0.0
    %926 = vmatpush1.msra.mxu0 0.0
    %927 = vmatprep.subr.mxu0 0.0
    %928 = vmatpush1.msra.mxu0 0.0
    %929 = vmatprep.subr.mxu0 0.0
    %930 = vmatpush1.msra.mxu0 0.0
    %931 = vmatprep.subr.mxu0 0.0
    %932 = vmatpush1.msra.mxu0 0.0
    %933 = vmatprep.subr.mxu0 0.0
    %934 = vmatpush1.msra.mxu0 0.0
    %935 = vmatprep.subr.mxu0 0.0
    %936 = vmatpush1.msra.mxu0 0.0
    %937 = vmatprep.subr.mxu0 0.0
    %938 = vmatpush1.msra.mxu0 0.0
    %939 = vmatprep.subr.mxu0 0.0
    %940 = vmatpush1.msra.mxu0 0.0
    %941 = vmatprep.subr.mxu0 0.0
    %942 = vmatpush1.msra.mxu0 0.0
    %943 = vmatprep.subr.mxu0 0.0
    %944 = vmatpush1.msra.mxu0 0.0
    %945 = vmatprep.subr.mxu0 0.0
    %946 = vmatpush1.msra.mxu0 0.0
    %947 = vmatprep.subr.mxu0 0.0
    %948 = vmatpush1.msra.mxu0 0.0
    %949 = vmatprep.subr.mxu0 0.0
    %950 = vmatpush1.msra.mxu0 0.0
    %951 = vmatprep.subr.mxu0 0.0
    %952 = vmatpush1.msra.mxu0 0.0
    %953 = vmatprep.subr.mxu0 0.0
    %954 = vmatpush1.msra.mxu0 0.0
    %955 = vmatprep.mubr.f32.mxu0 0.0
    %956 = vmatmul.mubr.f32.gmra.mrb[0].mxu0 %v889
    %v957 = vpop.f32.mrb[0].mxu0
    %v958 = vadd.f32 %v886, %v957
    %v959 = vpop.f32.mrb[0].mxu0
    %960 = vdwg.mxu0
    %v961 = vxor.u32 %v958, 2147483648
    %v962 = vmul.f32 %v961, 1.442695
    %v963 = vpow.pop %v962
    %v964 = vadd.f32 %v963, 1.0
    %v965 = vrcp.pop %v964
    %v966 = vmul.f32 1.0, %v965
    %v967 = vtanh.pop %v958
    %v968 = vmul.f32 %v966, %v747
    %970 = vrot.lane.b32.xlu0 %v967, 64
    %v971 = vpop.permute.xlu0 %970
    %v973 = vmul.f32 %v966, %v971
    %975 = vrot.lane.b32.xlu0 %v973, 32
    %v976 = vpop.permute.xlu0 %975
    %v978 = vadd.f32 %v968, %v976
    %v979 = vtanh.pop %v978
    %981 = vrot.lane.b32.xlu0 %v979, 64
    %v982 = vpop.permute.xlu0 %981
    %v984 = vmul.f32 %v966, %v982
    %v985 = vsel %vm862, %v984, %v746
    %v986 = vsel %vm862, %v978, %v747
    %988 = vrot.lane.b32.xlu0 %v985, 32
    %v989 = vpop.permute.xlu0 %988
    %s991 = scalar_lea.vmem [#allocation3], 8
    %992 = vst.msk [vmem:[%s991] sm:$0xff] %vm129, %v989
    %vm993 = vcmp.gt.s32.totalorder %v491, 2
    %s994 = scalar_lea.vmem [#allocation2], 16
    %v995 = vld [vmem:[%s994] sm:$0xff]
    %v996 = vadd.f32 %v995, %v488
    %v997 = vld [vmem:[#allocation10] sm:$0xff]
    %v998 = vld [vmem:[#allocation10 + $0x8] sm:$0xff]
    %v999 = vld [vmem:[#allocation10 + $0x10] sm:$0xff]
    %v1000 = vld [vmem:[#allocation10 + $0x18] sm:$0xff]
    %v1001 = vsel %vm129, %v867, 0
    %1003 = vmatprep.subr.mxu0 0.0
    %1004 = vmatpush1.msra.mxu0 %v997
    %1005 = vmatprep.subr.mxu0 0.0
    %1006 = vmatpush1.msra.mxu0 %v998
    %1007 = vmatprep.subr.mxu0 0.0
    %1008 = vmatpush1.msra.mxu0 %v999
    %1009 = vmatprep.subr.mxu0 0.0
    %1010 = vmatpush1.msra.mxu0 %v1000
    %1011 = vmatprep.subr.mxu0 0.0
    %1012 = vmatpush1.msra.mxu0 0.0
    %1013 = vmatprep.subr.mxu0 0.0
    %1014 = vmatpush1.msra.mxu0 0.0
    %1015 = vmatprep.subr.mxu0 0.0
    %1016 = vmatpush1.msra.mxu0 0.0
    %1017 = vmatprep.subr.mxu0 0.0
    %1018 = vmatpush1.msra.mxu0 0.0
    %1019 = vmatprep.subr.mxu0 0.0
    %1020 = vmatpush1.msra.mxu0 0.0
    %1021 = vmatprep.subr.mxu0 0.0
    %1022 = vmatpush1.msra.mxu0 0.0
    %1023 = vmatprep.subr.mxu0 0.0
    %1024 = vmatpush1.msra.mxu0 0.0
    %1025 = vmatprep.subr.mxu0 0.0
    %1026 = vmatpush1.msra.mxu0 0.0
    %1027 = vmatprep.subr.mxu0 0.0
    %1028 = vmatpush1.msra.mxu0 0.0
    %1029 = vmatprep.subr.mxu0 0.0
    %1030 = vmatpush1.msra.mxu0 0.0
    %1031 = vmatprep.subr.mxu0 0.0
    %1032 = vmatpush1.msra.mxu0 0.0
    %1033 = vmatprep.subr.mxu0 0.0
    %1034 = vmatpush1.msra.mxu0 0.0
    %1035 = vmatprep.subr.mxu0 0.0
    %1036 = vmatpush1.msra.mxu0 0.0
    %1037 = vmatprep.subr.mxu0 0.0
    %1038 = vmatpush1.msra.mxu0 0.0
    %1039 = vmatprep.subr.mxu0 0.0
    %1040 = vmatpush1.msra.mxu0 0.0
    %1041 = vmatprep.subr.mxu0 0.0
    %1042 = vmatpush1.msra.mxu0 0.0
    %1043 = vmatprep.subr.mxu0 0.0
    %1044 = vmatpush1.msra.mxu0 0.0
    %1045 = vmatprep.subr.mxu0 0.0
    %1046 = vmatpush1.msra.mxu0 0.0
    %1047 = vmatprep.subr.mxu0 0.0
    %1048 = vmatpush1.msra.mxu0 0.0
    %1049 = vmatprep.subr.mxu0 0.0
    %1050 = vmatpush1.msra.mxu0 0.0
    %1051 = vmatprep.subr.mxu0 0.0
    %1052 = vmatpush1.msra.mxu0 0.0
    %1053 = vmatprep.subr.mxu0 0.0
    %1054 = vmatpush1.msra.mxu0 0.0
    %1055 = vmatprep.subr.mxu0 0.0
    %1056 = vmatpush1.msra.mxu0 0.0
    %1057 = vmatprep.subr.mxu0 0.0
    %1058 = vmatpush1.msra.mxu0 0.0
    %1059 = vmatprep.subr.mxu0 0.0
    %1060 = vmatpush1.msra.mxu0 0.0
    %1061 = vmatprep.subr.mxu0 0.0
    %1062 = vmatpush1.msra.mxu0 0.0
    %1063 = vmatprep.subr.mxu0 0.0
    %1064 = vmatpush1.msra.mxu0 0.0
    %1065 = vmatprep.subr.mxu0 0.0
    %1066 = vmatpush1.msra.mxu0 0.0
    %1067 = vmatprep.mubr.f32.mxu0 0.0
    %1068 = vmatmul.mubr.f32.gmra.mrb[0].mxu0 %v1001
    %v1069 = vpop.f32.mrb[0].mxu0
    %v1070 = vadd.f32 0.0, %v1069
    %v1071 = vpop.f32.mrb[0].mxu0
    %1072 = vdwg.mxu0
    %v1073 = vadd.f32 %v996, %v1070
    %v1074 = vxor.u32 %v1073, 2147483648
    %v1075 = vmul.f32 %v1074, 1.442695
    %v1076 = vpow.pop %v1075
    %v1077 = vadd.f32 %v1076, 1.0
    %v1078 = vrcp.pop %v1077
    %v1079 = vmul.f32 1.0, %v1078
    %v1080 = vtanh.pop %v1073
    %v1081 = vmul.f32 %v1079, %v864
    %1083 = vrot.lane.b32.xlu0 %v1080, 64
    %v1084 = vpop.permute.xlu0 %1083
    %v1086 = vmul.f32 %v1079, %v1084
    %1088 = vrot.lane.b32.xlu0 %v1086, 32
    %v1089 = vpop.permute.xlu0 %1088
    %v1091 = vadd.f32 %v1081, %v1089
    %v1092 = vtanh.pop %v1091
    %1094 = vrot.lane.b32.xlu0 %v1092, 64
    %v1095 = vpop.permute.xlu0 %1094
    %v1097 = vmul.f32 %v1079, %v1095
    %v1098 = vsel %vm993, 1, 0
    %1099 = vset.pattern.permute.xlu0 0
    %1100 = vperm.xlu0 %1099, %v1098
    %v1101 = vpop.permute.xlu0 %1100
    %vm1102 = vcmp.eq.s32.totalorder %v1101, 1
    %v1103 = vsel %vm1102, %v1097, %v863
    %v1104 = vsel %vm1102, %v1091, %v864
    %1106 = vrot.lane.b32.xlu0 %v1103, 32
    %v1107 = vpop.permute.xlu0 %1106
    %1109 = vrot.lane.b32.xlu0 %v985, 64
    %v1110 = vpop.permute.xlu0 %1109
    %v1112 = vsel %vm129, %v1107, %v1110
    %v1113 = vld [vmem:[%s11] sm:$0xff]
    %v1114 = vld [vmem:[%s11 + $0x8] sm:$0xff]
    %v1115 = vld [vmem:[%s11 + $0x10] sm:$0xff]
    %v1116 = vld [vmem:[%s11 + $0x18] sm:$0xff]
    %v1117 = vld [vmem:[%s11 + $0x20] sm:$0xff]
    %v1118 = vld [vmem:[%s11 + $0x28] sm:$0xff]
    %v1119 = vld [vmem:[%s11 + $0x30] sm:$0xff]
    %v1120 = vld [vmem:[%s11 + $0x38] sm:$0xff]
    %v1121 = vld [vmem:[%s12] sm:$0x1]
    %v1123 = vlaneseq
    %v1124 = vshrl.u32 %v1123, 7
    %v1125 = vsub.s32 0, %v1124
    %v1126 = vrot.slane %v1121, %v1125
    %v1129 = vsel %vm641, %v1112, 0
    %1131 = vmatprep.subr.mxu0 0.0
    %1132 = vmatpush1.msra.mxu0 %v1113
    %1133 = vmatprep.subr.mxu0 0.0
    %1134 = vmatpush1.msra.mxu0 %v1114
    %1135 = vmatprep.subr.mxu0 0.0
    %1136 = vmatpush1.msra.mxu0 %v1115
    %1137 = vmatprep.subr.mxu0 0.0
    %1138 = vmatpush1.msra.mxu0 %v1116
    %1139 = vmatprep.subr.mxu0 0.0
    %1140 = vmatpush1.msra.mxu0 %v1117
    %1141 = vmatprep.subr.mxu0 0.0
    %1142 = vmatpush1.msra.mxu0 %v1118
    %1143 = vmatprep.subr.mxu0 0.0
    %1144 = vmatpush1.msra.mxu0 %v1119
    %1145 = vmatprep.subr.mxu0 0.0
    %1146 = vmatpush1.msra.mxu0 %v1120
    %1147 = vmatprep.subr.mxu0 0.0
    %1148 = vmatpush1.msra.mxu0 0.0
    %1149 = vmatprep.subr.mxu0 0.0
    %1150 = vmatpush1.msra.mxu0 0.0
    %1151 = vmatprep.subr.mxu0 0.0
    %1152 = vmatpush1.msra.mxu0 0.0
    %1153 = vmatprep.subr.mxu0 0.0
    %1154 = vmatpush1.msra.mxu0 0.0
    %1155 = vmatprep.subr.mxu0 0.0
    %1156 = vmatpush1.msra.mxu0 0.0
    %1157 = vmatprep.subr.mxu0 0.0
    %1158 = vmatpush1.msra.mxu0 0.0
    %1159 = vmatprep.subr.mxu0 0.0
    %1160 = vmatpush1.msra.mxu0 0.0
    %1161 = vmatprep.subr.mxu0 0.0
    %1162 = vmatpush1.msra.mxu0 0.0
    %1163 = vmatprep.subr.mxu0 0.0
    %1164 = vmatpush1.msra.mxu0 0.0
    %1165 = vmatprep.subr.mxu0 0.0
    %1166 = vmatpush1.msra.mxu0 0.0
    %1167 = vmatprep.subr.mxu0 0.0
    %1168 = vmatpush1.msra.mxu0 0.0
    %1169 = vmatprep.subr.mxu0 0.0
    %1170 = vmatpush1.msra.mxu0 0.0
    %1171 = vmatprep.subr.mxu0 0.0
    %1172 = vmatpush1.msra.mxu0 0.0
    %1173 = vmatprep.subr.mxu0 0.0
    %1174 = vmatpush1.msra.mxu0 0.0
    %1175 = vmatprep.subr.mxu0 0.0
    %1176 = vmatpush1.msra.mxu0 0.0
    %1177 = vmatprep.subr.mxu0 0.0
    %1178 = vmatpush1.msra.mxu0 0.0
    %1179 = vmatprep.subr.mxu0 0.0
    %1180 = vmatpush1.msra.mxu0 0.0
    %1181 = vmatprep.subr.mxu0 0.0
    %1182 = vmatpush1.msra.mxu0 0.0
    %1183 = vmatprep.subr.mxu0 0.0
    %1184 = vmatpush1.msra.mxu0 0.0
    %1185 = vmatprep.subr.mxu0 0.0
    %1186 = vmatpush1.msra.mxu0 0.0
    %1187 = vmatprep.subr.mxu0 0.0
    %1188 = vmatpush1.msra.mxu0 0.0
    %1189 = vmatprep.subr.mxu0 0.0
    %1190 = vmatpush1.msra.mxu0 0.0
    %1191 = vmatprep.subr.mxu0 0.0
    %1192 = vmatpush1.msra.mxu0 0.0
    %1193 = vmatprep.subr.mxu0 0.0
    %1194 = vmatpush1.msra.mxu0 0.0
    %1195 = vmatprep.mubr.f32.mxu0 0.0
    %1196 = vmatmul.mubr.f32.gmra.mrb[0].mxu0 %v1129
    %v1197 = vpop.f32.mrb[0].mxu0
    %v1198 = vadd.f32 %v1126, %v1197
    %v1199 = vpop.f32.mrb[0].mxu0
    %1200 = vdwg.mxu0
    %v1201 = vxor.u32 %v1198, 2147483648
    %v1202 = vmul.f32 %v1201, 1.442695
    %v1203 = vpow.pop %v1202
    %v1204 = vadd.f32 %v1203, 1.0
    %v1205 = vrcp.pop %v1204
    %v1206 = vmul.f32 1.0, %v1205
    %v1207 = vtanh.pop %v1198
    %v1208 = vmul.f32 %v1206, %v986
    %1210 = vrot.lane.b32.xlu0 %v1207, 64
    %v1211 = vpop.permute.xlu0 %1210
    %v1213 = vmul.f32 %v1206, %v1211
    %1215 = vrot.lane.b32.xlu0 %v1213, 32
    %v1216 = vpop.permute.xlu0 %1215
    %v1218 = vadd.f32 %v1208, %v1216
    %v1219 = vtanh.pop %v1218
    %1221 = vrot.lane.b32.xlu0 %v1219, 64
    %v1222 = vpop.permute.xlu0 %1221
    %v1224 = vmul.f32 %v1206, %v1222
    %v1225 = vsel %vm1102, %v1224, %v985
    %v1226 = vsel %vm1102, %v1218, %v986
    %1228 = vrot.lane.b32.xlu0 %v1225, 32
    %v1229 = vpop.permute.xlu0 %1228
    %s1231 = scalar_lea.vmem [#allocation3], 16
    %1232 = vst.msk [vmem:[%s1231] sm:$0xff] %vm129, %v1229
    %vm1233 = vcmp.gt.s32.totalorder %v491, 3
    %s1234 = scalar_lea.vmem [#allocation2], 24
    %v1235 = vld [vmem:[%s1234] sm:$0xff]
    %v1236 = vadd.f32 %v1235, %v488
    %v1237 = vld [vmem:[#allocation10] sm:$0xff]
    %v1238 = vld [vmem:[#allocation10 + $0x8] sm:$0xff]
    %v1239 = vld [vmem:[#allocation10 + $0x10] sm:$0xff]
    %v1240 = vld [vmem:[#allocation10 + $0x18] sm:$0xff]
    %v1241 = vsel %vm129, %v1107, 0
    %1243 = vmatprep.subr.mxu0 0.0
    %1244 = vmatpush1.msra.mxu0 %v1237
    %1245 = vmatprep.subr.mxu0 0.0
    %1246 = vmatpush1.msra.mxu0 %v1238
    %1247 = vmatprep.subr.mxu0 0.0
    %1248 = vmatpush1.msra.mxu0 %v1239
    %1249 = vmatprep.subr.mxu0 0.0
    %1250 = vmatpush1.msra.mxu0 %v1240
    %1251 = vmatprep.subr.mxu0 0.0
    %1252 = vmatpush1.msra.mxu0 0.0
    %1253 = vmatprep.subr.mxu0 0.0
    %1254 = vmatpush1.msra.mxu0 0.0
    %1255 = vmatprep.subr.mxu0 0.0
    %1256 = vmatpush1.msra.mxu0 0.0
    %1257 = vmatprep.subr.mxu0 0.0
    %1258 = vmatpush1.msra.mxu0 0.0
    %1259 = vmatprep.subr.mxu0 0.0
    %1260 = vmatpush1.msra.mxu0 0.0
    %1261 = vmatprep.subr.mxu0 0.0
    %1262 = vmatpush1.msra.mxu0 0.0
    %1263 = vmatprep.subr.mxu0 0.0
    %1264 = vmatpush1.msra.mxu0 0.0
    %1265 = vmatprep.subr.mxu0 0.0
    %1266 = vmatpush1.msra.mxu0 0.0
    %1267 = vmatprep.subr.mxu0 0.0
    %1268 = vmatpush1.msra.mxu0 0.0
    %1269 = vmatprep.subr.mxu0 0.0
    %1270 = vmatpush1.msra.mxu0 0.0
    %1271 = vmatprep.subr.mxu0 0.0
    %1272 = vmatpush1.msra.mxu0 0.0
    %1273 = vmatprep.subr.mxu0 0.0
    %1274 = vmatpush1.msra.mxu0 0.0
    %1275 = vmatprep.subr.mxu0 0.0
    %1276 = vmatpush1.msra.mxu0 0.0
    %1277 = vmatprep.subr.mxu0 0.0
    %1278 = vmatpush1.msra.mxu0 0.0
    %1279 = vmatprep.subr.mxu0 0.0
    %1280 = vmatpush1.msra.mxu0 0.0
    %1281 = vmatprep.subr.mxu0 0.0
    %1282 = vmatpush1.msra.mxu0 0.0
    %1283 = vmatprep.subr.mxu0 0.0
    %1284 = vmatpush1.msra.mxu0 0.0
    %1285 = vmatprep.subr.mxu0 0.0
    %1286 = vmatpush1.msra.mxu0 0.0
    %1287 = vmatprep.subr.mxu0 0.0
    %1288 = vmatpush1.msra.mxu0 0.0
    %1289 = vmatprep.subr.mxu0 0.0
    %1290 = vmatpush1.msra.mxu0 0.0
    %1291 = vmatprep.subr.mxu0 0.0
    %1292 = vmatpush1.msra.mxu0 0.0
    %1293 = vmatprep.subr.mxu0 0.0
    %1294 = vmatpush1.msra.mxu0 0.0
    %1295 = vmatprep.subr.mxu0 0.0
    %1296 = vmatpush1.msra.mxu0 0.0
    %1297 = vmatprep.subr.mxu0 0.0
    %1298 = vmatpush1.msra.mxu0 0.0
    %1299 = vmatprep.subr.mxu0 0.0
    %1300 = vmatpush1.msra.mxu0 0.0
    %1301 = vmatprep.subr.mxu0 0.0
    %1302 = vmatpush1.msra.mxu0 0.0
    %1303 = vmatprep.subr.mxu0 0.0
    %1304 = vmatpush1.msra.mxu0 0.0
    %1305 = vmatprep.subr.mxu0 0.0
    %1306 = vmatpush1.msra.mxu0 0.0
    %1307 = vmatprep.mubr.f32.mxu0 0.0
    %1308 = vmatmul.mubr.f32.gmra.mrb[0].mxu0 %v1241
    %v1309 = vpop.f32.mrb[0].mxu0
    %v1310 = vadd.f32 0.0, %v1309
    %v1311 = vpop.f32.mrb[0].mxu0
    %1312 = vdwg.mxu0
    %v1313 = vadd.f32 %v1236, %v1310
    %v1314 = vxor.u32 %v1313, 2147483648
    %v1315 = vmul.f32 %v1314, 1.442695
    %v1316 = vpow.pop %v1315
    %v1317 = vadd.f32 %v1316, 1.0
    %v1318 = vrcp.pop %v1317
    %v1319 = vmul.f32 1.0, %v1318
    %v1320 = vtanh.pop %v1313
    %v1321 = vmul.f32 %v1319, %v1104
    %1323 = vrot.lane.b32.xlu0 %v1320, 64
    %v1324 = vpop.permute.xlu0 %1323
    %v1326 = vmul.f32 %v1319, %v1324
    %1328 = vrot.lane.b32.xlu0 %v1326, 32
    %v1329 = vpop.permute.xlu0 %1328
    %v1331 = vadd.f32 %v1321, %v1329
    %v1332 = vtanh.pop %v1331
    %1334 = vrot.lane.b32.xlu0 %v1332, 64
    %v1335 = vpop.permute.xlu0 %1334
    %v1337 = vmul.f32 %v1319, %v1335
    %v1338 = vsel %vm1233, 1, 0
    %1339 = vset.pattern.permute.xlu0 0
    %1340 = vperm.xlu0 %1339, %v1338
    %v1341 = vpop.permute.xlu0 %1340
    %vm1342 = vcmp.eq.s32.totalorder %v1341, 1
    %v1343 = vsel %vm1342, %v1337, %v1103
    %v1344 = vsel %vm1342, %v1331, %v1104
    %1346 = vrot.lane.b32.xlu0 %v1343, 32
    %v1347 = vpop.permute.xlu0 %1346
    %1349 = vrot.lane.b32.xlu0 %v1225, 64
    %v1350 = vpop.permute.xlu0 %1349
    %v1352 = vsel %vm129, %v1347, %v1350
    %v1353 = vld [vmem:[%s11] sm:$0xff]
    %v1354 = vld [vmem:[%s11 + $0x8] sm:$0xff]
    %v1355 = vld [vmem:[%s11 + $0x10] sm:$0xff]
    %v1356 = vld [vmem:[%s11 + $0x18] sm:$0xff]
    %v1357 = vld [vmem:[%s11 + $0x20] sm:$0xff]
    %v1358 = vld [vmem:[%s11 + $0x28] sm:$0xff]
    %v1359 = vld [vmem:[%s11 + $0x30] sm:$0xff]
    %v1360 = vld [vmem:[%s11 + $0x38] sm:$0xff]
    %v1361 = vld [vmem:[%s12] sm:$0x1]
    %v1363 = vlaneseq
    %v1364 = vshrl.u32 %v1363, 7
    %v1365 = vsub.s32 0, %v1364
    %v1366 = vrot.slane %v1361, %v1365
    %v1369 = vsel %vm641, %v1352, 0
    %1371 = vmatprep.subr.mxu0 0.0
    %1372 = vmatpush1.msra.mxu0 %v1353
    %1373 = vmatprep.subr.mxu0 0.0
    %1374 = vmatpush1.msra.mxu0 %v1354
    %1375 = vmatprep.subr.mxu0 0.0
    %1376 = vmatpush1.msra.mxu0 %v1355
    %1377 = vmatprep.subr.mxu0 0.0
    %1378 = vmatpush1.msra.mxu0 %v1356
    %1379 = vmatprep.subr.mxu0 0.0
    %1380 = vmatpush1.msra.mxu0 %v1357
    %1381 = vmatprep.subr.mxu0 0.0
    %1382 = vmatpush1.msra.mxu0 %v1358
    %1383 = vmatprep.subr.mxu0 0.0
    %1384 = vmatpush1.msra.mxu0 %v1359
    %1385 = vmatprep.subr.mxu0 0.0
    %1386 = vmatpush1.msra.mxu0 %v1360
    %1387 = vmatprep.subr.mxu0 0.0
    %1388 = vmatpush1.msra.mxu0 0.0
    %1389 = vmatprep.subr.mxu0 0.0
    %1390 = vmatpush1.msra.mxu0 0.0
    %1391 = vmatprep.subr.mxu0 0.0
    %1392 = vmatpush1.msra.mxu0 0.0
    %1393 = vmatprep.subr.mxu0 0.0
    %1394 = vmatpush1.msra.mxu0 0.0
    %1395 = vmatprep.subr.mxu0 0.0
    %1396 = vmatpush1.msra.mxu0 0.0
    %1397 = vmatprep.subr.mxu0 0.0
    %1398 = vmatpush1.msra.mxu0 0.0
    %1399 = vmatprep.subr.mxu0 0.0
    %1400 = vmatpush1.msra.mxu0 0.0
    %1401 = vmatprep.subr.mxu0 0.0
    %1402 = vmatpush1.msra.mxu0 0.0
    %1403 = vmatprep.subr.mxu0 0.0
    %1404 = vmatpush1.msra.mxu0 0.0
    %1405 = vmatprep.subr.mxu0 0.0
    %1406 = vmatpush1.msra.mxu0 0.0
    %1407 = vmatprep.subr.mxu0 0.0
    %1408 = vmatpush1.msra.mxu0 0.0
    %1409 = vmatprep.subr.mxu0 0.0
    %1410 = vmatpush1.msra.mxu0 0.0
    %1411 = vmatprep.subr.mxu0 0.0
    %1412 = vmatpush1.msra.mxu0 0.0
    %1413 = vmatprep.subr.mxu0 0.0
    %1414 = vmatpush1.msra.mxu0 0.0
    %1415 = vmatprep.subr.mxu0 0.0
    %1416 = vmatpush1.msra.mxu0 0.0
    %1417 = vmatprep.subr.mxu0 0.0
    %1418 = vmatpush1.msra.mxu0 0.0
    %1419 = vmatprep.subr.mxu0 0.0
    %1420 = vmatpush1.msra.mxu0 0.0
    %1421 = vmatprep.subr.mxu0 0.0
    %1422 = vmatpush1.msra.mxu0 0.0
    %1423 = vmatprep.subr.mxu0 0.0
    %1424 = vmatpush1.msra.mxu0 0.0
    %1425 = vmatprep.subr.mxu0 0.0
    %1426 = vmatpush1.msra.mxu0 0.0
    %1427 = vmatprep.subr.mxu0 0.0
    %1428 = vmatpush1.msra.mxu0 0.0
    %1429 = vmatprep.subr.mxu0 0.0
    %1430 = vmatpush1.msra.mxu0 0.0
    %1431 = vmatprep.subr.mxu0 0.0
    %1432 = vmatpush1.msra.mxu0 0.0
    %1433 = vmatprep.subr.mxu0 0.0
    %1434 = vmatpush1.msra.mxu0 0.0
    %1435 = vmatprep.mubr.f32.mxu0 0.0
    %1436 = vmatmul.mubr.f32.gmra.mrb[0].mxu0 %v1369
    %v1437 = vpop.f32.mrb[0].mxu0
    %v1438 = vadd.f32 %v1366, %v1437
    %v1439 = vpop.f32.mrb[0].mxu0
    %1440 = vdwg.mxu0
    %v1441 = vxor.u32 %v1438, 2147483648
    %v1442 = vmul.f32 %v1441, 1.442695
    %v1443 = vpow.pop %v1442
    %v1444 = vadd.f32 %v1443, 1.0
    %v1445 = vrcp.pop %v1444
    %v1446 = vmul.f32 1.0, %v1445
    %v1447 = vtanh.pop %v1438
    %v1448 = vmul.f32 %v1446, %v1226
    %1450 = vrot.lane.b32.xlu0 %v1447, 64
    %v1451 = vpop.permute.xlu0 %1450
    %v1453 = vmul.f32 %v1446, %v1451
    %1455 = vrot.lane.b32.xlu0 %v1453, 32
    %v1456 = vpop.permute.xlu0 %1455
    %v1458 = vadd.f32 %v1448, %v1456
    %v1459 = vtanh.pop %v1458
    %1461 = vrot.lane.b32.xlu0 %v1459, 64
    %v1462 = vpop.permute.xlu0 %1461
    %v1464 = vmul.f32 %v1446, %v1462
    %v1465 = vsel %vm1342, %v1464, %v1225
    %v1466 = vsel %vm1342, %v1458, %v1226
    %1468 = vrot.lane.b32.xlu0 %v1465, 32
    %v1469 = vpop.permute.xlu0 %1468
    %s1471 = scalar_lea.vmem [#allocation3], 24
    %1472 = vst.msk [vmem:[%s1471] sm:$0xff] %vm129, %v1469
    %vm1473 = vcmp.gt.s32.totalorder %v491, 4
    %s1474 = scalar_lea.vmem [#allocation2], 32
    %v1475 = vld [vmem:[%s1474] sm:$0xff]
    %v1476 = vadd.f32 %v1475, %v488
    %v1477 = vld [vmem:[#allocation10] sm:$0xff]
    %v1478 = vld [vmem:[#allocation10 + $0x8] sm:$0xff]
    %v1479 = vld [vmem:[#allocation10 + $0x10] sm:$0xff]
    %v1480 = vld [vmem:[#allocation10 + $0x18] sm:$0xff]
    %v1481 = vsel %vm129, %v1347, 0
    %1483 = vmatprep.subr.mxu0 0.0
    %1484 = vmatpush1.msra.mxu0 %v1477
    %1485 = vmatprep.subr.mxu0 0.0
    %1486 = vmatpush1.msra.mxu0 %v1478
    %1487 = vmatprep.subr.mxu0 0.0
    %1488 = vmatpush1.msra.mxu0 %v1479
    %1489 = vmatprep.subr.mxu0 0.0
    %1490 = vmatpush1.msra.mxu0 %v1480
    %1491 = vmatprep.subr.mxu0 0.0
    %1492 = vmatpush1.msra.mxu0 0.0
    %1493 = vmatprep.subr.mxu0 0.0
    %1494 = vmatpush1.msra.mxu0 0.0
    %1495 = vmatprep.subr.mxu0 0.0
    %1496 = vmatpush1.msra.mxu0 0.0
    %1497 = vmatprep.subr.mxu0 0.0
    %1498 = vmatpush1.msra.mxu0 0.0
    %1499 = vmatprep.subr.mxu0 0.0
    %1500 = vmatpush1.msra.mxu0 0.0
    %1501 = vmatprep.subr.mxu0 0.0
    %1502 = vmatpush1.msra.mxu0 0.0
    %1503 = vmatprep.subr.mxu0 0.0
    %1504 = vmatpush1.msra.mxu0 0.0
    %1505 = vmatprep.subr.mxu0 0.0
    %1506 = vmatpush1.msra.mxu0 0.0
    %1507 = vmatprep.subr.mxu0 0.0
    %1508 = vmatpush1.msra.mxu0 0.0
    %1509 = vmatprep.subr.mxu0 0.0
    %1510 = vmatpush1.msra.mxu0 0.0
    %1511 = vmatprep.subr.mxu0 0.0
    %1512 = vmatpush1.msra.mxu0 0.0
    %1513 = vmatprep.subr.mxu0 0.0
    %1514 = vmatpush1.msra.mxu0 0.0
    %1515 = vmatprep.subr.mxu0 0.0
    %1516 = vmatpush1.msra.mxu0 0.0
    %1517 = vmatprep.subr.mxu0 0.0
    %1518 = vmatpush1.msra.mxu0 0.0
    %1519 = vmatprep.subr.mxu0 0.0
    %1520 = vmatpush1.msra.mxu0 0.0
    %1521 = vmatprep.subr.mxu0 0.0
    %1522 = vmatpush1.msra.mxu0 0.0
    %1523 = vmatprep.subr.mxu0 0.0
    %1524 = vmatpush1.msra.mxu0 0.0
    %1525 = vmatprep.subr.mxu0 0.0
    %1526 = vmatpush1.msra.mxu0 0.0
    %1527 = vmatprep.subr.mxu0 0.0
    %1528 = vmatpush1.msra.mxu0 0.0
    %1529 = vmatprep.subr.mxu0 0.0
    %1530 = vmatpush1.msra.mxu0 0.0
    %1531 = vmatprep.subr.mxu0 0.0
    %1532 = vmatpush1.msra.mxu0 0.0
    %1533 = vmatprep.subr.mxu0 0.0
    %1534 = vmatpush1.msra.mxu0 0.0
    %1535 = vmatprep.subr.mxu0 0.0
    %1536 = vmatpush1.msra.mxu0 0.0
    %1537 = vmatprep.subr.mxu0 0.0
    %1538 = vmatpush1.msra.mxu0 0.0
    %1539 = vmatprep.subr.mxu0 0.0
    %1540 = vmatpush1.msra.mxu0 0.0
    %1541 = vmatprep.subr.mxu0 0.0
    %1542 = vmatpush1.msra.mxu0 0.0
    %1543 = vmatprep.subr.mxu0 0.0
    %1544 = vmatpush1.msra.mxu0 0.0
    %1545 = vmatprep.subr.mxu0 0.0
    %1546 = vmatpush1.msra.mxu0 0.0
    %1547 = vmatprep.mubr.f32.mxu0 0.0
    %1548 = vmatmul.mubr.f32.gmra.mrb[0].mxu0 %v1481
    %v1549 = vpop.f32.mrb[0].mxu0
    %v1550 = vadd.f32 0.0, %v1549
    %v1551 = vpop.f32.mrb[0].mxu0
    %1552 = vdwg.mxu0
    %v1553 = vadd.f32 %v1476, %v1550
    %v1554 = vxor.u32 %v1553, 2147483648
    %v1555 = vmul.f32 %v1554, 1.442695
    %v1556 = vpow.pop %v1555
    %v1557 = vadd.f32 %v1556, 1.0
    %v1558 = vrcp.pop %v1557
    %v1559 = vmul.f32 1.0, %v1558
    %v1560 = vtanh.pop %v1553
    %v1561 = vmul.f32 %v1559, %v1344
    %1563 = vrot.lane.b32.xlu0 %v1560, 64
    %v1564 = vpop.permute.xlu0 %1563
    %v1566 = vmul.f32 %v1559, %v1564
    %1568 = vrot.lane.b32.xlu0 %v1566, 32
    %v1569 = vpop.permute.xlu0 %1568
    %v1571 = vadd.f32 %v1561, %v1569
    %v1572 = vtanh.pop %v1571
    %1574 = vrot.lane.b32.xlu0 %v1572, 64
    %v1575 = vpop.permute.xlu0 %1574
    %v1577 = vmul.f32 %v1559, %v1575
    %v1578 = vsel %vm1473, 1, 0
    %1579 = vset.pattern.permute.xlu0 0
    %1580 = vperm.xlu0 %1579, %v1578
    %v1581 = vpop.permute.xlu0 %1580
    %vm1582 = vcmp.eq.s32.totalorder %v1581, 1
    %v1583 = vsel %vm1582, %v1577, %v1343
    %v1584 = vsel %vm1582, %v1571, %v1344
    %1586 = vrot.lane.b32.xlu0 %v1583, 32
    %v1587 = vpop.permute.xlu0 %1586
    %1589 = vrot.lane.b32.xlu0 %v1465, 64
    %v1590 = vpop.permute.xlu0 %1589
    %v1592 = vsel %vm129, %v1587, %v1590
    %v1593 = vld [vmem:[%s11] sm:$0xff]
    %v1594 = vld [vmem:[%s11 + $0x8] sm:$0xff]
    %v1595 = vld [vmem:[%s11 + $0x10] sm:$0xff]
    %v1596 = vld [vmem:[%s11 + $0x18] sm:$0xff]
    %v1597 = vld [vmem:[%s11 + $0x20] sm:$0xff]
    %v1598 = vld [vmem:[%s11 + $0x28] sm:$0xff]
    %v1599 = vld [vmem:[%s11 + $0x30] sm:$0xff]
    %v1600 = vld [vmem:[%s11 + $0x38] sm:$0xff]
    %v1601 = vld [vmem:[%s12] sm:$0x1]
    %v1603 = vlaneseq
    %v1604 = vshrl.u32 %v1603, 7
    %v1605 = vsub.s32 0, %v1604
    %v1606 = vrot.slane %v1601, %v1605
    %v1609 = vsel %vm641, %v1592, 0
    %1611 = vmatprep.subr.mxu0 0.0
    %1612 = vmatpush1.msra.mxu0 %v1593
    %1613 = vmatprep.subr.mxu0 0.0
    %1614 = vmatpush1.msra.mxu0 %v1594
    %1615 = vmatprep.subr.mxu0 0.0
    %1616 = vmatpush1.msra.mxu0 %v1595
    %1617 = vmatprep.subr.mxu0 0.0
    %1618 = vmatpush1.msra.mxu0 %v1596
    %1619 = vmatprep.subr.mxu0 0.0
    %1620 = vmatpush1.msra.mxu0 %v1597
    %1621 = vmatprep.subr.mxu0 0.0
    %1622 = vmatpush1.msra.mxu0 %v1598
    %1623 = vmatprep.subr.mxu0 0.0
    %1624 = vmatpush1.msra.mxu0 %v1599
    %1625 = vmatprep.subr.mxu0 0.0
    %1626 = vmatpush1.msra.mxu0 %v1600
    %1627 = vmatprep.subr.mxu0 0.0
    %1628 = vmatpush1.msra.mxu0 0.0
    %1629 = vmatprep.subr.mxu0 0.0
    %1630 = vmatpush1.msra.mxu0 0.0
    %1631 = vmatprep.subr.mxu0 0.0
    %1632 = vmatpush1.msra.mxu0 0.0
    %1633 = vmatprep.subr.mxu0 0.0
    %1634 = vmatpush1.msra.mxu0 0.0
    %1635 = vmatprep.subr.mxu0 0.0
    %1636 = vmatpush1.msra.mxu0 0.0
    %1637 = vmatprep.subr.mxu0 0.0
    %1638 = vmatpush1.msra.mxu0 0.0
    %1639 = vmatprep.subr.mxu0 0.0
    %1640 = vmatpush1.msra.mxu0 0.0
    %1641 = vmatprep.subr.mxu0 0.0
    %1642 = vmatpush1.msra.mxu0 0.0
    %1643 = vmatprep.subr.mxu0 0.0
    %1644 = vmatpush1.msra.mxu0 0.0
    %1645 = vmatprep.subr.mxu0 0.0
    %1646 = vmatpush1.msra.mxu0 0.0
    %1647 = vmatprep.subr.mxu0 0.0
    %1648 = vmatpush1.msra.mxu0 0.0
    %1649 = vmatprep.subr.mxu0 0.0
    %1650 = vmatpush1.msra.mxu0 0.0
    %1651 = vmatprep.subr.mxu0 0.0
    %1652 = vmatpush1.msra.mxu0 0.0
    %1653 = vmatprep.subr.mxu0 0.0
    %1654 = vmatpush1.msra.mxu0 0.0
    %1655 = vmatprep.subr.mxu0 0.0
    %1656 = vmatpush1.msra.mxu0 0.0
    %1657 = vmatprep.subr.mxu0 0.0
    %1658 = vmatpush1.msra.mxu0 0.0
    %1659 = vmatprep.subr.mxu0 0.0
    %1660 = vmatpush1.msra.mxu0 0.0
    %1661 = vmatprep.subr.mxu0 0.0
    %1662 = vmatpush1.msra.mxu0 0.0
    %1663 = vmatprep.subr.mxu0 0.0
    %1664 = vmatpush1.msra.mxu0 0.0
    %1665 = vmatprep.subr.mxu0 0.0
    %1666 = vmatpush1.msra.mxu0 0.0
    %1667 = vmatprep.subr.mxu0 0.0
    %1668 = vmatpush1.msra.mxu0 0.0
    %1669 = vmatprep.subr.mxu0 0.0
    %1670 = vmatpush1.msra.mxu0 0.0
    %1671 = vmatprep.subr.mxu0 0.0
    %1672 = vmatpush1.msra.mxu0 0.0
    %1673 = vmatprep.subr.mxu0 0.0
    %1674 = vmatpush1.msra.mxu0 0.0
    %1675 = vmatprep.mubr.f32.mxu0 0.0
    %1676 = vmatmul.mubr.f32.gmra.mrb[0].mxu0 %v1609
    %v1677 = vpop.f32.mrb[0].mxu0
    %v1678 = vadd.f32 %v1606, %v1677
    %v1679 = vpop.f32.mrb[0].mxu0
    %1680 = vdwg.mxu0
    %v1681 = vxor.u32 %v1678, 2147483648
    %v1682 = vmul.f32 %v1681, 1.442695
    %v1683 = vpow.pop %v1682
    %v1684 = vadd.f32 %v1683, 1.0
    %v1685 = vrcp.pop %v1684
    %v1686 = vmul.f32 1.0, %v1685
    %v1687 = vtanh.pop %v1678
    %v1688 = vmul.f32 %v1686, %v1466
    %1690 = vrot.lane.b32.xlu0 %v1687, 64
    %v1691 = vpop.permute.xlu0 %1690
    %v1693 = vmul.f32 %v1686, %v1691
    %1695 = vrot.lane.b32.xlu0 %v1693, 32
    %v1696 = vpop.permute.xlu0 %1695
    %v1698 = vadd.f32 %v1688, %v1696
    %v1699 = vtanh.pop %v1698
    %1701 = vrot.lane.b32.xlu0 %v1699, 64
    %v1702 = vpop.permute.xlu0 %1701
    %v1704 = vmul.f32 %v1686, %v1702
    %v1705 = vsel %vm1582, %v1704, %v1465
    %v1706 = vsel %vm1582, %v1698, %v1466
    %1708 = vrot.lane.b32.xlu0 %v1705, 32
    %v1709 = vpop.permute.xlu0 %1708
    %s1711 = scalar_lea.vmem [#allocation3], 32
    %1712 = vst.msk [vmem:[%s1711] sm:$0xff] %vm129, %v1709
    %vm1713 = vcmp.gt.s32.totalorder %v491, 5
    %s1714 = scalar_lea.vmem [#allocation2], 40
    %v1715 = vld [vmem:[%s1714] sm:$0xff]
    %v1716 = vadd.f32 %v1715, %v488
    %v1717 = vld [vmem:[#allocation10] sm:$0xff]
    %v1718 = vld [vmem:[#allocation10 + $0x8] sm:$0xff]
    %v1719 = vld [vmem:[#allocation10 + $0x10] sm:$0xff]
    %v1720 = vld [vmem:[#allocation10 + $0x18] sm:$0xff]
    %v1721 = vsel %vm129, %v1587, 0
    %1723 = vmatprep.subr.mxu0 0.0
    %1724 = vmatpush1.msra.mxu0 %v1717
    %1725 = vmatprep.subr.mxu0 0.0
    %1726 = vmatpush1.msra.mxu0 %v1718
    %1727 = vmatprep.subr.mxu0 0.0
    %1728 = vmatpush1.msra.mxu0 %v1719
    %1729 = vmatprep.subr.mxu0 0.0
    %1730 = vmatpush1.msra.mxu0 %v1720
    %1731 = vmatprep.subr.mxu0 0.0
    %1732 = vmatpush1.msra.mxu0 0.0
    %1733 = vmatprep.subr.mxu0 0.0
    %1734 = vmatpush1.msra.mxu0 0.0
    %1735 = vmatprep.subr.mxu0 0.0
    %1736 = vmatpush1.msra.mxu0 0.0
    %1737 = vmatprep.subr.mxu0 0.0
    %1738 = vmatpush1.msra.mxu0 0.0
    %1739 = vmatprep.subr.mxu0 0.0
    %1740 = vmatpush1.msra.mxu0 0.0
    %1741 = vmatprep.subr.mxu0 0.0
    %1742 = vmatpush1.msra.mxu0 0.0
    %1743 = vmatprep.subr.mxu0 0.0
    %1744 = vmatpush1.msra.mxu0 0.0
    %1745 = vmatprep.subr.mxu0 0.0
    %1746 = vmatpush1.msra.mxu0 0.0
    %1747 = vmatprep.subr.mxu0 0.0
    %1748 = vmatpush1.msra.mxu0 0.0
    %1749 = vmatprep.subr.mxu0 0.0
    %1750 = vmatpush1.msra.mxu0 0.0
    %1751 = vmatprep.subr.mxu0 0.0
    %1752 = vmatpush1.msra.mxu0 0.0
    %1753 = vmatprep.subr.mxu0 0.0
    %1754 = vmatpush1.msra.mxu0 0.0
    %1755 = vmatprep.subr.mxu0 0.0
    %1756 = vmatpush1.msra.mxu0 0.0
    %1757 = vmatprep.subr.mxu0 0.0
    %1758 = vmatpush1.msra.mxu0 0.0
    %1759 = vmatprep.subr.mxu0 0.0
    %1760 = vmatpush1.msra.mxu0 0.0
    %1761 = vmatprep.subr.mxu0 0.0
    %1762 = vmatpush1.msra.mxu0 0.0
    %1763 = vmatprep.subr.mxu0 0.0
    %1764 = vmatpush1.msra.mxu0 0.0
    %1765 = vmatprep.subr.mxu0 0.0
    %1766 = vmatpush1.msra.mxu0 0.0
    %1767 = vmatprep.subr.mxu0 0.0
    %1768 = vmatpush1.msra.mxu0 0.0
    %1769 = vmatprep.subr.mxu0 0.0
    %1770 = vmatpush1.msra.mxu0 0.0
    %1771 = vmatprep.subr.mxu0 0.0
    %1772 = vmatpush1.msra.mxu0 0.0
    %1773 = vmatprep.subr.mxu0 0.0
    %1774 = vmatpush1.msra.mxu0 0.0
    %1775 = vmatprep.subr.mxu0 0.0
    %1776 = vmatpush1.msra.mxu0 0.0
    %1777 = vmatprep.subr.mxu0 0.0
    %1778 = vmatpush1.msra.mxu0 0.0
    %1779 = vmatprep.subr.mxu0 0.0
    %1780 = vmatpush1.msra.mxu0 0.0
    %1781 = vmatprep.subr.mxu0 0.0
    %1782 = vmatpush1.msra.mxu0 0.0
    %1783 = vmatprep.subr.mxu0 0.0
    %1784 = vmatpush1.msra.mxu0 0.0
    %1785 = vmatprep.subr.mxu0 0.0
    %1786 = vmatpush1.msra.mxu0 0.0
    %1787 = vmatprep.mubr.f32.mxu0 0.0
    %1788 = vmatmul.mubr.f32.gmra.mrb[0].mxu0 %v1721
    %v1789 = vpop.f32.mrb[0].mxu0
    %v1790 = vadd.f32 0.0, %v1789
    %v1791 = vpop.f32.mrb[0].mxu0
    %1792 = vdwg.mxu0
    %v1793 = vadd.f32 %v1716, %v1790
    %v1794 = vxor.u32 %v1793, 2147483648
    %v1795 = vmul.f32 %v1794, 1.442695
    %v1796 = vpow.pop %v1795
    %v1797 = vadd.f32 %v1796, 1.0
    %v1798 = vrcp.pop %v1797
    %v1799 = vmul.f32 1.0, %v1798
    %v1800 = vtanh.pop %v1793
    %v1801 = vmul.f32 %v1799, %v1584
    %1803 = vrot.lane.b32.xlu0 %v1800, 64
    %v1804 = vpop.permute.xlu0 %1803
    %v1806 = vmul.f32 %v1799, %v1804
    %1808 = vrot.lane.b32.xlu0 %v1806, 32
    %v1809 = vpop.permute.xlu0 %1808
    %v1811 = vadd.f32 %v1801, %v1809
    %v1812 = vtanh.pop %v1811
    %1814 = vrot.lane.b32.xlu0 %v1812, 64
    %v1815 = vpop.permute.xlu0 %1814
    %v1817 = vmul.f32 %v1799, %v1815
    %v1818 = vsel %vm1713, 1, 0
    %1819 = vset.pattern.permute.xlu0 0
    %1820 = vperm.xlu0 %1819, %v1818
    %v1821 = vpop.permute.xlu0 %1820
    %vm1822 = vcmp.eq.s32.totalorder %v1821, 1
    %v1823 = vsel %vm1822, %v1817, %v1583
    %v1824 = vsel %vm1822, %v1811, %v1584
    %1826 = vrot.lane.b32.xlu0 %v1823, 32
    %v1827 = vpop.permute.xlu0 %1826
    %1829 = vrot.lane.b32.xlu0 %v1705, 64
    %v1830 = vpop.permute.xlu0 %1829
    %v1832 = vsel %vm129, %v1827, %v1830
    %v1833 = vld [vmem:[%s11] sm:$0xff]
    %v1834 = vld [vmem:[%s11 + $0x8] sm:$0xff]
    %v1835 = vld [vmem:[%s11 + $0x10] sm:$0xff]
    %v1836 = vld [vmem:[%s11 + $0x18] sm:$0xff]
    %v1837 = vld [vmem:[%s11 + $0x20] sm:$0xff]
    %v1838 = vld [vmem:[%s11 + $0x28] sm:$0xff]
    %v1839 = vld [vmem:[%s11 + $0x30] sm:$0xff]
    %v1840 = vld [vmem:[%s11 + $0x38] sm:$0xff]
    %v1841 = vld [vmem:[%s12] sm:$0x1]
    %v1843 = vlaneseq
    %v1844 = vshrl.u32 %v1843, 7
    %v1845 = vsub.s32 0, %v1844
    %v1846 = vrot.slane %v1841, %v1845
    %v1849 = vsel %vm641, %v1832, 0
    %1851 = vmatprep.subr.mxu0 0.0
    %1852 = vmatpush1.msra.mxu0 %v1833
    %1853 = vmatprep.subr.mxu0 0.0
    %1854 = vmatpush1.msra.mxu0 %v1834
    %1855 = vmatprep.subr.mxu0 0.0
    %1856 = vmatpush1.msra.mxu0 %v1835
    %1857 = vmatprep.subr.mxu0 0.0
    %1858 = vmatpush1.msra.mxu0 %v1836
    %1859 = vmatprep.subr.mxu0 0.0
    %1860 = vmatpush1.msra.mxu0 %v1837
    %1861 = vmatprep.subr.mxu0 0.0
    %1862 = vmatpush1.msra.mxu0 %v1838
    %1863 = vmatprep.subr.mxu0 0.0
    %1864 = vmatpush1.msra.mxu0 %v1839
    %1865 = vmatprep.subr.mxu0 0.0
    %1866 = vmatpush1.msra.mxu0 %v1840
    %1867 = vmatprep.subr.mxu0 0.0
    %1868 = vmatpush1.msra.mxu0 0.0
    %1869 = vmatprep.subr.mxu0 0.0
    %1870 = vmatpush1.msra.mxu0 0.0
    %1871 = vmatprep.subr.mxu0 0.0
    %1872 = vmatpush1.msra.mxu0 0.0
    %1873 = vmatprep.subr.mxu0 0.0
    %1874 = vmatpush1.msra.mxu0 0.0
    %1875 = vmatprep.subr.mxu0 0.0
    %1876 = vmatpush1.msra.mxu0 0.0
    %1877 = vmatprep.subr.mxu0 0.0
    %1878 = vmatpush1.msra.mxu0 0.0
    %1879 = vmatprep.subr.mxu0 0.0
    %1880 = vmatpush1.msra.mxu0 0.0
    %1881 = vmatprep.subr.mxu0 0.0
    %1882 = vmatpush1.msra.mxu0 0.0
    %1883 = vmatprep.subr.mxu0 0.0
    %1884 = vmatpush1.msra.mxu0 0.0
    %1885 = vmatprep.subr.mxu0 0.0
    %1886 = vmatpush1.msra.mxu0 0.0
    %1887 = vmatprep.subr.mxu0 0.0
    %1888 = vmatpush1.msra.mxu0 0.0
    %1889 = vmatprep.subr.mxu0 0.0
    %1890 = vmatpush1.msra.mxu0 0.0
    %1891 = vmatprep.subr.mxu0 0.0
    %1892 = vmatpush1.msra.mxu0 0.0
    %1893 = vmatprep.subr.mxu0 0.0
    %1894 = vmatpush1.msra.mxu0 0.0
    %1895 = vmatprep.subr.mxu0 0.0
    %1896 = vmatpush1.msra.mxu0 0.0
    %1897 = vmatprep.subr.mxu0 0.0
    %1898 = vmatpush1.msra.mxu0 0.0
    %1899 = vmatprep.subr.mxu0 0.0
    %1900 = vmatpush1.msra.mxu0 0.0
    %1901 = vmatprep.subr.mxu0 0.0
    %1902 = vmatpush1.msra.mxu0 0.0
    %1903 = vmatprep.subr.mxu0 0.0
    %1904 = vmatpush1.msra.mxu0 0.0
    %1905 = vmatprep.subr.mxu0 0.0
    %1906 = vmatpush1.msra.mxu0 0.0
    %1907 = vmatprep.subr.mxu0 0.0
    %1908 = vmatpush1.msra.mxu0 0.0
    %1909 = vmatprep.subr.mxu0 0.0
    %1910 = vmatpush1.msra.mxu0 0.0
    %1911 = vmatprep.subr.mxu0 0.0
    %1912 = vmatpush1.msra.mxu0 0.0
    %1913 = vmatprep.subr.mxu0 0.0
    %1914 = vmatpush1.msra.mxu0 0.0
    %1915 = vmatprep.mubr.f32.mxu0 0.0
    %1916 = vmatmul.mubr.f32.gmra.mrb[0].mxu0 %v1849
    %v1917 = vpop.f32.mrb[0].mxu0
    %v1918 = vadd.f32 %v1846, %v1917
    %v1919 = vpop.f32.mrb[0].mxu0
    %1920 = vdwg.mxu0
    %v1921 = vxor.u32 %v1918, 2147483648
    %v1922 = vmul.f32 %v1921, 1.442695
    %v1923 = vpow.pop %v1922
    %v1924 = vadd.f32 %v1923, 1.0
    %v1925 = vrcp.pop %v1924
    %v1926 = vmul.f32 1.0, %v1925
    %v1927 = vtanh.pop %v1918
    %v1928 = vmul.f32 %v1926, %v1706
    %1930 = vrot.lane.b32.xlu0 %v1927, 64
    %v1931 = vpop.permute.xlu0 %1930
    %v1933 = vmul.f32 %v1926, %v1931
    %1935 = vrot.lane.b32.xlu0 %v1933, 32
    %v1936 = vpop.permute.xlu0 %1935
    %v1938 = vadd.f32 %v1928, %v1936
    %v1939 = vtanh.pop %v1938
    %1941 = vrot.lane.b32.xlu0 %v1939, 64
    %v1942 = vpop.permute.xlu0 %1941
    %v1944 = vmul.f32 %v1926, %v1942
    %v1945 = vsel %vm1822, %v1944, %v1705
    %v1946 = vsel %vm1822, %v1938, %v1706
    %1948 = vrot.lane.b32.xlu0 %v1945, 32
    %v1949 = vpop.permute.xlu0 %1948
    %s1951 = scalar_lea.vmem [#allocation3], 40
    %1952 = vst.msk [vmem:[%s1951] sm:$0xff] %vm129, %v1949
    %vm1953 = vcmp.gt.s32.totalorder %v491, 6
    %s1954 = scalar_lea.vmem [#allocation2], 48
    %v1955 = vld [vmem:[%s1954] sm:$0xff]
    %v1956 = vadd.f32 %v1955, %v488
    %v1957 = vld [vmem:[#allocation10] sm:$0xff]
    %v1958 = vld [vmem:[#allocation10 + $0x8] sm:$0xff]
    %v1959 = vld [vmem:[#allocation10 + $0x10] sm:$0xff]
    %v1960 = vld [vmem:[#allocation10 + $0x18] sm:$0xff]
    %v1961 = vsel %vm129, %v1827, 0
    %1963 = vmatprep.subr.mxu0 0.0
    %1964 = vmatpush1.msra.mxu0 %v1957
    %1965 = vmatprep.subr.mxu0 0.0
    %1966 = vmatpush1.msra.mxu0 %v1958
    %1967 = vmatprep.subr.mxu0 0.0
    %1968 = vmatpush1.msra.mxu0 %v1959
    %1969 = vmatprep.subr.mxu0 0.0
    %1970 = vmatpush1.msra.mxu0 %v1960
    %1971 = vmatprep.subr.mxu0 0.0
    %1972 = vmatpush1.msra.mxu0 0.0
    %1973 = vmatprep.subr.mxu0 0.0
    %1974 = vmatpush1.msra.mxu0 0.0
    %1975 = vmatprep.subr.mxu0 0.0
    %1976 = vmatpush1.msra.mxu0 0.0
    %1977 = vmatprep.subr.mxu0 0.0
    %1978 = vmatpush1.msra.mxu0 0.0
    %1979 = vmatprep.subr.mxu0 0.0
    %1980 = vmatpush1.msra.mxu0 0.0
    %1981 = vmatprep.subr.mxu0 0.0
    %1982 = vmatpush1.msra.mxu0 0.0
    %1983 = vmatprep.subr.mxu0 0.0
    %1984 = vmatpush1.msra.mxu0 0.0
    %1985 = vmatprep.subr.mxu0 0.0
    %1986 = vmatpush1.msra.mxu0 0.0
    %1987 = vmatprep.subr.mxu0 0.0
    %1988 = vmatpush1.msra.mxu0 0.0
    %1989 = vmatprep.subr.mxu0 0.0
    %1990 = vmatpush1.msra.mxu0 0.0
    %1991 = vmatprep.subr.mxu0 0.0
    %1992 = vmatpush1.msra.mxu0 0.0
    %1993 = vmatprep.subr.mxu0 0.0
    %1994 = vmatpush1.msra.mxu0 0.0
    %1995 = vmatprep.subr.mxu0 0.0
    %1996 = vmatpush1.msra.mxu0 0.0
    %1997 = vmatprep.subr.mxu0 0.0
    %1998 = vmatpush1.msra.mxu0 0.0
    %1999 = vmatprep.subr.mxu0 0.0
    %2000 = vmatpush1.msra.mxu0 0.0
    %2001 = vmatprep.subr.mxu0 0.0
    %2002 = vmatpush1.msra.mxu0 0.0
    %2003 = vmatprep.subr.mxu0 0.0
    %2004 = vmatpush1.msra.mxu0 0.0
    %2005 = vmatprep.subr.mxu0 0.0
    %2006 = vmatpush1.msra.mxu0 0.0
    %2007 = vmatprep.subr.mxu0 0.0
    %2008 = vmatpush1.msra.mxu0 0.0
    %2009 = vmatprep.subr.mxu0 0.0
    %2010 = vmatpush1.msra.mxu0 0.0
    %2011 = vmatprep.subr.mxu0 0.0
    %2012 = vmatpush1.msra.mxu0 0.0
    %2013 = vmatprep.subr.mxu0 0.0
    %2014 = vmatpush1.msra.mxu0 0.0
    %2015 = vmatprep.subr.mxu0 0.0
    %2016 = vmatpush1.msra.mxu0 0.0
    %2017 = vmatprep.subr.mxu0 0.0
    %2018 = vmatpush1.msra.mxu0 0.0
    %2019 = vmatprep.subr.mxu0 0.0
    %2020 = vmatpush1.msra.mxu0 0.0
    %2021 = vmatprep.subr.mxu0 0.0
    %2022 = vmatpush1.msra.mxu0 0.0
    %2023 = vmatprep.subr.mxu0 0.0
    %2024 = vmatpush1.msra.mxu0 0.0
    %2025 = vmatprep.subr.mxu0 0.0
    %2026 = vmatpush1.msra.mxu0 0.0
    %2027 = vmatprep.mubr.f32.mxu0 0.0
    %2028 = vmatmul.mubr.f32.gmra.mrb[0].mxu0 %v1961
    %v2029 = vpop.f32.mrb[0].mxu0
    %v2030 = vadd.f32 0.0, %v2029
    %v2031 = vpop.f32.mrb[0].mxu0
    %2032 = vdwg.mxu0
    %v2033 = vadd.f32 %v1956, %v2030
    %v2034 = vxor.u32 %v2033, 2147483648
    %v2035 = vmul.f32 %v2034, 1.442695
    %v2036 = vpow.pop %v2035
    %v2037 = vadd.f32 %v2036, 1.0
    %v2038 = vrcp.pop %v2037
    %v2039 = vmul.f32 1.0, %v2038
    %v2040 = vtanh.pop %v2033
    %v2041 = vmul.f32 %v2039, %v1824
    %2043 = vrot.lane.b32.xlu0 %v2040, 64
    %v2044 = vpop.permute.xlu0 %2043
    %v2046 = vmul.f32 %v2039, %v2044
    %2048 = vrot.lane.b32.xlu0 %v2046, 32
    %v2049 = vpop.permute.xlu0 %2048
    %v2051 = vadd.f32 %v2041, %v2049
    %v2052 = vtanh.pop %v2051
    %2054 = vrot.lane.b32.xlu0 %v2052, 64
    %v2055 = vpop.permute.xlu0 %2054
    %v2057 = vmul.f32 %v2039, %v2055
    %v2058 = vsel %vm1953, 1, 0
    %2059 = vset.pattern.permute.xlu0 0
    %2060 = vperm.xlu0 %2059, %v2058
    %v2061 = vpop.permute.xlu0 %2060
    %vm2062 = vcmp.eq.s32.totalorder %v2061, 1
    %v2063 = vsel %vm2062, %v2057, %v1823
    %v2064 = vsel %vm2062, %v2051, %v1824
    %2066 = vrot.lane.b32.xlu0 %v2063, 32
    %v2067 = vpop.permute.xlu0 %2066
    %2069 = vrot.lane.b32.xlu0 %v1945, 64
    %v2070 = vpop.permute.xlu0 %2069
    %v2072 = vsel %vm129, %v2067, %v2070
    %v2073 = vld [vmem:[%s11] sm:$0xff]
    %v2074 = vld [vmem:[%s11 + $0x8] sm:$0xff]
    %v2075 = vld [vmem:[%s11 + $0x10] sm:$0xff]
    %v2076 = vld [vmem:[%s11 + $0x18] sm:$0xff]
    %v2077 = vld [vmem:[%s11 + $0x20] sm:$0xff]
    %v2078 = vld [vmem:[%s11 + $0x28] sm:$0xff]
    %v2079 = vld [vmem:[%s11 + $0x30] sm:$0xff]
    %v2080 = vld [vmem:[%s11 + $0x38] sm:$0xff]
    %v2081 = vld [vmem:[%s12] sm:$0x1]
    %v2083 = vlaneseq
    %v2084 = vshrl.u32 %v2083, 7
    %v2085 = vsub.s32 0, %v2084
    %v2086 = vrot.slane %v2081, %v2085
    %v2089 = vsel %vm641, %v2072, 0
    %2091 = vmatprep.subr.mxu0 0.0
    %2092 = vmatpush1.msra.mxu0 %v2073
    %2093 = vmatprep.subr.mxu0 0.0
    %2094 = vmatpush1.msra.mxu0 %v2074
    %2095 = vmatprep.subr.mxu0 0.0
    %2096 = vmatpush1.msra.mxu0 %v2075
    %2097 = vmatprep.subr.mxu0 0.0
    %2098 = vmatpush1.msra.mxu0 %v2076
    %2099 = vmatprep.subr.mxu0 0.0
    %2100 = vmatpush1.msra.mxu0 %v2077
    %2101 = vmatprep.subr.mxu0 0.0
    %2102 = vmatpush1.msra.mxu0 %v2078
    %2103 = vmatprep.subr.mxu0 0.0
    %2104 = vmatpush1.msra.mxu0 %v2079
    %2105 = vmatprep.subr.mxu0 0.0
    %2106 = vmatpush1.msra.mxu0 %v2080
    %2107 = vmatprep.subr.mxu0 0.0
    %2108 = vmatpush1.msra.mxu0 0.0
    %2109 = vmatprep.subr.mxu0 0.0
    %2110 = vmatpush1.msra.mxu0 0.0
    %2111 = vmatprep.subr.mxu0 0.0
    %2112 = vmatpush1.msra.mxu0 0.0
    %2113 = vmatprep.subr.mxu0 0.0
    %2114 = vmatpush1.msra.mxu0 0.0
    %2115 = vmatprep.subr.mxu0 0.0
    %2116 = vmatpush1.msra.mxu0 0.0
    %2117 = vmatprep.subr.mxu0 0.0
    %2118 = vmatpush1.msra.mxu0 0.0
    %2119 = vmatprep.subr.mxu0 0.0
    %2120 = vmatpush1.msra.mxu0 0.0
    %2121 = vmatprep.subr.mxu0 0.0
    %2122 = vmatpush1.msra.mxu0 0.0
    %2123 = vmatprep.subr.mxu0 0.0
    %2124 = vmatpush1.msra.mxu0 0.0
    %2125 = vmatprep.subr.mxu0 0.0
    %2126 = vmatpush1.msra.mxu0 0.0
    %2127 = vmatprep.subr.mxu0 0.0
    %2128 = vmatpush1.msra.mxu0 0.0
    %2129 = vmatprep.subr.mxu0 0.0
    %2130 = vmatpush1.msra.mxu0 0.0
    %2131 = vmatprep.subr.mxu0 0.0
    %2132 = vmatpush1.msra.mxu0 0.0
    %2133 = vmatprep.subr.mxu0 0.0
    %2134 = vmatpush1.msra.mxu0 0.0
    %2135 = vmatprep.subr.mxu0 0.0
    %2136 = vmatpush1.msra.mxu0 0.0
    %2137 = vmatprep.subr.mxu0 0.0
    %2138 = vmatpush1.msra.mxu0 0.0
    %2139 = vmatprep.subr.mxu0 0.0
    %2140 = vmatpush1.msra.mxu0 0.0
    %2141 = vmatprep.subr.mxu0 0.0
    %2142 = vmatpush1.msra.mxu0 0.0
    %2143 = vmatprep.subr.mxu0 0.0
    %2144 = vmatpush1.msra.mxu0 0.0
    %2145 = vmatprep.subr.mxu0 0.0
    %2146 = vmatpush1.msra.mxu0 0.0
    %2147 = vmatprep.subr.mxu0 0.0
    %2148 = vmatpush1.msra.mxu0 0.0
    %2149 = vmatprep.subr.mxu0 0.0
    %2150 = vmatpush1.msra.mxu0 0.0
    %2151 = vmatprep.subr.mxu0 0.0
    %2152 = vmatpush1.msra.mxu0 0.0
    %2153 = vmatprep.subr.mxu0 0.0
    %2154 = vmatpush1.msra.mxu0 0.0
    %2155 = vmatprep.mubr.f32.mxu0 0.0
    %2156 = vmatmul.mubr.f32.gmra.mrb[0].mxu0 %v2089
    %v2157 = vpop.f32.mrb[0].mxu0
    %v2158 = vadd.f32 %v2086, %v2157
    %v2159 = vpop.f32.mrb[0].mxu0
    %2160 = vdwg.mxu0
    %v2161 = vxor.u32 %v2158, 2147483648
    %v2162 = vmul.f32 %v2161, 1.442695
    %v2163 = vpow.pop %v2162
    %v2164 = vadd.f32 %v2163, 1.0
    %v2165 = vrcp.pop %v2164
    %v2166 = vmul.f32 1.0, %v2165
    %v2167 = vtanh.pop %v2158
    %v2168 = vmul.f32 %v2166, %v1946
    %2170 = vrot.lane.b32.xlu0 %v2167, 64
    %v2171 = vpop.permute.xlu0 %2170
    %v2173 = vmul.f32 %v2166, %v2171
    %2175 = vrot.lane.b32.xlu0 %v2173, 32
    %v2176 = vpop.permute.xlu0 %2175
    %v2178 = vadd.f32 %v2168, %v2176
    %v2179 = vtanh.pop %v2178
    %2181 = vrot.lane.b32.xlu0 %v2179, 64
    %v2182 = vpop.permute.xlu0 %2181
    %v2184 = vmul.f32 %v2166, %v2182
    %v2185 = vsel %vm2062, %v2184, %v1945
    %v2186 = vsel %vm2062, %v2178, %v1946
    %2188 = vrot.lane.b32.xlu0 %v2185, 32
    %v2189 = vpop.permute.xlu0 %2188
    %s2191 = scalar_lea.vmem [#allocation3], 48
    %2192 = vst.msk [vmem:[%s2191] sm:$0xff] %vm129, %v2189
    %vm2193 = vcmp.gt.s32.totalorder %v491, 7
    %s2194 = scalar_lea.vmem [#allocation2], 56
    %v2195 = vld [vmem:[%s2194] sm:$0xff]
    %v2196 = vadd.f32 %v2195, %v488
    %v2197 = vld [vmem:[#allocation10] sm:$0xff]
    %v2198 = vld [vmem:[#allocation10 + $0x8] sm:$0xff]
    %v2199 = vld [vmem:[#allocation10 + $0x10] sm:$0xff]
    %v2200 = vld [vmem:[#allocation10 + $0x18] sm:$0xff]
    %v2201 = vsel %vm129, %v2067, 0
    %2203 = vmatprep.subr.mxu0 0.0
    %2204 = vmatpush1.msra.mxu0 %v2197
    %2205 = vmatprep.subr.mxu0 0.0
    %2206 = vmatpush1.msra.mxu0 %v2198
    %2207 = vmatprep.subr.mxu0 0.0
    %2208 = vmatpush1.msra.mxu0 %v2199
    %2209 = vmatprep.subr.mxu0 0.0
    %2210 = vmatpush1.msra.mxu0 %v2200
    %2211 = vmatprep.subr.mxu0 0.0
    %2212 = vmatpush1.msra.mxu0 0.0
    %2213 = vmatprep.subr.mxu0 0.0
    %2214 = vmatpush1.msra.mxu0 0.0
    %2215 = vmatprep.subr.mxu0 0.0
    %2216 = vmatpush1.msra.mxu0 0.0
    %2217 = vmatprep.subr.mxu0 0.0
    %2218 = vmatpush1.msra.mxu0 0.0
    %2219 = vmatprep.subr.mxu0 0.0
    %2220 = vmatpush1.msra.mxu0 0.0
    %2221 = vmatprep.subr.mxu0 0.0
    %2222 = vmatpush1.msra.mxu0 0.0
    %2223 = vmatprep.subr.mxu0 0.0
    %2224 = vmatpush1.msra.mxu0 0.0
    %2225 = vmatprep.subr.mxu0 0.0
    %2226 = vmatpush1.msra.mxu0 0.0
    %2227 = vmatprep.subr.mxu0 0.0
    %2228 = vmatpush1.msra.mxu0 0.0
    %2229 = vmatprep.subr.mxu0 0.0
    %2230 = vmatpush1.msra.mxu0 0.0
    %2231 = vmatprep.subr.mxu0 0.0
    %2232 = vmatpush1.msra.mxu0 0.0
    %2233 = vmatprep.subr.mxu0 0.0
    %2234 = vmatpush1.msra.mxu0 0.0
    %2235 = vmatprep.subr.mxu0 0.0
    %2236 = vmatpush1.msra.mxu0 0.0
    %2237 = vmatprep.subr.mxu0 0.0
    %2238 = vmatpush1.msra.mxu0 0.0
    %2239 = vmatprep.subr.mxu0 0.0
    %2240 = vmatpush1.msra.mxu0 0.0
    %2241 = vmatprep.subr.mxu0 0.0
    %2242 = vmatpush1.msra.mxu0 0.0
    %2243 = vmatprep.subr.mxu0 0.0
    %2244 = vmatpush1.msra.mxu0 0.0
    %2245 = vmatprep.subr.mxu0 0.0
    %2246 = vmatpush1.msra.mxu0 0.0
    %2247 = vmatprep.subr.mxu0 0.0
    %2248 = vmatpush1.msra.mxu0 0.0
    %2249 = vmatprep.subr.mxu0 0.0
    %2250 = vmatpush1.msra.mxu0 0.0
    %2251 = vmatprep.subr.mxu0 0.0
    %2252 = vmatpush1.msra.mxu0 0.0
    %2253 = vmatprep.subr.mxu0 0.0
    %2254 = vmatpush1.msra.mxu0 0.0
    %2255 = vmatprep.subr.mxu0 0.0
    %2256 = vmatpush1.msra.mxu0 0.0
    %2257 = vmatprep.subr.mxu0 0.0
    %2258 = vmatpush1.msra.mxu0 0.0
    %2259 = vmatprep.subr.mxu0 0.0
    %2260 = vmatpush1.msra.mxu0 0.0
    %2261 = vmatprep.subr.mxu0 0.0
    %2262 = vmatpush1.msra.mxu0 0.0
    %2263 = vmatprep.subr.mxu0 0.0
    %2264 = vmatpush1.msra.mxu0 0.0
    %2265 = vmatprep.subr.mxu0 0.0
    %2266 = vmatpush1.msra.mxu0 0.0
    %2267 = vmatprep.mubr.f32.mxu0 0.0
    %2268 = vmatmul.mubr.f32.gmra.mrb[0].mxu0 %v2201
    %v2269 = vpop.f32.mrb[0].mxu0
    %v2270 = vadd.f32 0.0, %v2269
    %v2271 = vpop.f32.mrb[0].mxu0
    %2272 = vdwg.mxu0
    %v2273 = vadd.f32 %v2196, %v2270
    %v2274 = vxor.u32 %v2273, 2147483648
    %v2275 = vmul.f32 %v2274, 1.442695
    %v2276 = vpow.pop %v2275
    %v2277 = vadd.f32 %v2276, 1.0
    %v2278 = vrcp.pop %v2277
    %v2279 = vmul.f32 1.0, %v2278
    %v2280 = vtanh.pop %v2273
    %v2281 = vmul.f32 %v2279, %v2064
    %2283 = vrot.lane.b32.xlu0 %v2280, 64
    %v2284 = vpop.permute.xlu0 %2283
    %v2286 = vmul.f32 %v2279, %v2284
    %2288 = vrot.lane.b32.xlu0 %v2286, 32
    %v2289 = vpop.permute.xlu0 %2288
    %v2291 = vadd.f32 %v2281, %v2289
    %v2292 = vtanh.pop %v2291
    %2294 = vrot.lane.b32.xlu0 %v2292, 64
    %v2295 = vpop.permute.xlu0 %2294
    %v2297 = vmul.f32 %v2279, %v2295
    %v2298 = vsel %vm2193, 1, 0
    %2299 = vset.pattern.permute.xlu0 0
    %2300 = vperm.xlu0 %2299, %v2298
    %v2301 = vpop.permute.xlu0 %2300
    %vm2302 = vcmp.eq.s32.totalorder %v2301, 1
    %v2303 = vsel %vm2302, %v2297, %v2063
    %v2304 = vsel %vm2302, %v2291, %v2064
    %2306 = vrot.lane.b32.xlu0 %v2303, 32
    %v2307 = vpop.permute.xlu0 %2306
    %2309 = vrot.lane.b32.xlu0 %v2185, 64
    %v2310 = vpop.permute.xlu0 %2309
    %v2312 = vsel %vm129, %v2307, %v2310
    %v2313 = vld [vmem:[%s11] sm:$0xff]
    %v2314 = vld [vmem:[%s11 + $0x8] sm:$0xff]
    %v2315 = vld [vmem:[%s11 + $0x10] sm:$0xff]
    %v2316 = vld [vmem:[%s11 + $0x18] sm:$0xff]
    %v2317 = vld [vmem:[%s11 + $0x20] sm:$0xff]
    %v2318 = vld [vmem:[%s11 + $0x28] sm:$0xff]
    %v2319 = vld [vmem:[%s11 + $0x30] sm:$0xff]
    %v2320 = vld [vmem:[%s11 + $0x38] sm:$0xff]
    %v2321 = vld [vmem:[%s12] sm:$0x1]
    %v2323 = vlaneseq
    %v2324 = vshrl.u32 %v2323, 7
    %v2325 = vsub.s32 0, %v2324
    %v2326 = vrot.slane %v2321, %v2325
    %v2329 = vsel %vm641, %v2312, 0
    %2331 = vmatprep.subr.mxu0 0.0
    %2332 = vmatpush1.msra.mxu0 %v2313
    %2333 = vmatprep.subr.mxu0 0.0
    %2334 = vmatpush1.msra.mxu0 %v2314
    %2335 = vmatprep.subr.mxu0 0.0
    %2336 = vmatpush1.msra.mxu0 %v2315
    %2337 = vmatprep.subr.mxu0 0.0
    %2338 = vmatpush1.msra.mxu0 %v2316
    %2339 = vmatprep.subr.mxu0 0.0
    %2340 = vmatpush1.msra.mxu0 %v2317
    %2341 = vmatprep.subr.mxu0 0.0
    %2342 = vmatpush1.msra.mxu0 %v2318
    %2343 = vmatprep.subr.mxu0 0.0
    %2344 = vmatpush1.msra.mxu0 %v2319
    %2345 = vmatprep.subr.mxu0 0.0
    %2346 = vmatpush1.msra.mxu0 %v2320
    %2347 = vmatprep.subr.mxu0 0.0
    %2348 = vmatpush1.msra.mxu0 0.0
    %2349 = vmatprep.subr.mxu0 0.0
    %2350 = vmatpush1.msra.mxu0 0.0
    %2351 = vmatprep.subr.mxu0 0.0
    %2352 = vmatpush1.msra.mxu0 0.0
    %2353 = vmatprep.subr.mxu0 0.0
    %2354 = vmatpush1.msra.mxu0 0.0
    %2355 = vmatprep.subr.mxu0 0.0
    %2356 = vmatpush1.msra.mxu0 0.0
    %2357 = vmatprep.subr.mxu0 0.0
    %2358 = vmatpush1.msra.mxu0 0.0
    %2359 = vmatprep.subr.mxu0 0.0
    %2360 = vmatpush1.msra.mxu0 0.0
    %2361 = vmatprep.subr.mxu0 0.0
    %2362 = vmatpush1.msra.mxu0 0.0
    %2363 = vmatprep.subr.mxu0 0.0
    %2364 = vmatpush1.msra.mxu0 0.0
    %2365 = vmatprep.subr.mxu0 0.0
    %2366 = vmatpush1.msra.mxu0 0.0
    %2367 = vmatprep.subr.mxu0 0.0
    %2368 = vmatpush1.msra.mxu0 0.0
    %2369 = vmatprep.subr.mxu0 0.0
    %2370 = vmatpush1.msra.mxu0 0.0
    %2371 = vmatprep.subr.mxu0 0.0
    %2372 = vmatpush1.msra.mxu0 0.0
    %2373 = vmatprep.subr.mxu0 0.0
    %2374 = vmatpush1.msra.mxu0 0.0
    %2375 = vmatprep.subr.mxu0 0.0
    %2376 = vmatpush1.msra.mxu0 0.0
    %2377 = vmatprep.subr.mxu0 0.0
    %2378 = vmatpush1.msra.mxu0 0.0
    %2379 = vmatprep.subr.mxu0 0.0
    %2380 = vmatpush1.msra.mxu0 0.0
    %2381 = vmatprep.subr.mxu0 0.0
    %2382 = vmatpush1.msra.mxu0 0.0
    %2383 = vmatprep.subr.mxu0 0.0
    %2384 = vmatpush1.msra.mxu0 0.0
    %2385 = vmatprep.subr.mxu0 0.0
    %2386 = vmatpush1.msra.mxu0 0.0
    %2387 = vmatprep.subr.mxu0 0.0
    %2388 = vmatpush1.msra.mxu0 0.0
    %2389 = vmatprep.subr.mxu0 0.0
    %2390 = vmatpush1.msra.mxu0 0.0
    %2391 = vmatprep.subr.mxu0 0.0
    %2392 = vmatpush1.msra.mxu0 0.0
    %2393 = vmatprep.subr.mxu0 0.0
    %2394 = vmatpush1.msra.mxu0 0.0
    %2395 = vmatprep.mubr.f32.mxu0 0.0
    %2396 = vmatmul.mubr.f32.gmra.mrb[0].mxu0 %v2329
    %v2397 = vpop.f32.mrb[0].mxu0
    %v2398 = vadd.f32 %v2326, %v2397
    %v2399 = vpop.f32.mrb[0].mxu0
    %2400 = vdwg.mxu0
    %v2401 = vxor.u32 %v2398, 2147483648
    %v2402 = vmul.f32 %v2401, 1.442695
    %v2403 = vpow.pop %v2402
    %v2404 = vadd.f32 %v2403, 1.0
    %v2405 = vrcp.pop %v2404
    %v2406 = vmul.f32 1.0, %v2405
    %v2407 = vtanh.pop %v2398
    %v2408 = vmul.f32 %v2406, %v2186
    %2410 = vrot.lane.b32.xlu0 %v2407, 64
    %v2411 = vpop.permute.xlu0 %2410
    %v2413 = vmul.f32 %v2406, %v2411
    %2415 = vrot.lane.b32.xlu0 %v2413, 32
    %v2416 = vpop.permute.xlu0 %2415
    %v2418 = vadd.f32 %v2408, %v2416
    %v2419 = vtanh.pop %v2418
    %2421 = vrot.lane.b32.xlu0 %v2419, 64
    %v2422 = vpop.permute.xlu0 %2421
    %v2424 = vmul.f32 %v2406, %v2422
    %v2425 = vsel %vm2302, %v2424, %v2185
    %v2426 = vsel %vm2302, %v2418, %v2186
    %2428 = vrot.lane.b32.xlu0 %v2425, 32
    %v2429 = vpop.permute.xlu0 %2428
    %s2431 = scalar_lea.vmem [#allocation3], 56
    %2432 = vst.msk [vmem:[%s2431] sm:$0xff] %vm129, %v2429
    %2433 = vst.msk [vmem:[#allocation14] sm:$0xff] %vm129, %v2307
    %s2434 = scalar_lea.vmem [#allocation14], 8
    %2435 = vst.msk [vmem:[%s2434] sm:$0xff] %vm129, %v2429
    %2437 = vrot.lane.b32.xlu0 %v2304, 96
    %v2438 = vpop.permute.xlu0 %2437
    %2440 = vst.msk [vmem:[#allocation16] sm:$0xff] %vm129, %v2438
    %2442 = vrot.lane.b32.xlu0 %v2426, 96
    %v2443 = vpop.permute.xlu0 %2442
    %s2445 = scalar_lea.vmem [#allocation16], 8
    %2446 = vst.msk [vmem:[%s2445] sm:$0xff] %vm129, %v2443
    %v2447 = vld [vmem:[#allocation3] sm:$0xff]
    %v2448 = vld [vmem:[#allocation3 + $0x8] sm:$0xff]
    %v2449 = vld [vmem:[#allocation3 + $0x10] sm:$0xff]
    %v2450 = vld [vmem:[#allocation3 + $0x18] sm:$0xff]
    %v2451 = vld [vmem:[#allocation3 + $0x20] sm:$0xff]
    %v2452 = vld [vmem:[#allocation3 + $0x28] sm:$0xff]
    %v2453 = vld [vmem:[#allocation3 + $0x30] sm:$0xff]
    %v2454 = vld [vmem:[#allocation3 + $0x38] sm:$0xff]
    %v2455 = vld [vmem:[#allocation12] sm:$0xff]
    %v2456 = vld [vmem:[#allocation12 + $0x8] sm:$0xff]
    %v2457 = vld [vmem:[#allocation12 + $0x10] sm:$0xff]
    %v2458 = vld [vmem:[#allocation12 + $0x18] sm:$0xff]
    %v2459 = vld [vmem:[%s14] sm:$0x1]
    %v2461 = vlaneseq
    %v2462 = vshrl.u32 %v2461, 7
    %v2463 = vsub.s32 0, %v2462
    %v2464 = vrot.slane %v2459, %v2463
    %v2467 = vsel %vm129, %v2447, 0
    %v2470 = vsel %vm129, %v2448, 0
    %v2473 = vsel %vm129, %v2449, 0
    %v2476 = vsel %vm129, %v2450, 0
    %v2479 = vsel %vm129, %v2451, 0
    %v2482 = vsel %vm129, %v2452, 0
    %v2485 = vsel %vm129, %v2453, 0
    %v2488 = vsel %vm129, %v2454, 0
    %2490 = vmatprep.subr.mxu0 0.0
    %2491 = vmatpush1.msra.mxu0 %v2455
    %2492 = vmatprep.subr.mxu0 0.0
    %2493 = vmatpush1.msra.mxu0 %v2456
    %2494 = vmatprep.subr.mxu0 0.0
    %2495 = vmatpush1.msra.mxu0 %v2457
    %2496 = vmatprep.subr.mxu0 0.0
    %2497 = vmatpush1.msra.mxu0 %v2458
    %2498 = vmatprep.subr.mxu0 0.0
    %2499 = vmatpush1.msra.mxu0 0.0
    %2500 = vmatprep.subr.mxu0 0.0
    %2501 = vmatpush1.msra.mxu0 0.0
    %2502 = vmatprep.subr.mxu0 0.0
    %2503 = vmatpush1.msra.mxu0 0.0
    %2504 = vmatprep.subr.mxu0 0.0
    %2505 = vmatpush1.msra.mxu0 0.0
    %2506 = vmatprep.subr.mxu0 0.0
    %2507 = vmatpush1.msra.mxu0 0.0
    %2508 = vmatprep.subr.mxu0 0.0
    %2509 = vmatpush1.msra.mxu0 0.0
    %2510 = vmatprep.subr.mxu0 0.0
    %2511 = vmatpush1.msra.mxu0 0.0
    %2512 = vmatprep.subr.mxu0 0.0
    %2513 = vmatpush1.msra.mxu0 0.0
    %2514 = vmatprep.subr.mxu0 0.0
    %2515 = vmatpush1.msra.mxu0 0.0
    %2516 = vmatprep.subr.mxu0 0.0
    %2517 = vmatpush1.msra.mxu0 0.0
    %2518 = vmatprep.subr.mxu0 0.0
    %2519 = vmatpush1.msra.mxu0 0.0
    %2520 = vmatprep.subr.mxu0 0.0
    %2521 = vmatpush1.msra.mxu0 0.0
    %2522 = vmatprep.subr.mxu0 0.0
    %2523 = vmatpush1.msra.mxu0 0.0
    %2524 = vmatprep.subr.mxu0 0.0
    %2525 = vmatpush1.msra.mxu0 0.0
    %2526 = vmatprep.subr.mxu0 0.0
    %2527 = vmatpush1.msra.mxu0 0.0
    %2528 = vmatprep.subr.mxu0 0.0
    %2529 = vmatpush1.msra.mxu0 0.0
    %2530 = vmatprep.subr.mxu0 0.0
    %2531 = vmatpush1.msra.mxu0 0.0
    %2532 = vmatprep.subr.mxu0 0.0
    %2533 = vmatpush1.msra.mxu0 0.0
    %2534 = vmatprep.subr.mxu0 0.0
    %2535 = vmatpush1.msra.mxu0 0.0
    %2536 = vmatprep.subr.mxu0 0.0
    %2537 = vmatpush1.msra.mxu0 0.0
    %2538 = vmatprep.subr.mxu0 0.0
    %2539 = vmatpush1.msra.mxu0 0.0
    %2540 = vmatprep.subr.mxu0 0.0
    %2541 = vmatpush1.msra.mxu0 0.0
    %2542 = vmatprep.subr.mxu0 0.0
    %2543 = vmatpush1.msra.mxu0 0.0
    %2544 = vmatprep.subr.mxu0 0.0
    %2545 = vmatpush1.msra.mxu0 0.0
    %2546 = vmatprep.subr.mxu0 0.0
    %2547 = vmatpush1.msra.mxu0 0.0
    %2548 = vmatprep.subr.mxu0 0.0
    %2549 = vmatpush1.msra.mxu0 0.0
    %2550 = vmatprep.subr.mxu0 0.0
    %2551 = vmatpush1.msra.mxu0 0.0
    %2552 = vmatprep.subr.mxu0 0.0
    %2553 = vmatpush1.msra.mxu0 0.0
    %2554 = vmatprep.mubr.f32.mxu0 0.0
    %2555 = vmatmul.mubr.f32.gmra.mrb[0].mxu0 %v2467
    %v2556 = vpop.f32.mrb[0].mxu0
    %v2557 = vadd.f32 %v2464, %v2556
    %v2558 = vpop.f32.mrb[0].mxu0
    %2559 = vmatprep.mubr.f32.mxu0 0.0
    %2560 = vmatmul.mubr.f32.gmra.mrb[0].mxu0 %v2470
    %v2561 = vpop.f32.mrb[0].mxu0
    %v2562 = vadd.f32 %v2464, %v2561
    %v2563 = vpop.f32.mrb[0].mxu0
    %2564 = vmatprep.mubr.f32.mxu0 0.0
    %2565 = vmatmul.mubr.f32.gmra.mrb[0].mxu0 %v2473
    %v2566 = vpop.f32.mrb[0].mxu0
    %v2567 = vadd.f32 %v2464, %v2566
    %v2568 = vpop.f32.mrb[0].mxu0
    %2569 = vmatprep.mubr.f32.mxu0 0.0
    %2570 = vmatmul.mubr.f32.gmra.mrb[0].mxu0 %v2476
    %v2571 = vpop.f32.mrb[0].mxu0
    %v2572 = vadd.f32 %v2464, %v2571
    %v2573 = vpop.f32.mrb[0].mxu0
    %2574 = vmatprep.mubr.f32.mxu0 0.0
    %2575 = vmatmul.mubr.f32.gmra.mrb[0].mxu0 %v2479
    %v2576 = vpop.f32.mrb[0].mxu0
    %v2577 = vadd.f32 %v2464, %v2576
    %v2578 = vpop.f32.mrb[0].mxu0
    %2579 = vmatprep.mubr.f32.mxu0 0.0
    %2580 = vmatmul.mubr.f32.gmra.mrb[0].mxu0 %v2482
    %v2581 = vpop.f32.mrb[0].mxu0
    %v2582 = vadd.f32 %v2464, %v2581
    %v2583 = vpop.f32.mrb[0].mxu0
    %2584 = vmatprep.mubr.f32.mxu0 0.0
    %2585 = vmatmul.mubr.f32.gmra.mrb[0].mxu0 %v2485
    %v2586 = vpop.f32.mrb[0].mxu0
    %v2587 = vadd.f32 %v2464, %v2586
    %v2588 = vpop.f32.mrb[0].mxu0
    %2589 = vmatprep.mubr.f32.mxu0 0.0
    %2590 = vmatmul.mubr.f32.gmra.mrb[0].mxu0 %v2488
    %v2591 = vpop.f32.mrb[0].mxu0
    %v2592 = vadd.f32 %v2464, %v2591
    %v2593 = vpop.f32.mrb[0].mxu0
    %2594 = vdwg.mxu0
    %2595 = vst [vmem:[#allocation13] sm:$0xff] %v2557
    %2596 = vst [vmem:[#allocation13 + $0x8] sm:$0xff] %v2562
    %2597 = vst [vmem:[#allocation13 + $0x10] sm:$0xff] %v2567
    %2598 = vst [vmem:[#allocation13 + $0x18] sm:$0xff] %v2572
    %2599 = vst [vmem:[#allocation13 + $0x20] sm:$0xff] %v2577
    %2600 = vst [vmem:[#allocation13 + $0x28] sm:$0xff] %v2582
    %2601 = vst [vmem:[#allocation13 + $0x30] sm:$0xff] %v2587
    %2602 = vst [vmem:[#allocation13 + $0x38] sm:$0xff] %v2592
    // Predicated region
    $region82: #{tpu_custom_call.1} parent=1 // pred_check
      _
    $region83: #{tpu_custom_call.1} parent=1 // pred_check_branch
      %2604 = sbr.rel (0) target = $region85
    $region84: #{tpu_custom_call.1} parent=1 // pred_region
      %s2606 = ssub.s32 1024, 1024
      %2607 = vsyncadd [#allocation6], %s2606
      %s2608 = sshll.u32 [#allocation13], 4
      %s2609 = int_to_ptr.vmem [resolvable:$true] %s2608
      %2614 = dma.vmem_to_hbm [thread:$0]  %s2609, 1024, %s15, [#allocation6], 128, 128, 8
    $region85: #{tpu_custom_call.1} parent=1 // pred_fallthru
      _
    // Predicated region
    $region86: #{tpu_custom_call.1} parent=1 // pred_check
      _
    $region87: #{tpu_custom_call.1} parent=1 // pred_check_branch
      %2616 = sbr.rel (0) target = $region89
    $region88: #{tpu_custom_call.1} parent=1 // pred_region
      %s2618 = ssub.s32 256, 256
      %2619 = vsyncadd [#allocation15], %s2618
      %s2620 = sshll.u32 [#allocation14], 4
      %s2621 = int_to_ptr.vmem [resolvable:$true] %s2620
      %2626 = dma.vmem_to_hbm [thread:$0]  %s2621, 256, %s16, [#allocation15], 128, 128, 8
    $region89: #{tpu_custom_call.1} parent=1 // pred_fallthru
      _
    // Predicated region
    $region90: #{tpu_custom_call.1} parent=1 // pred_check
      _
    $region91: #{tpu_custom_call.1} parent=1 // pred_check_branch
      %2628 = sbr.rel (0) target = $region93
    $region92: #{tpu_custom_call.1} parent=1 // pred_region
      %s2630 = ssub.s32 256, 256
      %2631 = vsyncadd [#allocation15], %s2630
      %s2632 = sshll.u32 [#allocation16], 4
      %s2633 = int_to_ptr.vmem [resolvable:$true] %s2632
      %2638 = dma.vmem_to_hbm [thread:$0]  %s2633, 256, %s17, [#allocation15], 128, 128, 8
    $region93: #{tpu_custom_call.1} parent=1 // pred_fallthru
      _
    // Predicated region
    $region94: #{tpu_custom_call.1} parent=1 // pred_check
      _
    $region95: #{tpu_custom_call.1} parent=1 // pred_check_branch
      %2640 = sbr.rel (0) target = $region97
    $region96: #{tpu_custom_call.1} parent=1 // pred_region
      %2641 = dma.done [#allocation6], 1024
    $region97: #{tpu_custom_call.1} parent=1 // pred_fallthru
      _
    // Predicated region
    $region98: #{tpu_custom_call.1} parent=1 // pred_check
      _
    $region99: #{tpu_custom_call.1} parent=1 // pred_check_branch
      %2643 = sbr.rel (0) target = $region101
    $region100: #{tpu_custom_call.1} parent=1 // pred_region
      %2644 = dma.done [#allocation15], 256
    $region101: #{tpu_custom_call.1} parent=1 // pred_fallthru
      _
    // Predicated region
    $region102: #{tpu_custom_call.1} parent=1 // pred_check
      _
    $region103: #{tpu_custom_call.1} parent=1 // pred_check_branch
      %2646 = sbr.rel (0) target = $region105
    $region104: #{tpu_custom_call.1} parent=1 // pred_region
      %2647 = dma.done [#allocation15], 256
    $region105: #{tpu_custom_call.1} parent=1 // pred_fallthru
      _
    %2648 = vsyncpa [#allocation5], 1
    %2649 = vsyncpa [#allocation8], 1
    %2650 = vsyncpa [#allocation11], 1
    %2651 = vsyncpa [#allocation6], 1
    %2652 = vsyncpa [#allocation15], 1

</llo_original>
